<compile_context>
chip_gen: v6e
topology: v6e:2x2x1
jax: 0.10.0
libtpu: 0.0.40
codegen_flags: <defaults>
</compile_context>

<pallas_src>
import functools

import jax
import jax.numpy as jnp
from jax.experimental import pallas as pl
from jax.experimental.pallas import tpu as pltpu


# ----------------------------- configuration -------------------------------
B = 4            # batch
S = 8            # max_seq_len (== total_length in pad_packed_sequence)
Z_DIM = 6        # args.Z_dim == rnn_feature_dim (use_TimesNet=False)
HIDDEN = 32      # args.hidden_dim
DYN_DIM = 5      # args.dynamic_dim
LAB_DIM = 3      # args.label_dim
PADDING_VALUE = -1.0
# TODO(synk): TimesNet branch (use_TimesNet=True) and add_history>0 history
# concatenation are not implemented; this config matches use_TimesNet=False,
# use_RNN=True, conditional=True, add_history=0, num_layers=1.


# ------------------------------- kernel ------------------------------------
def _generator_kernel(z_ref, t_ref, c_ref,
                      w_ih_r_ref, w_ih_z_ref, w_ih_n_ref,
                      w_hh_r_ref, w_hh_z_ref, w_hh_n_ref,
                      b_r_ref, b_z_ref, b_in_ref, b_hn_ref,
                      w_cond_ref, b_cond_ref,
                      w_lin_h_ref, w_lin_c_ref, b_lin_ref,
                      out_ref,
                      *, seq_len, batch, padding_value):
    H = w_hh_r_ref.shape[0]

    # ---------- hoisted work (off the serial recurrence critical path) -----
    # conditional embedding and its contribution to gen_linear
    cond_emb = (jnp.dot(c_ref[...], w_cond_ref[...],
                        preferred_element_type=jnp.float32) + b_cond_ref[...])
    cond_part = (jnp.dot(cond_emb, w_lin_c_ref[...],
                         preferred_element_type=jnp.float32) + b_lin_ref[...])

    # input-path GRU matmuls for every timestep at once (one MXU op per gate)
    z_flat = z_ref[...]                                       # (S*Bp, Z_dim)
    gx_r = jnp.dot(z_flat, w_ih_r_ref[...],
                   preferred_element_type=jnp.float32) + b_r_ref[...]
    gx_z = jnp.dot(z_flat, w_ih_z_ref[...],
                   preferred_element_type=jnp.float32) + b_z_ref[...]
    gx_n = jnp.dot(z_flat, w_ih_n_ref[...],
                   preferred_element_type=jnp.float32) + b_in_ref[...]

    # length mask: broadcast lengths once to (Bp, H); per step only a compare
    len_b = jnp.broadcast_to(t_ref[...], (batch, H))          # (Bp, H) int32
    masks = [len_b > t for t in range(seq_len)]

    w_hh_r = w_hh_r_ref[...]
    w_hh_z = w_hh_z_ref[...]
    w_hh_n = w_hh_n_ref[...]
    b_hn = b_hn_ref[...]

    # ---------- fully unrolled GRU recurrence (hidden-path work only) ------
    h = jnp.zeros((batch, H), jnp.float32)
    h_outs = []
    for t in range(seq_len):
        gh_r = jnp.dot(h, w_hh_r, preferred_element_type=jnp.float32)
        gh_z = jnp.dot(h, w_hh_z, preferred_element_type=jnp.float32)
        gh_n = jnp.dot(h, w_hh_n, preferred_element_type=jnp.float32) + b_hn

        lo = t * batch                      # static, tile-aligned (batch == 8)
        r = jax.nn.sigmoid(gx_r[lo:lo + batch, :] + gh_r)
        zg = jax.nn.sigmoid(gx_z[lo:lo + batch, :] + gh_z)
        n = jnp.tanh(gx_n[lo:lo + batch, :] + r * gh_n)
        h_new = (1.0 - zg) * n + zg * h

        mask = masks[t]                     # (Bp, H) bool, no per-step broadcast
        h = jnp.where(mask, h_new, h)
        h_outs.append(jnp.where(mask, h_new, padding_value))

    # ---------- hoisted gen_linear + sigmoid: one matmul, one bulk store ---
    h_all = jnp.concatenate(h_outs, axis=0)                   # (S*Bp, H), 8-row aligned
    lin = jnp.dot(h_all, w_lin_h_ref[...],
                  preferred_element_type=jnp.float32)
    cond_tiled = jnp.concatenate([cond_part] * seq_len, axis=0)
    out_ref[...] = jax.nn.sigmoid(lin + cond_tiled)


# ------------------------------- wrapper ------------------------------------
def generator_forward(Z, T, D, L, kparams):
    """Z: (B, S, Z_dim) f32, T: (B,) int32 lengths, D: (B, DYN_DIM), L: (B, LAB_DIM)."""
    Bsz, Ssz, Zd = Z.shape
    b_pad = max(8, -(-Bsz // 8) * 8)        # fill all 8 vreg sublanes
    pad = b_pad - Bsz

    # time-major, batch-padded, flattened to (S*Bp, Z_dim)
    z_tm = jnp.transpose(Z, (1, 0, 2))                        # (S, B, Z)
    z_tm = jnp.pad(z_tm, ((0, 0), (0, pad), (0, 0)))          # (S, Bp, Z)
    z_flat = z_tm.reshape(Ssz * b_pad, Zd)

    t_col = jnp.pad(T.astype(jnp.int32), (0, pad)).reshape(b_pad, 1)   # pads get len 0
    C = jnp.concatenate([D, L], axis=1)
    C = jnp.pad(C, ((0, pad), (0, 0)))                        # (Bp, DYN+LAB)

    kernel = functools.partial(_generator_kernel,
                               seq_len=Ssz, batch=b_pad,
                               padding_value=PADDING_VALUE)

    out_flat = pl.pallas_call(
        kernel,
        out_shape=jax.ShapeDtypeStruct((Ssz * b_pad, HIDDEN), jnp.float32),
    )(z_flat, t_col, C,
      kparams["w_ih_r"], kparams["w_ih_z"], kparams["w_ih_n"],
      kparams["w_hh_r"], kparams["w_hh_z"], kparams["w_hh_n"],
      kparams["b_r"], kparams["b_z"], kparams["b_in"], kparams["b_hn"],
      kparams["w_cond"], kparams["b_cond"],
      kparams["w_lin_h"], kparams["w_lin_c"], kparams["b_lin"])

    out = out_flat.reshape(Ssz, b_pad, HIDDEN)[:, :Bsz, :]    # drop batch padding
    return jnp.transpose(out, (1, 0, 2))                      # (B, S, HIDDEN)


# ------------------------- deterministic parameters --------------------------
def _xavier(key, shape):
    fan_in, fan_out = shape[0], shape[1]
    a = (6.0 / (fan_in + fan_out)) ** 0.5
    return jax.random.uniform(key, shape, jnp.float32, -a, a)


def make_params(key):
    """PyTorch-layout params (weights pre-transposed for x @ W)."""
    ks = jax.random.split(key, 6)
    w_ih = _xavier(ks[0], (Z_DIM, 3 * HIDDEN))          # weight_ih (xavier), gates r,z,n
    w_hh = _xavier(ks[1], (HIDDEN, 3 * HIDDEN))         # weight_hh (xavier)
    b_ih = jnp.ones((1, 3 * HIDDEN), jnp.float32)       # bias_ih.fill_(1)
    b_hh = jnp.zeros((1, 3 * HIDDEN), jnp.float32)      # bias_hh.fill_(0)
    w_cond = _xavier(ks[2], (DYN_DIM + LAB_DIM, HIDDEN))
    b_cond = jax.random.uniform(ks[3], (1, HIDDEN), jnp.float32, -0.1, 0.1)
    w_lin = _xavier(ks[4], (2 * HIDDEN, HIDDEN))        # gen_linear, xavier / zero bias
    b_lin = jnp.zeros((1, HIDDEN), jnp.float32)
    return dict(w_ih=w_ih, w_hh=w_hh, b_ih=b_ih, b_hh=b_hh,
                w_cond=w_cond, b_cond=b_cond, w_lin=w_lin, b_lin=b_lin)


def prepare_kernel_params(p):
    """Split into per-gate refs (lane-aligned) and fold b_hh into b_ih for r/z."""
    H = HIDDEN
    w_ih, w_hh, b_ih, b_hh = p["w_ih"], p["w_hh"], p["b_ih"], p["b_hh"]
    return dict(
        w_ih_r=w_ih[:, :H], w_ih_z=w_ih[:, H:2 * H], w_ih_n=w_ih[:, 2 * H:],
        w_hh_r=w_hh[:, :H], w_hh_z=w_hh[:, H:2 * H], w_hh_n=w_hh[:, 2 * H:],
        b_r=b_ih[:, :H] + b_hh[:, :H],
        b_z=b_ih[:, H:2 * H] + b_hh[:, H:2 * H],
        b_in=b_ih[:, 2 * H:],
        b_hn=b_hh[:, 2 * H:],                 # stays separate: inside r*(W_hn h + b_hn)
        w_cond=p["w_cond"], b_cond=p["b_cond"],
        w_lin_h=p["w_lin"][:H, :], w_lin_c=p["w_lin"][H:, :],
        b_lin=p["b_lin"],
    )


# ------------------------------ pure-JAX reference ---------------------------
def reference_forward(Z, T, D, L, p):
    Bsz, Ssz, _ = Z.shape
    H = HIDDEN
    C = jnp.concatenate([D, L], axis=1)
    cond_emb = C @ p["w_cond"] + p["b_cond"]
    h = jnp.zeros((Bsz, H), jnp.float32)
    outs = []
    for t in range(Ssz):
        x_t = Z[:, t, :]
        gx = x_t @ p["w_ih"] + p["b_ih"]
        gh = h @ p["w_hh"] + p["b_hh"]
        r = jax.nn.sigmoid(gx[:, :H] + gh[:, :H])
        zg = jax.nn.sigmoid(gx[:, H:2 * H] + gh[:, H:2 * H])
        n = jnp.tanh(gx[:, 2 * H:] + r * gh[:, 2 * H:])
        h_new = (1.0 - zg) * n + zg * h
        mask = (t < T).reshape(Bsz, 1)
        h = jnp.where(mask, h_new, h)
        h_out = jnp.where(mask, h_new, PADDING_VALUE)
        g_in = jnp.concatenate([h_out, cond_emb], axis=1)
        outs.append(jax.nn.sigmoid(g_in @ p["w_lin"] + p["b_lin"]))
    return jnp.stack(outs, axis=1)


# --------------------------------- main --------------------------------------
if __name__ == "__main__":
    key = jax.random.PRNGKey(0)
    kz, kd, kl, kp = jax.random.split(key, 4)

    Z = jax.random.normal(kz, (B, S, Z_DIM), jnp.float32)
    T = jnp.array([S, 5, 3, S], dtype=jnp.int32)        # variable lengths
    D = jax.random.normal(kd, (B, DYN_DIM), jnp.float32)
    L = jax.random.normal(kl, (B, LAB_DIM), jnp.float32)

    params = make_params(kp)
    kparams = prepare_kernel_params(params)

    out = generator_forward(Z, T, D, L, kparams)
    out = jax.block_until_ready(out)

    ref = reference_forward(Z, T, D, L, params)
    assert out.shape == (B, S, HIDDEN)
    assert jnp.allclose(out, ref, atol=1e-5, rtol=1e-5), "mismatch vs reference"

    print("KERNEL_OK")
</pallas_src>

<mosaic_0001>
module attributes {stable_mosaic.version = 11 : i64} {
  func.func @_generator_kernel(%arg0: memref<64x6xf32, #tpu.memory_space<vmem>>, %arg1: memref<8x1xi32, #tpu.memory_space<vmem>>, %arg2: memref<8x8xf32, #tpu.memory_space<vmem>>, %arg3: memref<6x32xf32, #tpu.memory_space<vmem>>, %arg4: memref<6x32xf32, #tpu.memory_space<vmem>>, %arg5: memref<6x32xf32, #tpu.memory_space<vmem>>, %arg6: memref<32x32xf32, #tpu.memory_space<vmem>>, %arg7: memref<32x32xf32, #tpu.memory_space<vmem>>, %arg8: memref<32x32xf32, #tpu.memory_space<vmem>>, %arg9: memref<1x32xf32, #tpu.memory_space<vmem>>, %arg10: memref<1x32xf32, #tpu.memory_space<vmem>>, %arg11: memref<1x32xf32, #tpu.memory_space<vmem>>, %arg12: memref<1x32xf32, #tpu.memory_space<vmem>>, %arg13: memref<8x32xf32, #tpu.memory_space<vmem>>, %arg14: memref<1x32xf32, #tpu.memory_space<vmem>>, %arg15: memref<32x32xf32, #tpu.memory_space<vmem>>, %arg16: memref<32x32xf32, #tpu.memory_space<vmem>>, %arg17: memref<1x32xf32, #tpu.memory_space<vmem>>, %arg18: memref<64x32xf32, #tpu.memory_space<vmem>>) attributes {dimension_semantics = [], scalar_prefetch = 0 : i64, scratch_operands = 0 : i64, tpu.core_type = #tpu.core_type<tc>} {
    %c0 = arith.constant 0 : index
    %c0_0 = arith.constant 0 : index
    %0 = vector.load %arg2[%c0, %c0_0] : memref<8x8xf32, #tpu.memory_space<vmem>>, vector<8x8xf32>
    %c0_1 = arith.constant 0 : index
    %c0_2 = arith.constant 0 : index
    %1 = vector.load %arg13[%c0_1, %c0_2] : memref<8x32xf32, #tpu.memory_space<vmem>>, vector<8x32xf32>
    %cst = arith.constant dense<0.000000e+00> : vector<8x32xf32>
    %2 = tpu.matmul %0, %1, %cst {dimension_numbers = #tpu.dot_dimension_numbers<[1], [0], [0], [1], [0, 0, 1, 1], [], []>} : vector<8x8xf32>, vector<8x32xf32>, vector<8x32xf32> -> vector<8x32xf32>
    %c0_3 = arith.constant 0 : index
    %c0_4 = arith.constant 0 : index
    %3 = vector.load %arg14[%c0_3, %c0_4] : memref<1x32xf32, #tpu.memory_space<vmem>>, vector<1x32xf32>
    %4 = vector.broadcast %3 : vector<1x32xf32> to vector<8x32xf32>
    %5 = arith.addf %2, %4 : vector<8x32xf32>
    %c0_5 = arith.constant 0 : index
    %c0_6 = arith.constant 0 : index
    %6 = vector.load %arg16[%c0_5, %c0_6] : memref<32x32xf32, #tpu.memory_space<vmem>>, vector<32x32xf32>
    %cst_7 = arith.constant dense<0.000000e+00> : vector<8x32xf32>
    %7 = tpu.matmul %5, %6, %cst_7 {dimension_numbers = #tpu.dot_dimension_numbers<[1], [0], [0], [1], [0, 0, 1, 1], [], []>} : vector<8x32xf32>, vector<32x32xf32>, vector<8x32xf32> -> vector<8x32xf32>
    %c0_8 = arith.constant 0 : index
    %c0_9 = arith.constant 0 : index
    %8 = vector.load %arg17[%c0_8, %c0_9] : memref<1x32xf32, #tpu.memory_space<vmem>>, vector<1x32xf32>
    %9 = vector.broadcast %8 : vector<1x32xf32> to vector<8x32xf32>
    %10 = arith.addf %7, %9 : vector<8x32xf32>
    %c0_10 = arith.constant 0 : index
    %c0_11 = arith.constant 0 : index
    %11 = vector.load %arg0[%c0_10, %c0_11] : memref<64x6xf32, #tpu.memory_space<vmem>>, vector<64x6xf32>
    %c0_12 = arith.constant 0 : index
    %c0_13 = arith.constant 0 : index
    %12 = vector.load %arg3[%c0_12, %c0_13] : memref<6x32xf32, #tpu.memory_space<vmem>>, vector<6x32xf32>
    %cst_14 = arith.constant dense<0.000000e+00> : vector<64x32xf32>
    %13 = tpu.matmul %11, %12, %cst_14 {dimension_numbers = #tpu.dot_dimension_numbers<[1], [0], [0], [1], [0, 0, 1, 1], [], []>} : vector<64x6xf32>, vector<6x32xf32>, vector<64x32xf32> -> vector<64x32xf32>
    %c0_15 = arith.constant 0 : index
    %c0_16 = arith.constant 0 : index
    %14 = vector.load %arg9[%c0_15, %c0_16] : memref<1x32xf32, #tpu.memory_space<vmem>>, vector<1x32xf32>
    %15 = vector.broadcast %14 : vector<1x32xf32> to vector<64x32xf32>
    %16 = arith.addf %13, %15 : vector<64x32xf32>
    %c0_17 = arith.constant 0 : index
    %c0_18 = arith.constant 0 : index
    %17 = vector.load %arg4[%c0_17, %c0_18] : memref<6x32xf32, #tpu.memory_space<vmem>>, vector<6x32xf32>
    %cst_19 = arith.constant dense<0.000000e+00> : vector<64x32xf32>
    %18 = tpu.matmul %11, %17, %cst_19 {dimension_numbers = #tpu.dot_dimension_numbers<[1], [0], [0], [1], [0, 0, 1, 1], [], []>} : vector<64x6xf32>, vector<6x32xf32>, vector<64x32xf32> -> vector<64x32xf32>
    %c0_20 = arith.constant 0 : index
    %c0_21 = arith.constant 0 : index
    %19 = vector.load %arg10[%c0_20, %c0_21] : memref<1x32xf32, #tpu.memory_space<vmem>>, vector<1x32xf32>
    %20 = vector.broadcast %19 : vector<1x32xf32> to vector<64x32xf32>
    %21 = arith.addf %18, %20 : vector<64x32xf32>
    %c0_22 = arith.constant 0 : index
    %c0_23 = arith.constant 0 : index
    %22 = vector.load %arg5[%c0_22, %c0_23] : memref<6x32xf32, #tpu.memory_space<vmem>>, vector<6x32xf32>
    %cst_24 = arith.constant dense<0.000000e+00> : vector<64x32xf32>
    %23 = tpu.matmul %11, %22, %cst_24 {dimension_numbers = #tpu.dot_dimension_numbers<[1], [0], [0], [1], [0, 0, 1, 1], [], []>} : vector<64x6xf32>, vector<6x32xf32>, vector<64x32xf32> -> vector<64x32xf32>
    %c0_25 = arith.constant 0 : index
    %c0_26 = arith.constant 0 : index
    %24 = vector.load %arg11[%c0_25, %c0_26] : memref<1x32xf32, #tpu.memory_space<vmem>>, vector<1x32xf32>
    %25 = vector.broadcast %24 : vector<1x32xf32> to vector<64x32xf32>
    %26 = arith.addf %23, %25 : vector<64x32xf32>
    %c0_27 = arith.constant 0 : index
    %c0_28 = arith.constant 0 : index
    %27 = vector.load %arg1[%c0_27, %c0_28] : memref<8x1xi32, #tpu.memory_space<vmem>>, vector<8x1xi32>
    %28 = vector.shape_cast %27 : vector<8x1xi32> to vector<8x1xi32>
    %29 = vector.broadcast %28 : vector<8x1xi32> to vector<8x32xi32>
    %c0_i32 = arith.constant 0 : i32
    %30 = vector.broadcast %c0_i32 : i32 to vector<8x32xi32>
    %31 = arith.cmpi sgt, %29, %30 : vector<8x32xi32>
    %c1_i32 = arith.constant 1 : i32
    %32 = vector.broadcast %c1_i32 : i32 to vector<8x32xi32>
    %33 = arith.cmpi sgt, %29, %32 : vector<8x32xi32>
    %c2_i32 = arith.constant 2 : i32
    %34 = vector.broadcast %c2_i32 : i32 to vector<8x32xi32>
    %35 = arith.cmpi sgt, %29, %34 : vector<8x32xi32>
    %c3_i32 = arith.constant 3 : i32
    %36 = vector.broadcast %c3_i32 : i32 to vector<8x32xi32>
    %37 = arith.cmpi sgt, %29, %36 : vector<8x32xi32>
    %c4_i32 = arith.constant 4 : i32
    %38 = vector.broadcast %c4_i32 : i32 to vector<8x32xi32>
    %39 = arith.cmpi sgt, %29, %38 : vector<8x32xi32>
    %c5_i32 = arith.constant 5 : i32
    %40 = vector.broadcast %c5_i32 : i32 to vector<8x32xi32>
    %41 = arith.cmpi sgt, %29, %40 : vector<8x32xi32>
    %c6_i32 = arith.constant 6 : i32
    %42 = vector.broadcast %c6_i32 : i32 to vector<8x32xi32>
    %43 = arith.cmpi sgt, %29, %42 : vector<8x32xi32>
    %c7_i32 = arith.constant 7 : i32
    %44 = vector.broadcast %c7_i32 : i32 to vector<8x32xi32>
    %45 = arith.cmpi sgt, %29, %44 : vector<8x32xi32>
    %c0_29 = arith.constant 0 : index
    %c0_30 = arith.constant 0 : index
    %46 = vector.load %arg6[%c0_29, %c0_30] : memref<32x32xf32, #tpu.memory_space<vmem>>, vector<32x32xf32>
    %c0_31 = arith.constant 0 : index
    %c0_32 = arith.constant 0 : index
    %47 = vector.load %arg7[%c0_31, %c0_32] : memref<32x32xf32, #tpu.memory_space<vmem>>, vector<32x32xf32>
    %c0_33 = arith.constant 0 : index
    %c0_34 = arith.constant 0 : index
    %48 = vector.load %arg8[%c0_33, %c0_34] : memref<32x32xf32, #tpu.memory_space<vmem>>, vector<32x32xf32>
    %c0_35 = arith.constant 0 : index
    %c0_36 = arith.constant 0 : index
    %49 = vector.load %arg12[%c0_35, %c0_36] : memref<1x32xf32, #tpu.memory_space<vmem>>, vector<1x32xf32>
    %cst_37 = arith.constant 0.000000e+00 : f32
    %50 = vector.broadcast %cst_37 : f32 to vector<8x32xf32>
    %cst_38 = arith.constant dense<0.000000e+00> : vector<8x32xf32>
    %51 = tpu.matmul %50, %46, %cst_38 {dimension_numbers = #tpu.dot_dimension_numbers<[1], [0], [0], [1], [0, 0, 1, 1], [], []>} : vector<8x32xf32>, vector<32x32xf32>, vector<8x32xf32> -> vector<8x32xf32>
    %cst_39 = arith.constant dense<0.000000e+00> : vector<8x32xf32>
    %52 = tpu.matmul %50, %47, %cst_39 {dimension_numbers = #tpu.dot_dimension_numbers<[1], [0], [0], [1], [0, 0, 1, 1], [], []>} : vector<8x32xf32>, vector<32x32xf32>, vector<8x32xf32> -> vector<8x32xf32>
    %cst_40 = arith.constant dense<0.000000e+00> : vector<8x32xf32>
    %53 = tpu.matmul %50, %48, %cst_40 {dimension_numbers = #tpu.dot_dimension_numbers<[1], [0], [0], [1], [0, 0, 1, 1], [], []>} : vector<8x32xf32>, vector<32x32xf32>, vector<8x32xf32> -> vector<8x32xf32>
    %54 = vector.broadcast %49 : vector<1x32xf32> to vector<8x32xf32>
    %55 = arith.addf %53, %54 : vector<8x32xf32>
    %56 = vector.extract_strided_slice %16 {offsets = [0, 0], sizes = [8, 32], strides = [1, 1]} : vector<64x32xf32> to vector<8x32xf32>
    %57 = arith.addf %56, %51 : vector<8x32xf32>
    %58 = arith.negf %57 : vector<8x32xf32>
    %59 = math.exp %58 : vector<8x32xf32>
    %cst_41 = arith.constant 1.000000e+00 : f32
    %60 = vector.broadcast %cst_41 : f32 to vector<8x32xf32>
    %61 = arith.addf %60, %59 : vector<8x32xf32>
    %62 = arith.divf %60, %61 : vector<8x32xf32>
    %63 = vector.extract_strided_slice %21 {offsets = [0, 0], sizes = [8, 32], strides = [1, 1]} : vector<64x32xf32> to vector<8x32xf32>
    %64 = arith.addf %63, %52 : vector<8x32xf32>
    %65 = arith.negf %64 : vector<8x32xf32>
    %66 = math.exp %65 : vector<8x32xf32>
    %cst_42 = arith.constant 1.000000e+00 : f32
    %67 = vector.broadcast %cst_42 : f32 to vector<8x32xf32>
    %68 = arith.addf %67, %66 : vector<8x32xf32>
    %69 = arith.divf %67, %68 : vector<8x32xf32>
    %70 = vector.extract_strided_slice %26 {offsets = [0, 0], sizes = [8, 32], strides = [1, 1]} : vector<64x32xf32> to vector<8x32xf32>
    %71 = arith.mulf %62, %55 : vector<8x32xf32>
    %72 = arith.addf %70, %71 : vector<8x32xf32>
    %73 = math.tanh %72 : vector<8x32xf32>
    %cst_43 = arith.constant 1.000000e+00 : f32
    %74 = vector.broadcast %cst_43 : f32 to vector<8x32xf32>
    %75 = arith.subf %74, %69 : vector<8x32xf32>
    %76 = arith.mulf %75, %73 : vector<8x32xf32>
    %77 = arith.mulf %69, %50 : vector<8x32xf32>
    %78 = arith.addf %76, %77 : vector<8x32xf32>
    %79 = arith.select %31, %78, %50 : vector<8x32xi1>, vector<8x32xf32>
    %cst_44 = arith.constant -1.000000e+00 : f32
    %80 = vector.broadcast %cst_44 : f32 to vector<8x32xf32>
    %81 = arith.select %31, %78, %80 : vector<8x32xi1>, vector<8x32xf32>
    %cst_45 = arith.constant dense<0.000000e+00> : vector<8x32xf32>
    %82 = tpu.matmul %79, %46, %cst_45 {dimension_numbers = #tpu.dot_dimension_numbers<[1], [0], [0], [1], [0, 0, 1, 1], [], []>} : vector<8x32xf32>, vector<32x32xf32>, vector<8x32xf32> -> vector<8x32xf32>
    %cst_46 = arith.constant dense<0.000000e+00> : vector<8x32xf32>
    %83 = tpu.matmul %79, %47, %cst_46 {dimension_numbers = #tpu.dot_dimension_numbers<[1], [0], [0], [1], [0, 0, 1, 1], [], []>} : vector<8x32xf32>, vector<32x32xf32>, vector<8x32xf32> -> vector<8x32xf32>
    %cst_47 = arith.constant dense<0.000000e+00> : vector<8x32xf32>
    %84 = tpu.matmul %79, %48, %cst_47 {dimension_numbers = #tpu.dot_dimension_numbers<[1], [0], [0], [1], [0, 0, 1, 1], [], []>} : vector<8x32xf32>, vector<32x32xf32>, vector<8x32xf32> -> vector<8x32xf32>
    %85 = vector.broadcast %49 : vector<1x32xf32> to vector<8x32xf32>
    %86 = arith.addf %84, %85 : vector<8x32xf32>
    %87 = vector.extract_strided_slice %16 {offsets = [8, 0], sizes = [8, 32], strides = [1, 1]} : vector<64x32xf32> to vector<8x32xf32>
    %88 = arith.addf %87, %82 : vector<8x32xf32>
    %89 = arith.negf %88 : vector<8x32xf32>
    %90 = math.exp %89 : vector<8x32xf32>
    %cst_48 = arith.constant 1.000000e+00 : f32
    %91 = vector.broadcast %cst_48 : f32 to vector<8x32xf32>
    %92 = arith.addf %91, %90 : vector<8x32xf32>
    %93 = arith.divf %91, %92 : vector<8x32xf32>
    %94 = vector.extract_strided_slice %21 {offsets = [8, 0], sizes = [8, 32], strides = [1, 1]} : vector<64x32xf32> to vector<8x32xf32>
    %95 = arith.addf %94, %83 : vector<8x32xf32>
    %96 = arith.negf %95 : vector<8x32xf32>
    %97 = math.exp %96 : vector<8x32xf32>
    %cst_49 = arith.constant 1.000000e+00 : f32
    %98 = vector.broadcast %cst_49 : f32 to vector<8x32xf32>
    %99 = arith.addf %98, %97 : vector<8x32xf32>
    %100 = arith.divf %98, %99 : vector<8x32xf32>
    %101 = vector.extract_strided_slice %26 {offsets = [8, 0], sizes = [8, 32], strides = [1, 1]} : vector<64x32xf32> to vector<8x32xf32>
    %102 = arith.mulf %93, %86 : vector<8x32xf32>
    %103 = arith.addf %101, %102 : vector<8x32xf32>
    %104 = math.tanh %103 : vector<8x32xf32>
    %cst_50 = arith.constant 1.000000e+00 : f32
    %105 = vector.broadcast %cst_50 : f32 to vector<8x32xf32>
    %106 = arith.subf %105, %100 : vector<8x32xf32>
    %107 = arith.mulf %106, %104 : vector<8x32xf32>
    %108 = arith.mulf %100, %79 : vector<8x32xf32>
    %109 = arith.addf %107, %108 : vector<8x32xf32>
    %110 = arith.select %33, %109, %79 : vector<8x32xi1>, vector<8x32xf32>
    %cst_51 = arith.constant -1.000000e+00 : f32
    %111 = vector.broadcast %cst_51 : f32 to vector<8x32xf32>
    %112 = arith.select %33, %109, %111 : vector<8x32xi1>, vector<8x32xf32>
    %cst_52 = arith.constant dense<0.000000e+00> : vector<8x32xf32>
    %113 = tpu.matmul %110, %46, %cst_52 {dimension_numbers = #tpu.dot_dimension_numbers<[1], [0], [0], [1], [0, 0, 1, 1], [], []>} : vector<8x32xf32>, vector<32x32xf32>, vector<8x32xf32> -> vector<8x32xf32>
    %cst_53 = arith.constant dense<0.000000e+00> : vector<8x32xf32>
    %114 = tpu.matmul %110, %47, %cst_53 {dimension_numbers = #tpu.dot_dimension_numbers<[1], [0], [0], [1], [0, 0, 1, 1], [], []>} : vector<8x32xf32>, vector<32x32xf32>, vector<8x32xf32> -> vector<8x32xf32>
    %cst_54 = arith.constant dense<0.000000e+00> : vector<8x32xf32>
    %115 = tpu.matmul %110, %48, %cst_54 {dimension_numbers = #tpu.dot_dimension_numbers<[1], [0], [0], [1], [0, 0, 1, 1], [], []>} : vector<8x32xf32>, vector<32x32xf32>, vector<8x32xf32> -> vector<8x32xf32>
    %116 = vector.broadcast %49 : vector<1x32xf32> to vector<8x32xf32>
    %117 = arith.addf %115, %116 : vector<8x32xf32>
    %118 = vector.extract_strided_slice %16 {offsets = [16, 0], sizes = [8, 32], strides = [1, 1]} : vector<64x32xf32> to vector<8x32xf32>
    %119 = arith.addf %118, %113 : vector<8x32xf32>
    %120 = arith.negf %119 : vector<8x32xf32>
    %121 = math.exp %120 : vector<8x32xf32>
    %cst_55 = arith.constant 1.000000e+00 : f32
    %122 = vector.broadcast %cst_55 : f32 to vector<8x32xf32>
    %123 = arith.addf %122, %121 : vector<8x32xf32>
    %124 = arith.divf %122, %123 : vector<8x32xf32>
    %125 = vector.extract_strided_slice %21 {offsets = [16, 0], sizes = [8, 32], strides = [1, 1]} : vector<64x32xf32> to vector<8x32xf32>
    %126 = arith.addf %125, %114 : vector<8x32xf32>
    %127 = arith.negf %126 : vector<8x32xf32>
    %128 = math.exp %127 : vector<8x32xf32>
    %cst_56 = arith.constant 1.000000e+00 : f32
    %129 = vector.broadcast %cst_56 : f32 to vector<8x32xf32>
    %130 = arith.addf %129, %128 : vector<8x32xf32>
    %131 = arith.divf %129, %130 : vector<8x32xf32>
    %132 = vector.extract_strided_slice %26 {offsets = [16, 0], sizes = [8, 32], strides = [1, 1]} : vector<64x32xf32> to vector<8x32xf32>
    %133 = arith.mulf %124, %117 : vector<8x32xf32>
    %134 = arith.addf %132, %133 : vector<8x32xf32>
    %135 = math.tanh %134 : vector<8x32xf32>
    %cst_57 = arith.constant 1.000000e+00 : f32
    %136 = vector.broadcast %cst_57 : f32 to vector<8x32xf32>
    %137 = arith.subf %136, %131 : vector<8x32xf32>
    %138 = arith.mulf %137, %135 : vector<8x32xf32>
    %139 = arith.mulf %131, %110 : vector<8x32xf32>
    %140 = arith.addf %138, %139 : vector<8x32xf32>
    %141 = arith.select %35, %140, %110 : vector<8x32xi1>, vector<8x32xf32>
    %cst_58 = arith.constant -1.000000e+00 : f32
    %142 = vector.broadcast %cst_58 : f32 to vector<8x32xf32>
    %143 = arith.select %35, %140, %142 : vector<8x32xi1>, vector<8x32xf32>
    %cst_59 = arith.constant dense<0.000000e+00> : vector<8x32xf32>
    %144 = tpu.matmul %141, %46, %cst_59 {dimension_numbers = #tpu.dot_dimension_numbers<[1], [0], [0], [1], [0, 0, 1, 1], [], []>} : vector<8x32xf32>, vector<32x32xf32>, vector<8x32xf32> -> vector<8x32xf32>
    %cst_60 = arith.constant dense<0.000000e+00> : vector<8x32xf32>
    %145 = tpu.matmul %141, %47, %cst_60 {dimension_numbers = #tpu.dot_dimension_numbers<[1], [0], [0], [1], [0, 0, 1, 1], [], []>} : vector<8x32xf32>, vector<32x32xf32>, vector<8x32xf32> -> vector<8x32xf32>
    %cst_61 = arith.constant dense<0.000000e+00> : vector<8x32xf32>
    %146 = tpu.matmul %141, %48, %cst_61 {dimension_numbers = #tpu.dot_dimension_numbers<[1], [0], [0], [1], [0, 0, 1, 1], [], []>} : vector<8x32xf32>, vector<32x32xf32>, vector<8x32xf32> -> vector<8x32xf32>
    %147 = vector.broadcast %49 : vector<1x32xf32> to vector<8x32xf32>
    %148 = arith.addf %146, %147 : vector<8x32xf32>
    %149 = vector.extract_strided_slice %16 {offsets = [24, 0], sizes = [8, 32], strides = [1, 1]} : vector<64x32xf32> to vector<8x32xf32>
    %150 = arith.addf %149, %144 : vector<8x32xf32>
    %151 = arith.negf %150 : vector<8x32xf32>
    %152 = math.exp %151 : vector<8x32xf32>
    %cst_62 = arith.constant 1.000000e+00 : f32
    %153 = vector.broadcast %cst_62 : f32 to vector<8x32xf32>
    %154 = arith.addf %153, %152 : vector<8x32xf32>
    %155 = arith.divf %153, %154 : vector<8x32xf32>
    %156 = vector.extract_strided_slice %21 {offsets = [24, 0], sizes = [8, 32], strides = [1, 1]} : vector<64x32xf32> to vector<8x32xf32>
    %157 = arith.addf %156, %145 : vector<8x32xf32>
    %158 = arith.negf %157 : vector<8x32xf32>
    %159 = math.exp %158 : vector<8x32xf32>
    %cst_63 = arith.constant 1.000000e+00 : f32
    %160 = vector.broadcast %cst_63 : f32 to vector<8x32xf32>
    %161 = arith.addf %160, %159 : vector<8x32xf32>
    %162 = arith.divf %160, %161 : vector<8x32xf32>
    %163 = vector.extract_strided_slice %26 {offsets = [24, 0], sizes = [8, 32], strides = [1, 1]} : vector<64x32xf32> to vector<8x32xf32>
    %164 = arith.mulf %155, %148 : vector<8x32xf32>
    %165 = arith.addf %163, %164 : vector<8x32xf32>
    %166 = math.tanh %165 : vector<8x32xf32>
    %cst_64 = arith.constant 1.000000e+00 : f32
    %167 = vector.broadcast %cst_64 : f32 to vector<8x32xf32>
    %168 = arith.subf %167, %162 : vector<8x32xf32>
    %169 = arith.mulf %168, %166 : vector<8x32xf32>
    %170 = arith.mulf %162, %141 : vector<8x32xf32>
    %171 = arith.addf %169, %170 : vector<8x32xf32>
    %172 = arith.select %37, %171, %141 : vector<8x32xi1>, vector<8x32xf32>
    %cst_65 = arith.constant -1.000000e+00 : f32
    %173 = vector.broadcast %cst_65 : f32 to vector<8x32xf32>
    %174 = arith.select %37, %171, %173 : vector<8x32xi1>, vector<8x32xf32>
    %cst_66 = arith.constant dense<0.000000e+00> : vector<8x32xf32>
    %175 = tpu.matmul %172, %46, %cst_66 {dimension_numbers = #tpu.dot_dimension_numbers<[1], [0], [0], [1], [0, 0, 1, 1], [], []>} : vector<8x32xf32>, vector<32x32xf32>, vector<8x32xf32> -> vector<8x32xf32>
    %cst_67 = arith.constant dense<0.000000e+00> : vector<8x32xf32>
    %176 = tpu.matmul %172, %47, %cst_67 {dimension_numbers = #tpu.dot_dimension_numbers<[1], [0], [0], [1], [0, 0, 1, 1], [], []>} : vector<8x32xf32>, vector<32x32xf32>, vector<8x32xf32> -> vector<8x32xf32>
    %cst_68 = arith.constant dense<0.000000e+00> : vector<8x32xf32>
    %177 = tpu.matmul %172, %48, %cst_68 {dimension_numbers = #tpu.dot_dimension_numbers<[1], [0], [0], [1], [0, 0, 1, 1], [], []>} : vector<8x32xf32>, vector<32x32xf32>, vector<8x32xf32> -> vector<8x32xf32>
    %178 = vector.broadcast %49 : vector<1x32xf32> to vector<8x32xf32>
    %179 = arith.addf %177, %178 : vector<8x32xf32>
    %180 = vector.extract_strided_slice %16 {offsets = [32, 0], sizes = [8, 32], strides = [1, 1]} : vector<64x32xf32> to vector<8x32xf32>
    %181 = arith.addf %180, %175 : vector<8x32xf32>
    %182 = arith.negf %181 : vector<8x32xf32>
    %183 = math.exp %182 : vector<8x32xf32>
    %cst_69 = arith.constant 1.000000e+00 : f32
    %184 = vector.broadcast %cst_69 : f32 to vector<8x32xf32>
    %185 = arith.addf %184, %183 : vector<8x32xf32>
    %186 = arith.divf %184, %185 : vector<8x32xf32>
    %187 = vector.extract_strided_slice %21 {offsets = [32, 0], sizes = [8, 32], strides = [1, 1]} : vector<64x32xf32> to vector<8x32xf32>
    %188 = arith.addf %187, %176 : vector<8x32xf32>
    %189 = arith.negf %188 : vector<8x32xf32>
    %190 = math.exp %189 : vector<8x32xf32>
    %cst_70 = arith.constant 1.000000e+00 : f32
    %191 = vector.broadcast %cst_70 : f32 to vector<8x32xf32>
    %192 = arith.addf %191, %190 : vector<8x32xf32>
    %193 = arith.divf %191, %192 : vector<8x32xf32>
    %194 = vector.extract_strided_slice %26 {offsets = [32, 0], sizes = [8, 32], strides = [1, 1]} : vector<64x32xf32> to vector<8x32xf32>
    %195 = arith.mulf %186, %179 : vector<8x32xf32>
    %196 = arith.addf %194, %195 : vector<8x32xf32>
    %197 = math.tanh %196 : vector<8x32xf32>
    %cst_71 = arith.constant 1.000000e+00 : f32
    %198 = vector.broadcast %cst_71 : f32 to vector<8x32xf32>
    %199 = arith.subf %198, %193 : vector<8x32xf32>
    %200 = arith.mulf %199, %197 : vector<8x32xf32>
    %201 = arith.mulf %193, %172 : vector<8x32xf32>
    %202 = arith.addf %200, %201 : vector<8x32xf32>
    %203 = arith.select %39, %202, %172 : vector<8x32xi1>, vector<8x32xf32>
    %cst_72 = arith.constant -1.000000e+00 : f32
    %204 = vector.broadcast %cst_72 : f32 to vector<8x32xf32>
    %205 = arith.select %39, %202, %204 : vector<8x32xi1>, vector<8x32xf32>
    %cst_73 = arith.constant dense<0.000000e+00> : vector<8x32xf32>
    %206 = tpu.matmul %203, %46, %cst_73 {dimension_numbers = #tpu.dot_dimension_numbers<[1], [0], [0], [1], [0, 0, 1, 1], [], []>} : vector<8x32xf32>, vector<32x32xf32>, vector<8x32xf32> -> vector<8x32xf32>
    %cst_74 = arith.constant dense<0.000000e+00> : vector<8x32xf32>
    %207 = tpu.matmul %203, %47, %cst_74 {dimension_numbers = #tpu.dot_dimension_numbers<[1], [0], [0], [1], [0, 0, 1, 1], [], []>} : vector<8x32xf32>, vector<32x32xf32>, vector<8x32xf32> -> vector<8x32xf32>
    %cst_75 = arith.constant dense<0.000000e+00> : vector<8x32xf32>
    %208 = tpu.matmul %203, %48, %cst_75 {dimension_numbers = #tpu.dot_dimension_numbers<[1], [0], [0], [1], [0, 0, 1, 1], [], []>} : vector<8x32xf32>, vector<32x32xf32>, vector<8x32xf32> -> vector<8x32xf32>
    %209 = vector.broadcast %49 : vector<1x32xf32> to vector<8x32xf32>
    %210 = arith.addf %208, %209 : vector<8x32xf32>
    %211 = vector.extract_strided_slice %16 {offsets = [40, 0], sizes = [8, 32], strides = [1, 1]} : vector<64x32xf32> to vector<8x32xf32>
    %212 = arith.addf %211, %206 : vector<8x32xf32>
    %213 = arith.negf %212 : vector<8x32xf32>
    %214 = math.exp %213 : vector<8x32xf32>
    %cst_76 = arith.constant 1.000000e+00 : f32
    %215 = vector.broadcast %cst_76 : f32 to vector<8x32xf32>
    %216 = arith.addf %215, %214 : vector<8x32xf32>
    %217 = arith.divf %215, %216 : vector<8x32xf32>
    %218 = vector.extract_strided_slice %21 {offsets = [40, 0], sizes = [8, 32], strides = [1, 1]} : vector<64x32xf32> to vector<8x32xf32>
    %219 = arith.addf %218, %207 : vector<8x32xf32>
    %220 = arith.negf %219 : vector<8x32xf32>
    %221 = math.exp %220 : vector<8x32xf32>
    %cst_77 = arith.constant 1.000000e+00 : f32
    %222 = vector.broadcast %cst_77 : f32 to vector<8x32xf32>
    %223 = arith.addf %222, %221 : vector<8x32xf32>
    %224 = arith.divf %222, %223 : vector<8x32xf32>
    %225 = vector.extract_strided_slice %26 {offsets = [40, 0], sizes = [8, 32], strides = [1, 1]} : vector<64x32xf32> to vector<8x32xf32>
    %226 = arith.mulf %217, %210 : vector<8x32xf32>
    %227 = arith.addf %225, %226 : vector<8x32xf32>
    %228 = math.tanh %227 : vector<8x32xf32>
    %cst_78 = arith.constant 1.000000e+00 : f32
    %229 = vector.broadcast %cst_78 : f32 to vector<8x32xf32>
    %230 = arith.subf %229, %224 : vector<8x32xf32>
    %231 = arith.mulf %230, %228 : vector<8x32xf32>
    %232 = arith.mulf %224, %203 : vector<8x32xf32>
    %233 = arith.addf %231, %232 : vector<8x32xf32>
    %234 = arith.select %41, %233, %203 : vector<8x32xi1>, vector<8x32xf32>
    %cst_79 = arith.constant -1.000000e+00 : f32
    %235 = vector.broadcast %cst_79 : f32 to vector<8x32xf32>
    %236 = arith.select %41, %233, %235 : vector<8x32xi1>, vector<8x32xf32>
    %cst_80 = arith.constant dense<0.000000e+00> : vector<8x32xf32>
    %237 = tpu.matmul %234, %46, %cst_80 {dimension_numbers = #tpu.dot_dimension_numbers<[1], [0], [0], [1], [0, 0, 1, 1], [], []>} : vector<8x32xf32>, vector<32x32xf32>, vector<8x32xf32> -> vector<8x32xf32>
    %cst_81 = arith.constant dense<0.000000e+00> : vector<8x32xf32>
    %238 = tpu.matmul %234, %47, %cst_81 {dimension_numbers = #tpu.dot_dimension_numbers<[1], [0], [0], [1], [0, 0, 1, 1], [], []>} : vector<8x32xf32>, vector<32x32xf32>, vector<8x32xf32> -> vector<8x32xf32>
    %cst_82 = arith.constant dense<0.000000e+00> : vector<8x32xf32>
    %239 = tpu.matmul %234, %48, %cst_82 {dimension_numbers = #tpu.dot_dimension_numbers<[1], [0], [0], [1], [0, 0, 1, 1], [], []>} : vector<8x32xf32>, vector<32x32xf32>, vector<8x32xf32> -> vector<8x32xf32>
    %240 = vector.broadcast %49 : vector<1x32xf32> to vector<8x32xf32>
    %241 = arith.addf %239, %240 : vector<8x32xf32>
    %242 = vector.extract_strided_slice %16 {offsets = [48, 0], sizes = [8, 32], strides = [1, 1]} : vector<64x32xf32> to vector<8x32xf32>
    %243 = arith.addf %242, %237 : vector<8x32xf32>
    %244 = arith.negf %243 : vector<8x32xf32>
    %245 = math.exp %244 : vector<8x32xf32>
    %cst_83 = arith.constant 1.000000e+00 : f32
    %246 = vector.broadcast %cst_83 : f32 to vector<8x32xf32>
    %247 = arith.addf %246, %245 : vector<8x32xf32>
    %248 = arith.divf %246, %247 : vector<8x32xf32>
    %249 = vector.extract_strided_slice %21 {offsets = [48, 0], sizes = [8, 32], strides = [1, 1]} : vector<64x32xf32> to vector<8x32xf32>
    %250 = arith.addf %249, %238 : vector<8x32xf32>
    %251 = arith.negf %250 : vector<8x32xf32>
    %252 = math.exp %251 : vector<8x32xf32>
    %cst_84 = arith.constant 1.000000e+00 : f32
    %253 = vector.broadcast %cst_84 : f32 to vector<8x32xf32>
    %254 = arith.addf %253, %252 : vector<8x32xf32>
    %255 = arith.divf %253, %254 : vector<8x32xf32>
    %256 = vector.extract_strided_slice %26 {offsets = [48, 0], sizes = [8, 32], strides = [1, 1]} : vector<64x32xf32> to vector<8x32xf32>
    %257 = arith.mulf %248, %241 : vector<8x32xf32>
    %258 = arith.addf %256, %257 : vector<8x32xf32>
    %259 = math.tanh %258 : vector<8x32xf32>
    %cst_85 = arith.constant 1.000000e+00 : f32
    %260 = vector.broadcast %cst_85 : f32 to vector<8x32xf32>
    %261 = arith.subf %260, %255 : vector<8x32xf32>
    %262 = arith.mulf %261, %259 : vector<8x32xf32>
    %263 = arith.mulf %255, %234 : vector<8x32xf32>
    %264 = arith.addf %262, %263 : vector<8x32xf32>
    %265 = arith.select %43, %264, %234 : vector<8x32xi1>, vector<8x32xf32>
    %cst_86 = arith.constant -1.000000e+00 : f32
    %266 = vector.broadcast %cst_86 : f32 to vector<8x32xf32>
    %267 = arith.select %43, %264, %266 : vector<8x32xi1>, vector<8x32xf32>
    %cst_87 = arith.constant dense<0.000000e+00> : vector<8x32xf32>
    %268 = tpu.matmul %265, %46, %cst_87 {dimension_numbers = #tpu.dot_dimension_numbers<[1], [0], [0], [1], [0, 0, 1, 1], [], []>} : vector<8x32xf32>, vector<32x32xf32>, vector<8x32xf32> -> vector<8x32xf32>
    %cst_88 = arith.constant dense<0.000000e+00> : vector<8x32xf32>
    %269 = tpu.matmul %265, %47, %cst_88 {dimension_numbers = #tpu.dot_dimension_numbers<[1], [0], [0], [1], [0, 0, 1, 1], [], []>} : vector<8x32xf32>, vector<32x32xf32>, vector<8x32xf32> -> vector<8x32xf32>
    %cst_89 = arith.constant dense<0.000000e+00> : vector<8x32xf32>
    %270 = tpu.matmul %265, %48, %cst_89 {dimension_numbers = #tpu.dot_dimension_numbers<[1], [0], [0], [1], [0, 0, 1, 1], [], []>} : vector<8x32xf32>, vector<32x32xf32>, vector<8x32xf32> -> vector<8x32xf32>
    %271 = vector.broadcast %49 : vector<1x32xf32> to vector<8x32xf32>
    %272 = arith.addf %270, %271 : vector<8x32xf32>
    %273 = vector.extract_strided_slice %16 {offsets = [56, 0], sizes = [8, 32], strides = [1, 1]} : vector<64x32xf32> to vector<8x32xf32>
    %274 = arith.addf %273, %268 : vector<8x32xf32>
    %275 = arith.negf %274 : vector<8x32xf32>
    %276 = math.exp %275 : vector<8x32xf32>
    %cst_90 = arith.constant 1.000000e+00 : f32
    %277 = vector.broadcast %cst_90 : f32 to vector<8x32xf32>
    %278 = arith.addf %277, %276 : vector<8x32xf32>
    %279 = arith.divf %277, %278 : vector<8x32xf32>
    %280 = vector.extract_strided_slice %21 {offsets = [56, 0], sizes = [8, 32], strides = [1, 1]} : vector<64x32xf32> to vector<8x32xf32>
    %281 = arith.addf %280, %269 : vector<8x32xf32>
    %282 = arith.negf %281 : vector<8x32xf32>
    %283 = math.exp %282 : vector<8x32xf32>
    %cst_91 = arith.constant 1.000000e+00 : f32
    %284 = vector.broadcast %cst_91 : f32 to vector<8x32xf32>
    %285 = arith.addf %284, %283 : vector<8x32xf32>
    %286 = arith.divf %284, %285 : vector<8x32xf32>
    %287 = vector.extract_strided_slice %26 {offsets = [56, 0], sizes = [8, 32], strides = [1, 1]} : vector<64x32xf32> to vector<8x32xf32>
    %288 = arith.mulf %279, %272 : vector<8x32xf32>
    %289 = arith.addf %287, %288 : vector<8x32xf32>
    %290 = math.tanh %289 : vector<8x32xf32>
    %cst_92 = arith.constant 1.000000e+00 : f32
    %291 = vector.broadcast %cst_92 : f32 to vector<8x32xf32>
    %292 = arith.subf %291, %286 : vector<8x32xf32>
    %293 = arith.mulf %292, %290 : vector<8x32xf32>
    %294 = arith.mulf %286, %265 : vector<8x32xf32>
    %295 = arith.addf %293, %294 : vector<8x32xf32>
    %cst_93 = arith.constant -1.000000e+00 : f32
    %296 = vector.broadcast %cst_93 : f32 to vector<8x32xf32>
    %297 = arith.select %45, %295, %296 : vector<8x32xi1>, vector<8x32xf32>
    %298 = tpu.concatenate %81, %112, %143, %174, %205, %236, %267, %297 in 0 : vector<8x32xf32>, vector<8x32xf32>, vector<8x32xf32>, vector<8x32xf32>, vector<8x32xf32>, vector<8x32xf32>, vector<8x32xf32>, vector<8x32xf32> -> vector<64x32xf32>
    %c0_94 = arith.constant 0 : index
    %c0_95 = arith.constant 0 : index
    %299 = vector.load %arg15[%c0_94, %c0_95] : memref<32x32xf32, #tpu.memory_space<vmem>>, vector<32x32xf32>
    %cst_96 = arith.constant dense<0.000000e+00> : vector<64x32xf32>
    %300 = tpu.matmul %298, %299, %cst_96 {dimension_numbers = #tpu.dot_dimension_numbers<[1], [0], [0], [1], [0, 0, 1, 1], [], []>} : vector<64x32xf32>, vector<32x32xf32>, vector<64x32xf32> -> vector<64x32xf32>
    %301 = tpu.concatenate %10, %10, %10, %10, %10, %10, %10, %10 in 0 : vector<8x32xf32>, vector<8x32xf32>, vector<8x32xf32>, vector<8x32xf32>, vector<8x32xf32>, vector<8x32xf32>, vector<8x32xf32>, vector<8x32xf32> -> vector<64x32xf32>
    %302 = arith.addf %300, %301 : vector<64x32xf32>
    %303 = arith.negf %302 : vector<64x32xf32>
    %304 = math.exp %303 : vector<64x32xf32>
    %cst_97 = arith.constant 1.000000e+00 : f32
    %305 = vector.broadcast %cst_97 : f32 to vector<64x32xf32>
    %306 = arith.addf %305, %304 : vector<64x32xf32>
    %307 = arith.divf %305, %306 : vector<64x32xf32>
    %c0_98 = arith.constant 0 : index
    %c0_99 = arith.constant 0 : index
    %308 = vector.load %arg18[%c0_98, %c0_99] : memref<64x32xf32, #tpu.memory_space<vmem>>, vector<64x32xf32>
    tpu.vector_store %arg18[%c0_98, %c0_99], %307 {strides = array<i32>} : memref<64x32xf32, #tpu.memory_space<vmem>>, vector<64x32xf32>,
    return
  }
}

</mosaic_0001>

<llo_original>
// kernel: tpu_custom_call.1
$region0: #{tpu_custom_call.1}
  #allocation0 [shape = 'u32[]', space=smem, size = 0x4, offset = 0x4, fixed_abs, tag = 'smem constant byte address 0x4 - core index']
  #allocation1 [shape = 'u32[144,128]{1,0:T(1,128)}', space=vmem, size = 0x12000, scoped, tag = 'internal scratch']
  %s0 = inlined_call_operand.vmem [shape: f32[64,6], index: 0, kind: input, shape index: {}]
  %s1 = inlined_call_operand.vmem [shape: s32[8,1], index: 1, kind: input, shape index: {}]
  %s2 = inlined_call_operand.hbm [shape: f32[8,8], index: 2, kind: input, shape index: {}]
  %s3 = inlined_call_operand.hbm [shape: f32[6,32], index: 3, kind: input, shape index: {}]
  %s4 = inlined_call_operand.hbm [shape: f32[6,32], index: 4, kind: input, shape index: {}]
  %s5 = inlined_call_operand.hbm [shape: f32[6,32], index: 5, kind: input, shape index: {}]
  %s6 = inlined_call_operand.vmem [shape: f32[32,32], index: 6, kind: input, shape index: {}]
  %s7 = inlined_call_operand.vmem [shape: f32[32,32], index: 7, kind: input, shape index: {}]
  %s8 = inlined_call_operand.hbm [shape: f32[32,32], index: 8, kind: input, shape index: {}]
  %s9 = inlined_call_operand.hbm [shape: f32[1,32], index: 9, kind: input, shape index: {}]
  %s10 = inlined_call_operand.hbm [shape: f32[1,32], index: 10, kind: input, shape index: {}]
  %s11 = inlined_call_operand.hbm [shape: f32[1,32], index: 11, kind: input, shape index: {}]
  %s12 = inlined_call_operand.hbm [shape: f32[1,32], index: 12, kind: input, shape index: {}]
  %s13 = inlined_call_operand.vmem [shape: f32[8,32], index: 13, kind: input, shape index: {}]
  %s14 = inlined_call_operand.vmem [shape: f32[1,32], index: 14, kind: input, shape index: {}]
  %s15 = inlined_call_operand.vmem [shape: f32[32,32], index: 15, kind: input, shape index: {}]
  %s16 = inlined_call_operand.hbm [shape: f32[32,32], index: 16, kind: input, shape index: {}]
  %s17 = inlined_call_operand.vmem [shape: f32[1,32], index: 17, kind: input, shape index: {}]
  %s18 = inlined_call_operand.vmem [shape: f32[64,32], index: 18, kind: output, shape index: {}]
  %s19 = sld [smem:[#allocation0]]
  $region122: #{tpu_custom_call.1} parent=0
    _
  %s21 = ssub.s32 1, %s19
  %s22 = scalar_select 0, %s21, %s19
  $region1: #{tpu_custom_call.1} parent=0
    #allocation2 [shape = 'u8[4096]{0}', space=vmem, size = 0x1000, scoped, tag = 'input window, operand 2, single buffered']
    #allocation3 [shape = 's32[1]{0}', space=sflag, size = 0x4, scoped, tag = 'scoped memory for tpu_custom_call.1']
    #allocation4 [shape = 'u8[4096]{0}', space=vmem, size = 0x1000, scoped, tag = 'input window, operand 3, single buffered']
    #allocation5 [shape = 's32[1]{0}', space=sflag, size = 0x4, scoped, tag = 'scoped memory for tpu_custom_call.1']
    #allocation6 [shape = 'u8[4096]{0}', space=vmem, size = 0x1000, scoped, tag = 'input window, operand 4, single buffered']
    #allocation7 [shape = 'u8[4096]{0}', space=vmem, size = 0x1000, scoped, tag = 'input window, operand 5, single buffered']
    #allocation8 [shape = 's32[1]{0}', space=sflag, size = 0x4, scoped, tag = 'scoped memory for tpu_custom_call.1']
    #allocation9 [shape = 'u8[16384]{0}', space=vmem, size = 0x4000, scoped, tag = 'input window, operand 8, single buffered']
    #allocation10 [shape = 'u8[512]{0}', space=vmem, size = 0x400, scoped, tag = 'input window, operand 9, single buffered']
    #allocation11 [shape = 's32[1]{0}', space=sflag, size = 0x4, scoped, tag = 'scoped memory for tpu_custom_call.1']
    #allocation12 [shape = 'u8[512]{0}', space=vmem, size = 0x400, scoped, tag = 'input window, operand 10, single buffered']
    #allocation13 [shape = 'u8[512]{0}', space=vmem, size = 0x400, scoped, tag = 'input window, operand 11, single buffered']
    #allocation14 [shape = 's32[1]{0}', space=sflag, size = 0x4, scoped, tag = 'scoped memory for tpu_custom_call.1']
    #allocation15 [shape = 'u8[512]{0}', space=vmem, size = 0x400, scoped, tag = 'input window, operand 12, single buffered']
    #allocation16 [shape = 'u8[16384]{0}', space=vmem, size = 0x4000, scoped, tag = 'input window, operand 16, single buffered']
    #allocation17 [shape = 's32[1]{0}', space=sflag, size = 0x4, scoped, tag = 'scoped memory for tpu_custom_call.1']
    %23 = vsyncpa [#allocation3], 0
    %24 = vsyncpa [#allocation5], 0
    %25 = vsyncpa [#allocation8], 0
    %26 = vsyncpa [#allocation11], 0
    %27 = vsyncpa [#allocation14], 0
    %28 = vsyncpa [#allocation17], 0
    // Predicated region
    $region2: #{tpu_custom_call.1} parent=1 // pred_check
      _
    $region3: #{tpu_custom_call.1} parent=1 // pred_check_branch
      %30 = sbr.rel (0) target = $region5
    $region4: #{tpu_custom_call.1} parent=1 // pred_region
      _
    $region5: #{tpu_custom_call.1} parent=1 // pred_fallthru
      _
    // Predicated region
    $region6: #{tpu_custom_call.1} parent=1 // pred_check
      _
    $region7: #{tpu_custom_call.1} parent=1 // pred_check_branch
      %32 = sbr.rel (0) target = $region9
    $region8: #{tpu_custom_call.1} parent=1 // pred_region
      _
    $region9: #{tpu_custom_call.1} parent=1 // pred_fallthru
      _
    // Predicated region
    $region10: #{tpu_custom_call.1} parent=1 // pred_check
      _
    $region11: #{tpu_custom_call.1} parent=1 // pred_check_branch
      %34 = sbr.rel (0) target = $region13
    $region12: #{tpu_custom_call.1} parent=1 // pred_region
      %s36 = ssub.s32 128, 128
      %37 = vsyncadd [#allocation3], %s36
      %s39 = sshll.u32 [#allocation2], 4
      %s40 = int_to_ptr.vmem [resolvable:$true] %s39
      %42 = dma.hbm_to_vmem [thread:$0]  %s2, 128, %s40, [#allocation3]
    $region13: #{tpu_custom_call.1} parent=1 // pred_fallthru
      _
    // Predicated region
    $region14: #{tpu_custom_call.1} parent=1 // pred_check
      _
    $region15: #{tpu_custom_call.1} parent=1 // pred_check_branch
      %44 = sbr.rel (0) target = $region17
    $region16: #{tpu_custom_call.1} parent=1 // pred_region
      %s46 = ssub.s32 128, 128
      %47 = vsyncadd [#allocation5], %s46
      %s49 = sshll.u32 [#allocation4], 4
      %s50 = int_to_ptr.vmem [resolvable:$true] %s49
      %52 = dma.hbm_to_vmem [thread:$0]  %s3, 128, %s50, [#allocation5]
    $region17: #{tpu_custom_call.1} parent=1 // pred_fallthru
      _
    // Predicated region
    $region18: #{tpu_custom_call.1} parent=1 // pred_check
      _
    $region19: #{tpu_custom_call.1} parent=1 // pred_check_branch
      %54 = sbr.rel (0) target = $region21
    $region20: #{tpu_custom_call.1} parent=1 // pred_region
      %s56 = ssub.s32 128, 128
      %57 = vsyncadd [#allocation5], %s56
      %s59 = sshll.u32 [#allocation6], 4
      %s60 = int_to_ptr.vmem [resolvable:$true] %s59
      %62 = dma.hbm_to_vmem [thread:$0]  %s4, 128, %s60, [#allocation5]
    $region21: #{tpu_custom_call.1} parent=1 // pred_fallthru
      _
    // Predicated region
    $region22: #{tpu_custom_call.1} parent=1 // pred_check
      _
    $region23: #{tpu_custom_call.1} parent=1 // pred_check_branch
      %64 = sbr.rel (0) target = $region25
    $region24: #{tpu_custom_call.1} parent=1 // pred_region
      %s66 = ssub.s32 128, 128
      %67 = vsyncadd [#allocation8], %s66
      %s69 = sshll.u32 [#allocation7], 4
      %s70 = int_to_ptr.vmem [resolvable:$true] %s69
      %72 = dma.hbm_to_vmem [thread:$0]  %s5, 128, %s70, [#allocation8]
    $region25: #{tpu_custom_call.1} parent=1 // pred_fallthru
      _
    // Predicated region
    $region26: #{tpu_custom_call.1} parent=1 // pred_check
      _
    $region27: #{tpu_custom_call.1} parent=1 // pred_check_branch
      %74 = sbr.rel (0) target = $region29
    $region28: #{tpu_custom_call.1} parent=1 // pred_region
      _
    $region29: #{tpu_custom_call.1} parent=1 // pred_fallthru
      _
    // Predicated region
    $region30: #{tpu_custom_call.1} parent=1 // pred_check
      _
    $region31: #{tpu_custom_call.1} parent=1 // pred_check_branch
      %76 = sbr.rel (0) target = $region33
    $region32: #{tpu_custom_call.1} parent=1 // pred_region
      _
    $region33: #{tpu_custom_call.1} parent=1 // pred_fallthru
      _
    // Predicated region
    $region34: #{tpu_custom_call.1} parent=1 // pred_check
      _
    $region35: #{tpu_custom_call.1} parent=1 // pred_check_branch
      %78 = sbr.rel (0) target = $region37
    $region36: #{tpu_custom_call.1} parent=1 // pred_region
      %s80 = ssub.s32 512, 512
      %81 = vsyncadd [#allocation8], %s80
      %s82 = sshll.u32 [#allocation9], 4
      %s83 = int_to_ptr.vmem [resolvable:$true] %s82
      %88 = dma.hbm_to_vmem [thread:$0]  %s8, 512, %s83, [#allocation8], 128, 128, 8
    $region37: #{tpu_custom_call.1} parent=1 // pred_fallthru
      _
    // Predicated region
    $region38: #{tpu_custom_call.1} parent=1 // pred_check
      _
    $region39: #{tpu_custom_call.1} parent=1 // pred_check_branch
      %90 = sbr.rel (0) target = $region41
    $region40: #{tpu_custom_call.1} parent=1 // pred_region
      %s92 = ssub.s32 16, 16
      %93 = vsyncadd [#allocation11], %s92
      %s95 = sshll.u32 [#allocation10], 4
      %s96 = int_to_ptr.vmem [resolvable:$true] %s95
      %98 = dma.hbm_to_vmem [thread:$0]  %s9, 16, %s96, [#allocation11]
    $region41: #{tpu_custom_call.1} parent=1 // pred_fallthru
      _
    // Predicated region
    $region42: #{tpu_custom_call.1} parent=1 // pred_check
      _
    $region43: #{tpu_custom_call.1} parent=1 // pred_check_branch
      %100 = sbr.rel (0) target = $region45
    $region44: #{tpu_custom_call.1} parent=1 // pred_region
      %s102 = ssub.s32 16, 16
      %103 = vsyncadd [#allocation11], %s102
      %s105 = sshll.u32 [#allocation12], 4
      %s106 = int_to_ptr.vmem [resolvable:$true] %s105
      %108 = dma.hbm_to_vmem [thread:$0]  %s10, 16, %s106, [#allocation11]
    $region45: #{tpu_custom_call.1} parent=1 // pred_fallthru
      _
    // Predicated region
    $region46: #{tpu_custom_call.1} parent=1 // pred_check
      _
    $region47: #{tpu_custom_call.1} parent=1 // pred_check_branch
      %110 = sbr.rel (0) target = $region49
    $region48: #{tpu_custom_call.1} parent=1 // pred_region
      %s112 = ssub.s32 16, 16
      %113 = vsyncadd [#allocation14], %s112
      %s115 = sshll.u32 [#allocation13], 4
      %s116 = int_to_ptr.vmem [resolvable:$true] %s115
      %118 = dma.hbm_to_vmem [thread:$0]  %s11, 16, %s116, [#allocation14]
    $region49: #{tpu_custom_call.1} parent=1 // pred_fallthru
      _
    // Predicated region
    $region50: #{tpu_custom_call.1} parent=1 // pred_check
      _
    $region51: #{tpu_custom_call.1} parent=1 // pred_check_branch
      %120 = sbr.rel (0) target = $region53
    $region52: #{tpu_custom_call.1} parent=1 // pred_region
      %s122 = ssub.s32 16, 16
      %123 = vsyncadd [#allocation14], %s122
      %s125 = sshll.u32 [#allocation15], 4
      %s126 = int_to_ptr.vmem [resolvable:$true] %s125
      %128 = dma.hbm_to_vmem [thread:$0]  %s12, 16, %s126, [#allocation14]
    $region53: #{tpu_custom_call.1} parent=1 // pred_fallthru
      _
    // Predicated region
    $region54: #{tpu_custom_call.1} parent=1 // pred_check
      _
    $region55: #{tpu_custom_call.1} parent=1 // pred_check_branch
      %130 = sbr.rel (0) target = $region57
    $region56: #{tpu_custom_call.1} parent=1 // pred_region
      _
    $region57: #{tpu_custom_call.1} parent=1 // pred_fallthru
      _
    // Predicated region
    $region58: #{tpu_custom_call.1} parent=1 // pred_check
      _
    $region59: #{tpu_custom_call.1} parent=1 // pred_check_branch
      %132 = sbr.rel (0) target = $region61
    $region60: #{tpu_custom_call.1} parent=1 // pred_region
      _
    $region61: #{tpu_custom_call.1} parent=1 // pred_fallthru
      _
    // Predicated region
    $region62: #{tpu_custom_call.1} parent=1 // pred_check
      _
    $region63: #{tpu_custom_call.1} parent=1 // pred_check_branch
      %134 = sbr.rel (0) target = $region65
    $region64: #{tpu_custom_call.1} parent=1 // pred_region
      _
    $region65: #{tpu_custom_call.1} parent=1 // pred_fallthru
      _
    // Predicated region
    $region66: #{tpu_custom_call.1} parent=1 // pred_check
      _
    $region67: #{tpu_custom_call.1} parent=1 // pred_check_branch
      %136 = sbr.rel (0) target = $region69
    $region68: #{tpu_custom_call.1} parent=1 // pred_region
      %s138 = ssub.s32 512, 512
      %139 = vsyncadd [#allocation17], %s138
      %s140 = sshll.u32 [#allocation16], 4
      %s141 = int_to_ptr.vmem [resolvable:$true] %s140
      %146 = dma.hbm_to_vmem [thread:$0]  %s16, 512, %s141, [#allocation17], 128, 128, 8
    $region69: #{tpu_custom_call.1} parent=1 // pred_fallthru
      _
    // Predicated region
    $region70: #{tpu_custom_call.1} parent=1 // pred_check
      _
    $region71: #{tpu_custom_call.1} parent=1 // pred_check_branch
      %148 = sbr.rel (0) target = $region73
    $region72: #{tpu_custom_call.1} parent=1 // pred_region
      _
    $region73: #{tpu_custom_call.1} parent=1 // pred_fallthru
      _
    // Predicated region
    $region74: #{tpu_custom_call.1} parent=1 // pred_check
      _
    $region75: #{tpu_custom_call.1} parent=1 // pred_check_branch
      %150 = sbr.rel (0) target = $region77
    $region76: #{tpu_custom_call.1} parent=1 // pred_region
      %151 = dma.done [#allocation3], 128
    $region77: #{tpu_custom_call.1} parent=1 // pred_fallthru
      _
    // Predicated region
    $region78: #{tpu_custom_call.1} parent=1 // pred_check
      _
    $region79: #{tpu_custom_call.1} parent=1 // pred_check_branch
      %153 = sbr.rel (0) target = $region81
    $region80: #{tpu_custom_call.1} parent=1 // pred_region
      %154 = dma.done [#allocation5], 128
    $region81: #{tpu_custom_call.1} parent=1 // pred_fallthru
      _
    // Predicated region
    $region82: #{tpu_custom_call.1} parent=1 // pred_check
      _
    $region83: #{tpu_custom_call.1} parent=1 // pred_check_branch
      %156 = sbr.rel (0) target = $region85
    $region84: #{tpu_custom_call.1} parent=1 // pred_region
      %157 = dma.done [#allocation5], 128
    $region85: #{tpu_custom_call.1} parent=1 // pred_fallthru
      _
    // Predicated region
    $region86: #{tpu_custom_call.1} parent=1 // pred_check
      _
    $region87: #{tpu_custom_call.1} parent=1 // pred_check_branch
      %159 = sbr.rel (0) target = $region89
    $region88: #{tpu_custom_call.1} parent=1 // pred_region
      %160 = dma.done [#allocation8], 128
    $region89: #{tpu_custom_call.1} parent=1 // pred_fallthru
      _
    // Predicated region
    $region90: #{tpu_custom_call.1} parent=1 // pred_check
      _
    $region91: #{tpu_custom_call.1} parent=1 // pred_check_branch
      %162 = sbr.rel (0) target = $region93
    $region92: #{tpu_custom_call.1} parent=1 // pred_region
      %163 = dma.done [#allocation8], 512
    $region93: #{tpu_custom_call.1} parent=1 // pred_fallthru
      _
    // Predicated region
    $region94: #{tpu_custom_call.1} parent=1 // pred_check
      _
    $region95: #{tpu_custom_call.1} parent=1 // pred_check_branch
      %165 = sbr.rel (0) target = $region97
    $region96: #{tpu_custom_call.1} parent=1 // pred_region
      %166 = dma.done [#allocation11], 16
    $region97: #{tpu_custom_call.1} parent=1 // pred_fallthru
      _
    // Predicated region
    $region98: #{tpu_custom_call.1} parent=1 // pred_check
      _
    $region99: #{tpu_custom_call.1} parent=1 // pred_check_branch
      %168 = sbr.rel (0) target = $region101
    $region100: #{tpu_custom_call.1} parent=1 // pred_region
      %169 = dma.done [#allocation11], 16
    $region101: #{tpu_custom_call.1} parent=1 // pred_fallthru
      _
    // Predicated region
    $region102: #{tpu_custom_call.1} parent=1 // pred_check
      _
    $region103: #{tpu_custom_call.1} parent=1 // pred_check_branch
      %171 = sbr.rel (0) target = $region105
    $region104: #{tpu_custom_call.1} parent=1 // pred_region
      %172 = dma.done [#allocation14], 16
    $region105: #{tpu_custom_call.1} parent=1 // pred_fallthru
      _
    // Predicated region
    $region106: #{tpu_custom_call.1} parent=1 // pred_check
      _
    $region107: #{tpu_custom_call.1} parent=1 // pred_check_branch
      %174 = sbr.rel (0) target = $region109
    $region108: #{tpu_custom_call.1} parent=1 // pred_region
      %175 = dma.done [#allocation14], 16
    $region109: #{tpu_custom_call.1} parent=1 // pred_fallthru
      _
    // Predicated region
    $region110: #{tpu_custom_call.1} parent=1 // pred_check
      _
    $region111: #{tpu_custom_call.1} parent=1 // pred_check_branch
      %177 = sbr.rel (0) target = $region113
    $region112: #{tpu_custom_call.1} parent=1 // pred_region
      %178 = dma.done [#allocation17], 512
    $region113: #{tpu_custom_call.1} parent=1 // pred_fallthru
      _
    %v179 = vld [vmem:[#allocation2] sm:$0xff]
    %v180 = vld [vmem:[%s13] sm:$0xff]
    %v181 = vld [vmem:[%s14] sm:$0x1]
    %v183 = vlaneseq
    %v184 = vshrl.u32 %v183, 7
    %v185 = vsub.s32 0, %v184
    %v186 = vrot.slane %v181, %v185
    %vm188 = vcmask 64512
    %v190 = vsel %vm188, %v179, 0
    %192 = vmatprep.subr.mxu0 0.0
    %193 = vmatpush1.msra.mxu0 0.0
    %194 = vmatprep.subr.mxu0 0.0
    %195 = vmatpush1.msra.mxu0 0.0
    %196 = vmatprep.subr.mxu0 0.0
    %197 = vmatpush1.msra.mxu0 0.0
    %198 = vmatprep.subr.mxu0 0.0
    %199 = vmatpush1.msra.mxu0 0.0
    %200 = vmatprep.subr.mxu0 0.0
    %201 = vmatpush1.msra.mxu0 0.0
    %202 = vmatprep.subr.mxu0 0.0
    %203 = vmatpush1.msra.mxu0 0.0
    %204 = vmatprep.subr.mxu0 0.0
    %205 = vmatpush1.msra.mxu0 0.0
    %206 = vmatprep.subr.mxu0 0.0
    %207 = vmatpush1.msra.mxu0 0.0
    %208 = vmatprep.subr.mxu0 0.0
    %209 = vmatpush1.msra.mxu0 0.0
    %210 = vmatprep.subr.mxu0 0.0
    %211 = vmatpush1.msra.mxu0 0.0
    %212 = vmatprep.subr.mxu0 0.0
    %213 = vmatpush1.msra.mxu0 0.0
    %214 = vmatprep.subr.mxu0 0.0
    %215 = vmatpush1.msra.mxu0 0.0
    %216 = vmatprep.subr.mxu0 0.0
    %217 = vmatpush1.msra.mxu0 0.0
    %218 = vmatprep.subr.mxu0 0.0
    %219 = vmatpush1.msra.mxu0 0.0
    %220 = vmatprep.subr.mxu0 0.0
    %221 = vmatpush1.msra.mxu0 0.0
    %222 = vmatprep.subr.mxu0 0.0
    %223 = vmatpush1.msra.mxu0 %v180
    %224 = vmatprep.subr.mxu0 0.0
    %225 = vmatpush2.msra.mxu0 0.0
    %226 = vmatprep.subr.mxu0 0.0
    %227 = vmatpush2.msra.mxu0 0.0
    %228 = vmatprep.subr.mxu0 0.0
    %229 = vmatpush2.msra.mxu0 0.0
    %230 = vmatprep.subr.mxu0 0.0
    %231 = vmatpush2.msra.mxu0 0.0
    %232 = vmatprep.subr.mxu0 0.0
    %233 = vmatpush2.msra.mxu0 0.0
    %234 = vmatprep.subr.mxu0 0.0
    %235 = vmatpush2.msra.mxu0 0.0
    %236 = vmatprep.subr.mxu0 0.0
    %237 = vmatpush2.msra.mxu0 0.0
    %238 = vmatprep.subr.mxu0 0.0
    %239 = vmatpush2.msra.mxu0 0.0
    %240 = vmatprep.subr.mxu0 0.0
    %241 = vmatpush2.msra.mxu0 0.0
    %242 = vmatprep.subr.mxu0 0.0
    %243 = vmatpush2.msra.mxu0 0.0
    %244 = vmatprep.subr.mxu0 0.0
    %245 = vmatpush2.msra.mxu0 0.0
    %246 = vmatprep.subr.mxu0 0.0
    %247 = vmatpush2.msra.mxu0 0.0
    %248 = vmatprep.subr.mxu0 0.0
    %249 = vmatpush2.msra.mxu0 0.0
    %250 = vmatprep.subr.mxu0 0.0
    %251 = vmatpush2.msra.mxu0 0.0
    %252 = vmatprep.subr.mxu0 0.0
    %253 = vmatpush2.msra.mxu0 0.0
    %254 = vmatprep.subr.mxu0 0.0
    %255 = vmatpush2.msra.mxu0 0.0
    %256 = vmatprep.mubr.f32.mxu0 0.0
    %257 = vmatmul.mubr.f32.gmra.mxu0 %v190
    %v258 = vpop.f32.mrf.mxu0
    %v259 = vadd.f32 %v186, %v258
    %v260 = vpop.f32.mrf.mxu0
    %261 = vdwg.mxu0
    %v262 = vld [vmem:[#allocation16] sm:$0xff]
    %v263 = vld [vmem:[#allocation16 + $0x8] sm:$0xff]
    %v264 = vld [vmem:[#allocation16 + $0x10] sm:$0xff]
    %v265 = vld [vmem:[#allocation16 + $0x18] sm:$0xff]
    %v266 = vld [vmem:[%s17] sm:$0x1]
    %v268 = vlaneseq
    %v269 = vshrl.u32 %v268, 7
    %v270 = vsub.s32 0, %v269
    %v271 = vrot.slane %v266, %v270
    %vm273 = vcmask 261120
    %v275 = vsel %vm273, %v259, 0
    %277 = vmatprep.subr.mxu0 0.0
    %278 = vmatpush1.msra.mxu0 0.0
    %279 = vmatprep.subr.mxu0 0.0
    %280 = vmatpush1.msra.mxu0 0.0
    %281 = vmatprep.subr.mxu0 0.0
    %282 = vmatpush1.msra.mxu0 0.0
    %283 = vmatprep.subr.mxu0 0.0
    %284 = vmatpush1.msra.mxu0 0.0
    %285 = vmatprep.subr.mxu0 0.0
    %286 = vmatpush1.msra.mxu0 0.0
    %287 = vmatprep.subr.mxu0 0.0
    %288 = vmatpush1.msra.mxu0 0.0
    %289 = vmatprep.subr.mxu0 0.0
    %290 = vmatpush1.msra.mxu0 0.0
    %291 = vmatprep.subr.mxu0 0.0
    %292 = vmatpush1.msra.mxu0 0.0
    %293 = vmatprep.subr.mxu0 0.0
    %294 = vmatpush1.msra.mxu0 0.0
    %295 = vmatprep.subr.mxu0 0.0
    %296 = vmatpush1.msra.mxu0 0.0
    %297 = vmatprep.subr.mxu0 0.0
    %298 = vmatpush1.msra.mxu0 0.0
    %299 = vmatprep.subr.mxu0 0.0
    %300 = vmatpush1.msra.mxu0 0.0
    %301 = vmatprep.subr.mxu0 0.0
    %302 = vmatpush1.msra.mxu0 %v265
    %303 = vmatprep.subr.mxu0 0.0
    %304 = vmatpush1.msra.mxu0 %v264
    %305 = vmatprep.subr.mxu0 0.0
    %306 = vmatpush1.msra.mxu0 %v263
    %307 = vmatprep.subr.mxu0 0.0
    %308 = vmatpush1.msra.mxu0 %v262
    %309 = vmatprep.subr.mxu0 0.0
    %310 = vmatpush2.msra.mxu0 0.0
    %311 = vmatprep.subr.mxu0 0.0
    %312 = vmatpush2.msra.mxu0 0.0
    %313 = vmatprep.subr.mxu0 0.0
    %314 = vmatpush2.msra.mxu0 0.0
    %315 = vmatprep.subr.mxu0 0.0
    %316 = vmatpush2.msra.mxu0 0.0
    %317 = vmatprep.subr.mxu0 0.0
    %318 = vmatpush2.msra.mxu0 0.0
    %319 = vmatprep.subr.mxu0 0.0
    %320 = vmatpush2.msra.mxu0 0.0
    %321 = vmatprep.subr.mxu0 0.0
    %322 = vmatpush2.msra.mxu0 0.0
    %323 = vmatprep.subr.mxu0 0.0
    %324 = vmatpush2.msra.mxu0 0.0
    %325 = vmatprep.subr.mxu0 0.0
    %326 = vmatpush2.msra.mxu0 0.0
    %327 = vmatprep.subr.mxu0 0.0
    %328 = vmatpush2.msra.mxu0 0.0
    %329 = vmatprep.subr.mxu0 0.0
    %330 = vmatpush2.msra.mxu0 0.0
    %331 = vmatprep.subr.mxu0 0.0
    %332 = vmatpush2.msra.mxu0 0.0
    %333 = vmatprep.subr.mxu0 0.0
    %334 = vmatpush2.msra.mxu0 0.0
    %335 = vmatprep.subr.mxu0 0.0
    %336 = vmatpush2.msra.mxu0 0.0
    %337 = vmatprep.subr.mxu0 0.0
    %338 = vmatpush2.msra.mxu0 0.0
    %339 = vmatprep.subr.mxu0 0.0
    %340 = vmatpush2.msra.mxu0 0.0
    %341 = vmatprep.mubr.f32.mxu0 0.0
    %342 = vmatmul.mubr.f32.gmra.mxu0 %v275
    %v343 = vpop.f32.mrf.mxu0
    %v344 = vadd.f32 %v271, %v343
    %v345 = vpop.f32.mrf.mxu0
    %346 = vdwg.mxu0
    %v347 = vld [vmem:[%s0] sm:$0xff]
    %v348 = vld [vmem:[%s0 + $0x8] sm:$0xff]
    %v349 = vld [vmem:[%s0 + $0x10] sm:$0xff]
    %v350 = vld [vmem:[%s0 + $0x18] sm:$0xff]
    %v351 = vld [vmem:[%s0 + $0x20] sm:$0xff]
    %v352 = vld [vmem:[%s0 + $0x28] sm:$0xff]
    %v353 = vld [vmem:[%s0 + $0x30] sm:$0xff]
    %v354 = vld [vmem:[%s0 + $0x38] sm:$0xff]
    %v355 = vld [vmem:[#allocation4] sm:$0x3f]
    %v356 = vld [vmem:[#allocation10] sm:$0x1]
    %v358 = vlaneseq
    %v359 = vshrl.u32 %v358, 7
    %v360 = vsub.s32 0, %v359
    %v361 = vrot.slane %v356, %v360
    %vm363 = vcmask 48128
    %v365 = vsel %vm363, %v347, 0
    %v368 = vsel %vm363, %v348, 0
    %v371 = vsel %vm363, %v349, 0
    %v374 = vsel %vm363, %v350, 0
    %v377 = vsel %vm363, %v351, 0
    %v380 = vsel %vm363, %v352, 0
    %v383 = vsel %vm363, %v353, 0
    %v386 = vsel %vm363, %v354, 0
    %vm388 = vcmask 1045504
    %v390 = vsel %vm388, %v355, 0
    %392 = vmatprep.subr.mxu0 0.0
    %393 = vmatpush1.msra.mxu0 0.0
    %394 = vmatprep.subr.mxu0 0.0
    %395 = vmatpush1.msra.mxu0 0.0
    %396 = vmatprep.subr.mxu0 0.0
    %397 = vmatpush1.msra.mxu0 0.0
    %398 = vmatprep.subr.mxu0 0.0
    %399 = vmatpush1.msra.mxu0 0.0
    %400 = vmatprep.subr.mxu0 0.0
    %401 = vmatpush1.msra.mxu0 0.0
    %402 = vmatprep.subr.mxu0 0.0
    %403 = vmatpush1.msra.mxu0 0.0
    %404 = vmatprep.subr.mxu0 0.0
    %405 = vmatpush1.msra.mxu0 0.0
    %406 = vmatprep.subr.mxu0 0.0
    %407 = vmatpush1.msra.mxu0 0.0
    %408 = vmatprep.subr.mxu0 0.0
    %409 = vmatpush1.msra.mxu0 0.0
    %410 = vmatprep.subr.mxu0 0.0
    %411 = vmatpush1.msra.mxu0 0.0
    %412 = vmatprep.subr.mxu0 0.0
    %413 = vmatpush1.msra.mxu0 0.0
    %414 = vmatprep.subr.mxu0 0.0
    %415 = vmatpush1.msra.mxu0 0.0
    %416 = vmatprep.subr.mxu0 0.0
    %417 = vmatpush1.msra.mxu0 0.0
    %418 = vmatprep.subr.mxu0 0.0
    %419 = vmatpush1.msra.mxu0 0.0
    %420 = vmatprep.subr.mxu0 0.0
    %421 = vmatpush1.msra.mxu0 0.0
    %422 = vmatprep.subr.mxu0 0.0
    %423 = vmatpush1.msra.mxu0 %v390
    %424 = vmatprep.subr.mxu0 0.0
    %425 = vmatpush2.msra.mxu0 0.0
    %426 = vmatprep.subr.mxu0 0.0
    %427 = vmatpush2.msra.mxu0 0.0
    %428 = vmatprep.subr.mxu0 0.0
    %429 = vmatpush2.msra.mxu0 0.0
    %430 = vmatprep.subr.mxu0 0.0
    %431 = vmatpush2.msra.mxu0 0.0
    %432 = vmatprep.subr.mxu0 0.0
    %433 = vmatpush2.msra.mxu0 0.0
    %434 = vmatprep.subr.mxu0 0.0
    %435 = vmatpush2.msra.mxu0 0.0
    %436 = vmatprep.subr.mxu0 0.0
    %437 = vmatpush2.msra.mxu0 0.0
    %438 = vmatprep.subr.mxu0 0.0
    %439 = vmatpush2.msra.mxu0 0.0
    %440 = vmatprep.subr.mxu0 0.0
    %441 = vmatpush2.msra.mxu0 0.0
    %442 = vmatprep.subr.mxu0 0.0
    %443 = vmatpush2.msra.mxu0 0.0
    %444 = vmatprep.subr.mxu0 0.0
    %445 = vmatpush2.msra.mxu0 0.0
    %446 = vmatprep.subr.mxu0 0.0
    %447 = vmatpush2.msra.mxu0 0.0
    %448 = vmatprep.subr.mxu0 0.0
    %449 = vmatpush2.msra.mxu0 0.0
    %450 = vmatprep.subr.mxu0 0.0
    %451 = vmatpush2.msra.mxu0 0.0
    %452 = vmatprep.subr.mxu0 0.0
    %453 = vmatpush2.msra.mxu0 0.0
    %454 = vmatprep.subr.mxu0 0.0
    %455 = vmatpush2.msra.mxu0 0.0
    %456 = vmatprep.mubr.f32.mxu0 0.0
    %457 = vmatmul.mubr.f32.gmra.mxu0 %v365
    %v458 = vpop.f32.mrf.mxu0
    %v459 = vadd.f32 %v361, %v458
    %v460 = vpop.f32.mrf.mxu0
    %461 = vmatprep.mubr.f32.mxu0 0.0
    %462 = vmatmul.mubr.f32.gmra.mxu0 %v368
    %v463 = vpop.f32.mrf.mxu0
    %v464 = vadd.f32 %v361, %v463
    %v465 = vpop.f32.mrf.mxu0
    %466 = vmatprep.mubr.f32.mxu0 0.0
    %467 = vmatmul.mubr.f32.gmra.mxu0 %v371
    %v468 = vpop.f32.mrf.mxu0
    %v469 = vadd.f32 %v361, %v468
    %v470 = vpop.f32.mrf.mxu0
    %471 = vmatprep.mubr.f32.mxu0 0.0
    %472 = vmatmul.mubr.f32.gmra.mxu0 %v374
    %v473 = vpop.f32.mrf.mxu0
    %v474 = vadd.f32 %v361, %v473
    %v475 = vpop.f32.mrf.mxu0
    %476 = vmatprep.mubr.f32.mxu0 0.0
    %477 = vmatmul.mubr.f32.gmra.mxu0 %v377
    %v478 = vpop.f32.mrf.mxu0
    %v479 = vadd.f32 %v361, %v478
    %v480 = vpop.f32.mrf.mxu0
    %481 = vmatprep.mubr.f32.mxu0 0.0
    %482 = vmatmul.mubr.f32.gmra.mxu0 %v380
    %v483 = vpop.f32.mrf.mxu0
    %v484 = vadd.f32 %v361, %v483
    %v485 = vpop.f32.mrf.mxu0
    %486 = vmatprep.mubr.f32.mxu0 0.0
    %487 = vmatmul.mubr.f32.gmra.mxu0 %v383
    %v488 = vpop.f32.mrf.mxu0
    %v489 = vadd.f32 %v361, %v488
    %v490 = vpop.f32.mrf.mxu0
    %491 = vmatprep.mubr.f32.mxu0 0.0
    %492 = vmatmul.mubr.f32.gmra.mxu0 %v386
    %v493 = vpop.f32.mrf.mxu0
    %v494 = vadd.f32 %v361, %v493
    %v495 = vpop.f32.mrf.mxu0
    %496 = vdwg.mxu0
    %v497 = vld [vmem:[#allocation6] sm:$0x3f]
    %v498 = vld [vmem:[#allocation12] sm:$0x1]
    %v500 = vlaneseq
    %v501 = vshrl.u32 %v500, 7
    %v502 = vsub.s32 0, %v501
    %v503 = vrot.slane %v498, %v502
    %v506 = vsel %vm388, %v497, 0
    %508 = vmatprep.subr.mxu0 0.0
    %509 = vmatpush1.msra.mxu0 0.0
    %510 = vmatprep.subr.mxu0 0.0
    %511 = vmatpush1.msra.mxu0 0.0
    %512 = vmatprep.subr.mxu0 0.0
    %513 = vmatpush1.msra.mxu0 0.0
    %514 = vmatprep.subr.mxu0 0.0
    %515 = vmatpush1.msra.mxu0 0.0
    %516 = vmatprep.subr.mxu0 0.0
    %517 = vmatpush1.msra.mxu0 0.0
    %518 = vmatprep.subr.mxu0 0.0
    %519 = vmatpush1.msra.mxu0 0.0
    %520 = vmatprep.subr.mxu0 0.0
    %521 = vmatpush1.msra.mxu0 0.0
    %522 = vmatprep.subr.mxu0 0.0
    %523 = vmatpush1.msra.mxu0 0.0
    %524 = vmatprep.subr.mxu0 0.0
    %525 = vmatpush1.msra.mxu0 0.0
    %526 = vmatprep.subr.mxu0 0.0
    %527 = vmatpush1.msra.mxu0 0.0
    %528 = vmatprep.subr.mxu0 0.0
    %529 = vmatpush1.msra.mxu0 0.0
    %530 = vmatprep.subr.mxu0 0.0
    %531 = vmatpush1.msra.mxu0 0.0
    %532 = vmatprep.subr.mxu0 0.0
    %533 = vmatpush1.msra.mxu0 0.0
    %534 = vmatprep.subr.mxu0 0.0
    %535 = vmatpush1.msra.mxu0 0.0
    %536 = vmatprep.subr.mxu0 0.0
    %537 = vmatpush1.msra.mxu0 0.0
    %538 = vmatprep.subr.mxu0 0.0
    %539 = vmatpush1.msra.mxu0 %v506
    %540 = vmatprep.subr.mxu0 0.0
    %541 = vmatpush2.msra.mxu0 0.0
    %542 = vmatprep.subr.mxu0 0.0
    %543 = vmatpush2.msra.mxu0 0.0
    %544 = vmatprep.subr.mxu0 0.0
    %545 = vmatpush2.msra.mxu0 0.0
    %546 = vmatprep.subr.mxu0 0.0
    %547 = vmatpush2.msra.mxu0 0.0
    %548 = vmatprep.subr.mxu0 0.0
    %549 = vmatpush2.msra.mxu0 0.0
    %550 = vmatprep.subr.mxu0 0.0
    %551 = vmatpush2.msra.mxu0 0.0
    %552 = vmatprep.subr.mxu0 0.0
    %553 = vmatpush2.msra.mxu0 0.0
    %554 = vmatprep.subr.mxu0 0.0
    %555 = vmatpush2.msra.mxu0 0.0
    %556 = vmatprep.subr.mxu0 0.0
    %557 = vmatpush2.msra.mxu0 0.0
    %558 = vmatprep.subr.mxu0 0.0
    %559 = vmatpush2.msra.mxu0 0.0
    %560 = vmatprep.subr.mxu0 0.0
    %561 = vmatpush2.msra.mxu0 0.0
    %562 = vmatprep.subr.mxu0 0.0
    %563 = vmatpush2.msra.mxu0 0.0
    %564 = vmatprep.subr.mxu0 0.0
    %565 = vmatpush2.msra.mxu0 0.0
    %566 = vmatprep.subr.mxu0 0.0
    %567 = vmatpush2.msra.mxu0 0.0
    %568 = vmatprep.subr.mxu0 0.0
    %569 = vmatpush2.msra.mxu0 0.0
    %570 = vmatprep.subr.mxu0 0.0
    %571 = vmatpush2.msra.mxu0 0.0
    %572 = vmatprep.mubr.f32.mxu0 0.0
    %573 = vmatmul.mubr.f32.gmra.mxu0 %v365
    %v574 = vpop.f32.mrf.mxu0
    %v575 = vadd.f32 %v503, %v574
    %v576 = vpop.f32.mrf.mxu0
    %577 = vmatprep.mubr.f32.mxu0 0.0
    %578 = vmatmul.mubr.f32.gmra.mxu0 %v368
    %v579 = vpop.f32.mrf.mxu0
    %v580 = vadd.f32 %v503, %v579
    %v581 = vpop.f32.mrf.mxu0
    %582 = vmatprep.mubr.f32.mxu0 0.0
    %583 = vmatmul.mubr.f32.gmra.mxu0 %v371
    %v584 = vpop.f32.mrf.mxu0
    %v585 = vadd.f32 %v503, %v584
    %v586 = vpop.f32.mrf.mxu0
    %587 = vmatprep.mubr.f32.mxu0 0.0
    %588 = vmatmul.mubr.f32.gmra.mxu0 %v374
    %v589 = vpop.f32.mrf.mxu0
    %v590 = vadd.f32 %v503, %v589
    %v591 = vpop.f32.mrf.mxu0
    %592 = vmatprep.mubr.f32.mxu0 0.0
    %593 = vmatmul.mubr.f32.gmra.mxu0 %v377
    %v594 = vpop.f32.mrf.mxu0
    %v595 = vadd.f32 %v503, %v594
    %v596 = vpop.f32.mrf.mxu0
    %597 = vmatprep.mubr.f32.mxu0 0.0
    %598 = vmatmul.mubr.f32.gmra.mxu0 %v380
    %v599 = vpop.f32.mrf.mxu0
    %v600 = vadd.f32 %v503, %v599
    %v601 = vpop.f32.mrf.mxu0
    %602 = vmatprep.mubr.f32.mxu0 0.0
    %603 = vmatmul.mubr.f32.gmra.mxu0 %v383
    %v604 = vpop.f32.mrf.mxu0
    %v605 = vadd.f32 %v503, %v604
    %v606 = vpop.f32.mrf.mxu0
    %607 = vmatprep.mubr.f32.mxu0 0.0
    %608 = vmatmul.mubr.f32.gmra.mxu0 %v386
    %v609 = vpop.f32.mrf.mxu0
    %v610 = vadd.f32 %v503, %v609
    %v611 = vpop.f32.mrf.mxu0
    %612 = vdwg.mxu0
    %v613 = vld [vmem:[#allocation7] sm:$0x3f]
    %v614 = vld [vmem:[#allocation13] sm:$0x1]
    %v616 = vlaneseq
    %v617 = vshrl.u32 %v616, 7
    %v618 = vsub.s32 0, %v617
    %v619 = vrot.slane %v614, %v618
    %v622 = vsel %vm388, %v613, 0
    %624 = vmatprep.subr.mxu0 0.0
    %625 = vmatpush1.msra.mxu0 0.0
    %626 = vmatprep.subr.mxu0 0.0
    %627 = vmatpush1.msra.mxu0 0.0
    %628 = vmatprep.subr.mxu0 0.0
    %629 = vmatpush1.msra.mxu0 0.0
    %630 = vmatprep.subr.mxu0 0.0
    %631 = vmatpush1.msra.mxu0 0.0
    %632 = vmatprep.subr.mxu0 0.0
    %633 = vmatpush1.msra.mxu0 0.0
    %634 = vmatprep.subr.mxu0 0.0
    %635 = vmatpush1.msra.mxu0 0.0
    %636 = vmatprep.subr.mxu0 0.0
    %637 = vmatpush1.msra.mxu0 0.0
    %638 = vmatprep.subr.mxu0 0.0
    %639 = vmatpush1.msra.mxu0 0.0
    %640 = vmatprep.subr.mxu0 0.0
    %641 = vmatpush1.msra.mxu0 0.0
    %642 = vmatprep.subr.mxu0 0.0
    %643 = vmatpush1.msra.mxu0 0.0
    %644 = vmatprep.subr.mxu0 0.0
    %645 = vmatpush1.msra.mxu0 0.0
    %646 = vmatprep.subr.mxu0 0.0
    %647 = vmatpush1.msra.mxu0 0.0
    %648 = vmatprep.subr.mxu0 0.0
    %649 = vmatpush1.msra.mxu0 0.0
    %650 = vmatprep.subr.mxu0 0.0
    %651 = vmatpush1.msra.mxu0 0.0
    %652 = vmatprep.subr.mxu0 0.0
    %653 = vmatpush1.msra.mxu0 0.0
    %654 = vmatprep.subr.mxu0 0.0
    %655 = vmatpush1.msra.mxu0 %v622
    %656 = vmatprep.subr.mxu0 0.0
    %657 = vmatpush2.msra.mxu0 0.0
    %658 = vmatprep.subr.mxu0 0.0
    %659 = vmatpush2.msra.mxu0 0.0
    %660 = vmatprep.subr.mxu0 0.0
    %661 = vmatpush2.msra.mxu0 0.0
    %662 = vmatprep.subr.mxu0 0.0
    %663 = vmatpush2.msra.mxu0 0.0
    %664 = vmatprep.subr.mxu0 0.0
    %665 = vmatpush2.msra.mxu0 0.0
    %666 = vmatprep.subr.mxu0 0.0
    %667 = vmatpush2.msra.mxu0 0.0
    %668 = vmatprep.subr.mxu0 0.0
    %669 = vmatpush2.msra.mxu0 0.0
    %670 = vmatprep.subr.mxu0 0.0
    %671 = vmatpush2.msra.mxu0 0.0
    %672 = vmatprep.subr.mxu0 0.0
    %673 = vmatpush2.msra.mxu0 0.0
    %674 = vmatprep.subr.mxu0 0.0
    %675 = vmatpush2.msra.mxu0 0.0
    %676 = vmatprep.subr.mxu0 0.0
    %677 = vmatpush2.msra.mxu0 0.0
    %678 = vmatprep.subr.mxu0 0.0
    %679 = vmatpush2.msra.mxu0 0.0
    %680 = vmatprep.subr.mxu0 0.0
    %681 = vmatpush2.msra.mxu0 0.0
    %682 = vmatprep.subr.mxu0 0.0
    %683 = vmatpush2.msra.mxu0 0.0
    %684 = vmatprep.subr.mxu0 0.0
    %685 = vmatpush2.msra.mxu0 0.0
    %686 = vmatprep.subr.mxu0 0.0
    %687 = vmatpush2.msra.mxu0 0.0
    %688 = vmatprep.mubr.f32.mxu0 0.0
    %689 = vmatmul.mubr.f32.gmra.mxu0 %v365
    %v690 = vpop.f32.mrf.mxu0
    %v691 = vadd.f32 %v619, %v690
    %v692 = vpop.f32.mrf.mxu0
    %693 = vmatprep.mubr.f32.mxu0 0.0
    %694 = vmatmul.mubr.f32.gmra.mxu0 %v368
    %v695 = vpop.f32.mrf.mxu0
    %v696 = vadd.f32 %v619, %v695
    %v697 = vpop.f32.mrf.mxu0
    %698 = vmatprep.mubr.f32.mxu0 0.0
    %699 = vmatmul.mubr.f32.gmra.mxu0 %v371
    %v700 = vpop.f32.mrf.mxu0
    %v701 = vadd.f32 %v619, %v700
    %v702 = vpop.f32.mrf.mxu0
    %703 = vmatprep.mubr.f32.mxu0 0.0
    %704 = vmatmul.mubr.f32.gmra.mxu0 %v374
    %v705 = vpop.f32.mrf.mxu0
    %v706 = vadd.f32 %v619, %v705
    %v707 = vpop.f32.mrf.mxu0
    %708 = vmatprep.mubr.f32.mxu0 0.0
    %709 = vmatmul.mubr.f32.gmra.mxu0 %v377
    %v710 = vpop.f32.mrf.mxu0
    %v711 = vadd.f32 %v619, %v710
    %v712 = vpop.f32.mrf.mxu0
    %713 = vmatprep.mubr.f32.mxu0 0.0
    %714 = vmatmul.mubr.f32.gmra.mxu0 %v380
    %v715 = vpop.f32.mrf.mxu0
    %v716 = vadd.f32 %v619, %v715
    %v717 = vpop.f32.mrf.mxu0
    %718 = vmatprep.mubr.f32.mxu0 0.0
    %719 = vmatmul.mubr.f32.gmra.mxu0 %v383
    %v720 = vpop.f32.mrf.mxu0
    %v721 = vadd.f32 %v619, %v720
    %v722 = vpop.f32.mrf.mxu0
    %723 = vmatprep.mubr.f32.mxu0 0.0
    %724 = vmatmul.mubr.f32.gmra.mxu0 %v386
    %v725 = vpop.f32.mrf.mxu0
    %v726 = vadd.f32 %v619, %v725
    %v727 = vpop.f32.mrf.mxu0
    %728 = vdwg.mxu0
    %v729 = vld [vmem:[%s1] sm:$0xff]
    %730 = vset.pattern.permute.xlu0 0
    %731 = vperm.xlu0 %730, %v729
    %v732 = vpop.permute.xlu0 %731
    %vm733 = vcmp.gt.s32.totalorder %v732, 0
    %vm734 = vcmp.gt.s32.totalorder %v732, 1
    %vm735 = vcmp.gt.s32.totalorder %v732, 2
    %vm736 = vcmp.gt.s32.totalorder %v732, 3
    %vm737 = vcmp.gt.s32.totalorder %v732, 4
    %vm738 = vcmp.gt.s32.totalorder %v732, 5
    %vm739 = vcmp.gt.s32.totalorder %v732, 6
    %vm740 = vcmp.gt.s32.totalorder %v732, 7
    %v741 = vld [vmem:[%s6] sm:$0xff]
    %v742 = vld [vmem:[%s6 + $0x8] sm:$0xff]
    %v743 = vld [vmem:[%s6 + $0x10] sm:$0xff]
    %v744 = vld [vmem:[%s6 + $0x18] sm:$0xff]
    %v745 = vld [vmem:[%s7] sm:$0xff]
    %v746 = vld [vmem:[%s7 + $0x8] sm:$0xff]
    %v747 = vld [vmem:[%s7 + $0x10] sm:$0xff]
    %v748 = vld [vmem:[%s7 + $0x18] sm:$0xff]
    %v749 = vld [vmem:[#allocation9] sm:$0xff]
    %v750 = vld [vmem:[#allocation9 + $0x8] sm:$0xff]
    %v751 = vld [vmem:[#allocation9 + $0x10] sm:$0xff]
    %v752 = vld [vmem:[#allocation9 + $0x18] sm:$0xff]
    %v753 = vld [vmem:[#allocation15] sm:$0x1]
    %v755 = vsel %vm273, 0.0, 0
    %757 = vmatprep.subr.mxu0 0.0
    %758 = vmatpush1.msra.mxu0 0.0
    %759 = vmatprep.subr.mxu0 0.0
    %760 = vmatpush1.msra.mxu0 0.0
    %761 = vmatprep.subr.mxu0 0.0
    %762 = vmatpush1.msra.mxu0 0.0
    %763 = vmatprep.subr.mxu0 0.0
    %764 = vmatpush1.msra.mxu0 0.0
    %765 = vmatprep.subr.mxu0 0.0
    %766 = vmatpush1.msra.mxu0 0.0
    %767 = vmatprep.subr.mxu0 0.0
    %768 = vmatpush1.msra.mxu0 0.0
    %769 = vmatprep.subr.mxu0 0.0
    %770 = vmatpush1.msra.mxu0 0.0
    %771 = vmatprep.subr.mxu0 0.0
    %772 = vmatpush1.msra.mxu0 0.0
    %773 = vmatprep.subr.mxu0 0.0
    %774 = vmatpush1.msra.mxu0 0.0
    %775 = vmatprep.subr.mxu0 0.0
    %776 = vmatpush1.msra.mxu0 0.0
    %777 = vmatprep.subr.mxu0 0.0
    %778 = vmatpush1.msra.mxu0 0.0
    %779 = vmatprep.subr.mxu0 0.0
    %780 = vmatpush1.msra.mxu0 0.0
    %781 = vmatprep.subr.mxu0 0.0
    %782 = vmatpush1.msra.mxu0 %v744
    %783 = vmatprep.subr.mxu0 0.0
    %784 = vmatpush1.msra.mxu0 %v743
    %785 = vmatprep.subr.mxu0 0.0
    %786 = vmatpush1.msra.mxu0 %v742
    %787 = vmatprep.subr.mxu0 0.0
    %788 = vmatpush1.msra.mxu0 %v741
    %789 = vmatprep.subr.mxu0 0.0
    %790 = vmatpush2.msra.mxu0 0.0
    %791 = vmatprep.subr.mxu0 0.0
    %792 = vmatpush2.msra.mxu0 0.0
    %793 = vmatprep.subr.mxu0 0.0
    %794 = vmatpush2.msra.mxu0 0.0
    %795 = vmatprep.subr.mxu0 0.0
    %796 = vmatpush2.msra.mxu0 0.0
    %797 = vmatprep.subr.mxu0 0.0
    %798 = vmatpush2.msra.mxu0 0.0
    %799 = vmatprep.subr.mxu0 0.0
    %800 = vmatpush2.msra.mxu0 0.0
    %801 = vmatprep.subr.mxu0 0.0
    %802 = vmatpush2.msra.mxu0 0.0
    %803 = vmatprep.subr.mxu0 0.0
    %804 = vmatpush2.msra.mxu0 0.0
    %805 = vmatprep.subr.mxu0 0.0
    %806 = vmatpush2.msra.mxu0 0.0
    %807 = vmatprep.subr.mxu0 0.0
    %808 = vmatpush2.msra.mxu0 0.0
    %809 = vmatprep.subr.mxu0 0.0
    %810 = vmatpush2.msra.mxu0 0.0
    %811 = vmatprep.subr.mxu0 0.0
    %812 = vmatpush2.msra.mxu0 0.0
    %813 = vmatprep.subr.mxu0 0.0
    %814 = vmatpush2.msra.mxu0 0.0
    %815 = vmatprep.subr.mxu0 0.0
    %816 = vmatpush2.msra.mxu0 0.0
    %817 = vmatprep.subr.mxu0 0.0
    %818 = vmatpush2.msra.mxu0 0.0
    %819 = vmatprep.subr.mxu0 0.0
    %820 = vmatpush2.msra.mxu0 0.0
    %821 = vmatprep.mubr.f32.mxu0 0.0
    %822 = vmatmul.mubr.f32.gmra.mxu0 %v755
    %v823 = vpop.f32.mrf.mxu0
    %v824 = vadd.f32 0.0, %v823
    %v825 = vpop.f32.mrf.mxu0
    %826 = vdwg.mxu0
    %827 = vmatprep.subr.mxu0 0.0
    %828 = vmatpush1.msra.mxu0 0.0
    %829 = vmatprep.subr.mxu0 0.0
    %830 = vmatpush1.msra.mxu0 0.0
    %831 = vmatprep.subr.mxu0 0.0
    %832 = vmatpush1.msra.mxu0 0.0
    %833 = vmatprep.subr.mxu0 0.0
    %834 = vmatpush1.msra.mxu0 0.0
    %835 = vmatprep.subr.mxu0 0.0
    %836 = vmatpush1.msra.mxu0 0.0
    %837 = vmatprep.subr.mxu0 0.0
    %838 = vmatpush1.msra.mxu0 0.0
    %839 = vmatprep.subr.mxu0 0.0
    %840 = vmatpush1.msra.mxu0 0.0
    %841 = vmatprep.subr.mxu0 0.0
    %842 = vmatpush1.msra.mxu0 0.0
    %843 = vmatprep.subr.mxu0 0.0
    %844 = vmatpush1.msra.mxu0 0.0
    %845 = vmatprep.subr.mxu0 0.0
    %846 = vmatpush1.msra.mxu0 0.0
    %847 = vmatprep.subr.mxu0 0.0
    %848 = vmatpush1.msra.mxu0 0.0
    %849 = vmatprep.subr.mxu0 0.0
    %850 = vmatpush1.msra.mxu0 0.0
    %851 = vmatprep.subr.mxu0 0.0
    %852 = vmatpush1.msra.mxu0 %v748
    %853 = vmatprep.subr.mxu0 0.0
    %854 = vmatpush1.msra.mxu0 %v747
    %855 = vmatprep.subr.mxu0 0.0
    %856 = vmatpush1.msra.mxu0 %v746
    %857 = vmatprep.subr.mxu0 0.0
    %858 = vmatpush1.msra.mxu0 %v745
    %859 = vmatprep.subr.mxu0 0.0
    %860 = vmatpush2.msra.mxu0 0.0
    %861 = vmatprep.subr.mxu0 0.0
    %862 = vmatpush2.msra.mxu0 0.0
    %863 = vmatprep.subr.mxu0 0.0
    %864 = vmatpush2.msra.mxu0 0.0
    %865 = vmatprep.subr.mxu0 0.0
    %866 = vmatpush2.msra.mxu0 0.0
    %867 = vmatprep.subr.mxu0 0.0
    %868 = vmatpush2.msra.mxu0 0.0
    %869 = vmatprep.subr.mxu0 0.0
    %870 = vmatpush2.msra.mxu0 0.0
    %871 = vmatprep.subr.mxu0 0.0
    %872 = vmatpush2.msra.mxu0 0.0
    %873 = vmatprep.subr.mxu0 0.0
    %874 = vmatpush2.msra.mxu0 0.0
    %875 = vmatprep.subr.mxu0 0.0
    %876 = vmatpush2.msra.mxu0 0.0
    %877 = vmatprep.subr.mxu0 0.0
    %878 = vmatpush2.msra.mxu0 0.0
    %879 = vmatprep.subr.mxu0 0.0
    %880 = vmatpush2.msra.mxu0 0.0
    %881 = vmatprep.subr.mxu0 0.0
    %882 = vmatpush2.msra.mxu0 0.0
    %883 = vmatprep.subr.mxu0 0.0
    %884 = vmatpush2.msra.mxu0 0.0
    %885 = vmatprep.subr.mxu0 0.0
    %886 = vmatpush2.msra.mxu0 0.0
    %887 = vmatprep.subr.mxu0 0.0
    %888 = vmatpush2.msra.mxu0 0.0
    %889 = vmatprep.subr.mxu0 0.0
    %890 = vmatpush2.msra.mxu0 0.0
    %891 = vmatprep.mubr.f32.mxu0 0.0
    %892 = vmatmul.mubr.f32.gmra.mxu0 %v755
    %v893 = vpop.f32.mrf.mxu0
    %v894 = vadd.f32 0.0, %v893
    %v895 = vpop.f32.mrf.mxu0
    %896 = vdwg.mxu0
    %v898 = vlaneseq
    %v899 = vshrl.u32 %v898, 7
    %v900 = vsub.s32 0, %v899
    %v901 = vrot.slane %v753, %v900
    %903 = vmatprep.subr.mxu0 0.0
    %904 = vmatpush1.msra.mxu0 0.0
    %905 = vmatprep.subr.mxu0 0.0
    %906 = vmatpush1.msra.mxu0 0.0
    %907 = vmatprep.subr.mxu0 0.0
    %908 = vmatpush1.msra.mxu0 0.0
    %909 = vmatprep.subr.mxu0 0.0
    %910 = vmatpush1.msra.mxu0 0.0
    %911 = vmatprep.subr.mxu0 0.0
    %912 = vmatpush1.msra.mxu0 0.0
    %913 = vmatprep.subr.mxu0 0.0
    %914 = vmatpush1.msra.mxu0 0.0
    %915 = vmatprep.subr.mxu0 0.0
    %916 = vmatpush1.msra.mxu0 0.0
    %917 = vmatprep.subr.mxu0 0.0
    %918 = vmatpush1.msra.mxu0 0.0
    %919 = vmatprep.subr.mxu0 0.0
    %920 = vmatpush1.msra.mxu0 0.0
    %921 = vmatprep.subr.mxu0 0.0
    %922 = vmatpush1.msra.mxu0 0.0
    %923 = vmatprep.subr.mxu0 0.0
    %924 = vmatpush1.msra.mxu0 0.0
    %925 = vmatprep.subr.mxu0 0.0
    %926 = vmatpush1.msra.mxu0 0.0
    %927 = vmatprep.subr.mxu0 0.0
    %928 = vmatpush1.msra.mxu0 %v752
    %929 = vmatprep.subr.mxu0 0.0
    %930 = vmatpush1.msra.mxu0 %v751
    %931 = vmatprep.subr.mxu0 0.0
    %932 = vmatpush1.msra.mxu0 %v750
    %933 = vmatprep.subr.mxu0 0.0
    %934 = vmatpush1.msra.mxu0 %v749
    %935 = vmatprep.subr.mxu0 0.0
    %936 = vmatpush2.msra.mxu0 0.0
    %937 = vmatprep.subr.mxu0 0.0
    %938 = vmatpush2.msra.mxu0 0.0
    %939 = vmatprep.subr.mxu0 0.0
    %940 = vmatpush2.msra.mxu0 0.0
    %941 = vmatprep.subr.mxu0 0.0
    %942 = vmatpush2.msra.mxu0 0.0
    %943 = vmatprep.subr.mxu0 0.0
    %944 = vmatpush2.msra.mxu0 0.0
    %945 = vmatprep.subr.mxu0 0.0
    %946 = vmatpush2.msra.mxu0 0.0
    %947 = vmatprep.subr.mxu0 0.0
    %948 = vmatpush2.msra.mxu0 0.0
    %949 = vmatprep.subr.mxu0 0.0
    %950 = vmatpush2.msra.mxu0 0.0
    %951 = vmatprep.subr.mxu0 0.0
    %952 = vmatpush2.msra.mxu0 0.0
    %953 = vmatprep.subr.mxu0 0.0
    %954 = vmatpush2.msra.mxu0 0.0
    %955 = vmatprep.subr.mxu0 0.0
    %956 = vmatpush2.msra.mxu0 0.0
    %957 = vmatprep.subr.mxu0 0.0
    %958 = vmatpush2.msra.mxu0 0.0
    %959 = vmatprep.subr.mxu0 0.0
    %960 = vmatpush2.msra.mxu0 0.0
    %961 = vmatprep.subr.mxu0 0.0
    %962 = vmatpush2.msra.mxu0 0.0
    %963 = vmatprep.subr.mxu0 0.0
    %964 = vmatpush2.msra.mxu0 0.0
    %965 = vmatprep.subr.mxu0 0.0
    %966 = vmatpush2.msra.mxu0 0.0
    %967 = vmatprep.mubr.f32.mxu0 0.0
    %968 = vmatmul.mubr.f32.gmra.mxu0 %v755
    %v969 = vpop.f32.mrf.mxu0
    %v970 = vadd.f32 %v901, %v969
    %v971 = vpop.f32.mrf.mxu0
    %972 = vdwg.mxu0
    %v973 = vadd.f32 %v459, %v824
    %v974 = vxor.u32 %v973, 2147483648
    %v975 = vmul.f32 %v974, 1.442695
    %v976 = vpow.pop %v975
    %v977 = vadd.f32 %v976, 1.0
    %v978 = vrcp.pop %v977
    %v979 = vmul.f32 1.0, %v978
    %v980 = vadd.f32 %v575, %v894
    %v981 = vxor.u32 %v980, 2147483648
    %v982 = vmul.f32 %v981, 1.442695
    %v983 = vpow.pop %v982
    %v984 = vadd.f32 %v983, 1.0
    %v985 = vrcp.pop %v984
    %v986 = vmul.f32 1.0, %v985
    %v987 = vmul.f32 %v979, %v970
    %v988 = vadd.f32 %v691, %v987
    %v989 = vtanh.pop %v988
    %v990 = vsub.f32 1.0, %v986
    %v991 = vmul.f32 %v990, %v989
    %v992 = vmul.f32 %v986, 0.0
    %v993 = vadd.f32 %v991, %v992
    %v994 = vsel %vm733, %v993, 0.0
    %v995 = vsel %vm733, %v993, -1.0
    %v997 = vsel %vm273, %v994, 0
    %999 = vmatprep.subr.mxu0 0.0
    %1000 = vmatpush1.msra.mxu0 0.0
    %1001 = vmatprep.subr.mxu0 0.0
    %1002 = vmatpush1.msra.mxu0 0.0
    %1003 = vmatprep.subr.mxu0 0.0
    %1004 = vmatpush1.msra.mxu0 0.0
    %1005 = vmatprep.subr.mxu0 0.0
    %1006 = vmatpush1.msra.mxu0 0.0
    %1007 = vmatprep.subr.mxu0 0.0
    %1008 = vmatpush1.msra.mxu0 0.0
    %1009 = vmatprep.subr.mxu0 0.0
    %1010 = vmatpush1.msra.mxu0 0.0
    %1011 = vmatprep.subr.mxu0 0.0
    %1012 = vmatpush1.msra.mxu0 0.0
    %1013 = vmatprep.subr.mxu0 0.0
    %1014 = vmatpush1.msra.mxu0 0.0
    %1015 = vmatprep.subr.mxu0 0.0
    %1016 = vmatpush1.msra.mxu0 0.0
    %1017 = vmatprep.subr.mxu0 0.0
    %1018 = vmatpush1.msra.mxu0 0.0
    %1019 = vmatprep.subr.mxu0 0.0
    %1020 = vmatpush1.msra.mxu0 0.0
    %1021 = vmatprep.subr.mxu0 0.0
    %1022 = vmatpush1.msra.mxu0 0.0
    %1023 = vmatprep.subr.mxu0 0.0
    %1024 = vmatpush1.msra.mxu0 %v744
    %1025 = vmatprep.subr.mxu0 0.0
    %1026 = vmatpush1.msra.mxu0 %v743
    %1027 = vmatprep.subr.mxu0 0.0
    %1028 = vmatpush1.msra.mxu0 %v742
    %1029 = vmatprep.subr.mxu0 0.0
    %1030 = vmatpush1.msra.mxu0 %v741
    %1031 = vmatprep.subr.mxu0 0.0
    %1032 = vmatpush2.msra.mxu0 0.0
    %1033 = vmatprep.subr.mxu0 0.0
    %1034 = vmatpush2.msra.mxu0 0.0
    %1035 = vmatprep.subr.mxu0 0.0
    %1036 = vmatpush2.msra.mxu0 0.0
    %1037 = vmatprep.subr.mxu0 0.0
    %1038 = vmatpush2.msra.mxu0 0.0
    %1039 = vmatprep.subr.mxu0 0.0
    %1040 = vmatpush2.msra.mxu0 0.0
    %1041 = vmatprep.subr.mxu0 0.0
    %1042 = vmatpush2.msra.mxu0 0.0
    %1043 = vmatprep.subr.mxu0 0.0
    %1044 = vmatpush2.msra.mxu0 0.0
    %1045 = vmatprep.subr.mxu0 0.0
    %1046 = vmatpush2.msra.mxu0 0.0
    %1047 = vmatprep.subr.mxu0 0.0
    %1048 = vmatpush2.msra.mxu0 0.0
    %1049 = vmatprep.subr.mxu0 0.0
    %1050 = vmatpush2.msra.mxu0 0.0
    %1051 = vmatprep.subr.mxu0 0.0
    %1052 = vmatpush2.msra.mxu0 0.0
    %1053 = vmatprep.subr.mxu0 0.0
    %1054 = vmatpush2.msra.mxu0 0.0
    %1055 = vmatprep.subr.mxu0 0.0
    %1056 = vmatpush2.msra.mxu0 0.0
    %1057 = vmatprep.subr.mxu0 0.0
    %1058 = vmatpush2.msra.mxu0 0.0
    %1059 = vmatprep.subr.mxu0 0.0
    %1060 = vmatpush2.msra.mxu0 0.0
    %1061 = vmatprep.subr.mxu0 0.0
    %1062 = vmatpush2.msra.mxu0 0.0
    %1063 = vmatprep.mubr.f32.mxu0 0.0
    %1064 = vmatmul.mubr.f32.gmra.mxu0 %v997
    %v1065 = vpop.f32.mrf.mxu0
    %v1066 = vadd.f32 0.0, %v1065
    %v1067 = vpop.f32.mrf.mxu0
    %1068 = vdwg.mxu0
    %1069 = vmatprep.subr.mxu0 0.0
    %1070 = vmatpush1.msra.mxu0 0.0
    %1071 = vmatprep.subr.mxu0 0.0
    %1072 = vmatpush1.msra.mxu0 0.0
    %1073 = vmatprep.subr.mxu0 0.0
    %1074 = vmatpush1.msra.mxu0 0.0
    %1075 = vmatprep.subr.mxu0 0.0
    %1076 = vmatpush1.msra.mxu0 0.0
    %1077 = vmatprep.subr.mxu0 0.0
    %1078 = vmatpush1.msra.mxu0 0.0
    %1079 = vmatprep.subr.mxu0 0.0
    %1080 = vmatpush1.msra.mxu0 0.0
    %1081 = vmatprep.subr.mxu0 0.0
    %1082 = vmatpush1.msra.mxu0 0.0
    %1083 = vmatprep.subr.mxu0 0.0
    %1084 = vmatpush1.msra.mxu0 0.0
    %1085 = vmatprep.subr.mxu0 0.0
    %1086 = vmatpush1.msra.mxu0 0.0
    %1087 = vmatprep.subr.mxu0 0.0
    %1088 = vmatpush1.msra.mxu0 0.0
    %1089 = vmatprep.subr.mxu0 0.0
    %1090 = vmatpush1.msra.mxu0 0.0
    %1091 = vmatprep.subr.mxu0 0.0
    %1092 = vmatpush1.msra.mxu0 0.0
    %1093 = vmatprep.subr.mxu0 0.0
    %1094 = vmatpush1.msra.mxu0 %v748
    %1095 = vmatprep.subr.mxu0 0.0
    %1096 = vmatpush1.msra.mxu0 %v747
    %1097 = vmatprep.subr.mxu0 0.0
    %1098 = vmatpush1.msra.mxu0 %v746
    %1099 = vmatprep.subr.mxu0 0.0
    %1100 = vmatpush1.msra.mxu0 %v745
    %1101 = vmatprep.subr.mxu0 0.0
    %1102 = vmatpush2.msra.mxu0 0.0
    %1103 = vmatprep.subr.mxu0 0.0
    %1104 = vmatpush2.msra.mxu0 0.0
    %1105 = vmatprep.subr.mxu0 0.0
    %1106 = vmatpush2.msra.mxu0 0.0
    %1107 = vmatprep.subr.mxu0 0.0
    %1108 = vmatpush2.msra.mxu0 0.0
    %1109 = vmatprep.subr.mxu0 0.0
    %1110 = vmatpush2.msra.mxu0 0.0
    %1111 = vmatprep.subr.mxu0 0.0
    %1112 = vmatpush2.msra.mxu0 0.0
    %1113 = vmatprep.subr.mxu0 0.0
    %1114 = vmatpush2.msra.mxu0 0.0
    %1115 = vmatprep.subr.mxu0 0.0
    %1116 = vmatpush2.msra.mxu0 0.0
    %1117 = vmatprep.subr.mxu0 0.0
    %1118 = vmatpush2.msra.mxu0 0.0
    %1119 = vmatprep.subr.mxu0 0.0
    %1120 = vmatpush2.msra.mxu0 0.0
    %1121 = vmatprep.subr.mxu0 0.0
    %1122 = vmatpush2.msra.mxu0 0.0
    %1123 = vmatprep.subr.mxu0 0.0
    %1124 = vmatpush2.msra.mxu0 0.0
    %1125 = vmatprep.subr.mxu0 0.0
    %1126 = vmatpush2.msra.mxu0 0.0
    %1127 = vmatprep.subr.mxu0 0.0
    %1128 = vmatpush2.msra.mxu0 0.0
    %1129 = vmatprep.subr.mxu0 0.0
    %1130 = vmatpush2.msra.mxu0 0.0
    %1131 = vmatprep.subr.mxu0 0.0
    %1132 = vmatpush2.msra.mxu0 0.0
    %1133 = vmatprep.mubr.f32.mxu0 0.0
    %1134 = vmatmul.mubr.f32.gmra.mxu0 %v997
    %v1135 = vpop.f32.mrf.mxu0
    %v1136 = vadd.f32 0.0, %v1135
    %v1137 = vpop.f32.mrf.mxu0
    %1138 = vdwg.mxu0
    %1139 = vmatprep.subr.mxu0 0.0
    %1140 = vmatpush1.msra.mxu0 0.0
    %1141 = vmatprep.subr.mxu0 0.0
    %1142 = vmatpush1.msra.mxu0 0.0
    %1143 = vmatprep.subr.mxu0 0.0
    %1144 = vmatpush1.msra.mxu0 0.0
    %1145 = vmatprep.subr.mxu0 0.0
    %1146 = vmatpush1.msra.mxu0 0.0
    %1147 = vmatprep.subr.mxu0 0.0
    %1148 = vmatpush1.msra.mxu0 0.0
    %1149 = vmatprep.subr.mxu0 0.0
    %1150 = vmatpush1.msra.mxu0 0.0
    %1151 = vmatprep.subr.mxu0 0.0
    %1152 = vmatpush1.msra.mxu0 0.0
    %1153 = vmatprep.subr.mxu0 0.0
    %1154 = vmatpush1.msra.mxu0 0.0
    %1155 = vmatprep.subr.mxu0 0.0
    %1156 = vmatpush1.msra.mxu0 0.0
    %1157 = vmatprep.subr.mxu0 0.0
    %1158 = vmatpush1.msra.mxu0 0.0
    %1159 = vmatprep.subr.mxu0 0.0
    %1160 = vmatpush1.msra.mxu0 0.0
    %1161 = vmatprep.subr.mxu0 0.0
    %1162 = vmatpush1.msra.mxu0 0.0
    %1163 = vmatprep.subr.mxu0 0.0
    %1164 = vmatpush1.msra.mxu0 %v752
    %1165 = vmatprep.subr.mxu0 0.0
    %1166 = vmatpush1.msra.mxu0 %v751
    %1167 = vmatprep.subr.mxu0 0.0
    %1168 = vmatpush1.msra.mxu0 %v750
    %1169 = vmatprep.subr.mxu0 0.0
    %1170 = vmatpush1.msra.mxu0 %v749
    %1171 = vmatprep.subr.mxu0 0.0
    %1172 = vmatpush2.msra.mxu0 0.0
    %1173 = vmatprep.subr.mxu0 0.0
    %1174 = vmatpush2.msra.mxu0 0.0
    %1175 = vmatprep.subr.mxu0 0.0
    %1176 = vmatpush2.msra.mxu0 0.0
    %1177 = vmatprep.subr.mxu0 0.0
    %1178 = vmatpush2.msra.mxu0 0.0
    %1179 = vmatprep.subr.mxu0 0.0
    %1180 = vmatpush2.msra.mxu0 0.0
    %1181 = vmatprep.subr.mxu0 0.0
    %1182 = vmatpush2.msra.mxu0 0.0
    %1183 = vmatprep.subr.mxu0 0.0
    %1184 = vmatpush2.msra.mxu0 0.0
    %1185 = vmatprep.subr.mxu0 0.0
    %1186 = vmatpush2.msra.mxu0 0.0
    %1187 = vmatprep.subr.mxu0 0.0
    %1188 = vmatpush2.msra.mxu0 0.0
    %1189 = vmatprep.subr.mxu0 0.0
    %1190 = vmatpush2.msra.mxu0 0.0
    %1191 = vmatprep.subr.mxu0 0.0
    %1192 = vmatpush2.msra.mxu0 0.0
    %1193 = vmatprep.subr.mxu0 0.0
    %1194 = vmatpush2.msra.mxu0 0.0
    %1195 = vmatprep.subr.mxu0 0.0
    %1196 = vmatpush2.msra.mxu0 0.0
    %1197 = vmatprep.subr.mxu0 0.0
    %1198 = vmatpush2.msra.mxu0 0.0
    %1199 = vmatprep.subr.mxu0 0.0
    %1200 = vmatpush2.msra.mxu0 0.0
    %1201 = vmatprep.subr.mxu0 0.0
    %1202 = vmatpush2.msra.mxu0 0.0
    %1203 = vmatprep.mubr.f32.mxu0 0.0
    %1204 = vmatmul.mubr.f32.gmra.mxu0 %v997
    %v1205 = vpop.f32.mrf.mxu0
    %v1206 = vadd.f32 %v901, %v1205
    %v1207 = vpop.f32.mrf.mxu0
    %1208 = vdwg.mxu0
    %v1209 = vadd.f32 %v464, %v1066
    %v1210 = vxor.u32 %v1209, 2147483648
    %v1211 = vmul.f32 %v1210, 1.442695
    %v1212 = vpow.pop %v1211
    %v1213 = vadd.f32 %v1212, 1.0
    %v1214 = vrcp.pop %v1213
    %v1215 = vmul.f32 1.0, %v1214
    %v1216 = vadd.f32 %v580, %v1136
    %v1217 = vxor.u32 %v1216, 2147483648
    %v1218 = vmul.f32 %v1217, 1.442695
    %v1219 = vpow.pop %v1218
    %v1220 = vadd.f32 %v1219, 1.0
    %v1221 = vrcp.pop %v1220
    %v1222 = vmul.f32 1.0, %v1221
    %v1223 = vmul.f32 %v1215, %v1206
    %v1224 = vadd.f32 %v696, %v1223
    %v1225 = vtanh.pop %v1224
    %v1226 = vsub.f32 1.0, %v1222
    %v1227 = vmul.f32 %v1226, %v1225
    %v1228 = vmul.f32 %v1222, %v994
    %v1229 = vadd.f32 %v1227, %v1228
    %v1230 = vsel %vm734, %v1229, %v994
    %v1231 = vsel %vm734, %v1229, -1.0
    %v1233 = vsel %vm273, %v1230, 0
    %1235 = vmatprep.subr.mxu0 0.0
    %1236 = vmatpush1.msra.mxu0 0.0
    %1237 = vmatprep.subr.mxu0 0.0
    %1238 = vmatpush1.msra.mxu0 0.0
    %1239 = vmatprep.subr.mxu0 0.0
    %1240 = vmatpush1.msra.mxu0 0.0
    %1241 = vmatprep.subr.mxu0 0.0
    %1242 = vmatpush1.msra.mxu0 0.0
    %1243 = vmatprep.subr.mxu0 0.0
    %1244 = vmatpush1.msra.mxu0 0.0
    %1245 = vmatprep.subr.mxu0 0.0
    %1246 = vmatpush1.msra.mxu0 0.0
    %1247 = vmatprep.subr.mxu0 0.0
    %1248 = vmatpush1.msra.mxu0 0.0
    %1249 = vmatprep.subr.mxu0 0.0
    %1250 = vmatpush1.msra.mxu0 0.0
    %1251 = vmatprep.subr.mxu0 0.0
    %1252 = vmatpush1.msra.mxu0 0.0
    %1253 = vmatprep.subr.mxu0 0.0
    %1254 = vmatpush1.msra.mxu0 0.0
    %1255 = vmatprep.subr.mxu0 0.0
    %1256 = vmatpush1.msra.mxu0 0.0
    %1257 = vmatprep.subr.mxu0 0.0
    %1258 = vmatpush1.msra.mxu0 0.0
    %1259 = vmatprep.subr.mxu0 0.0
    %1260 = vmatpush1.msra.mxu0 %v744
    %1261 = vmatprep.subr.mxu0 0.0
    %1262 = vmatpush1.msra.mxu0 %v743
    %1263 = vmatprep.subr.mxu0 0.0
    %1264 = vmatpush1.msra.mxu0 %v742
    %1265 = vmatprep.subr.mxu0 0.0
    %1266 = vmatpush1.msra.mxu0 %v741
    %1267 = vmatprep.subr.mxu0 0.0
    %1268 = vmatpush2.msra.mxu0 0.0
    %1269 = vmatprep.subr.mxu0 0.0
    %1270 = vmatpush2.msra.mxu0 0.0
    %1271 = vmatprep.subr.mxu0 0.0
    %1272 = vmatpush2.msra.mxu0 0.0
    %1273 = vmatprep.subr.mxu0 0.0
    %1274 = vmatpush2.msra.mxu0 0.0
    %1275 = vmatprep.subr.mxu0 0.0
    %1276 = vmatpush2.msra.mxu0 0.0
    %1277 = vmatprep.subr.mxu0 0.0
    %1278 = vmatpush2.msra.mxu0 0.0
    %1279 = vmatprep.subr.mxu0 0.0
    %1280 = vmatpush2.msra.mxu0 0.0
    %1281 = vmatprep.subr.mxu0 0.0
    %1282 = vmatpush2.msra.mxu0 0.0
    %1283 = vmatprep.subr.mxu0 0.0
    %1284 = vmatpush2.msra.mxu0 0.0
    %1285 = vmatprep.subr.mxu0 0.0
    %1286 = vmatpush2.msra.mxu0 0.0
    %1287 = vmatprep.subr.mxu0 0.0
    %1288 = vmatpush2.msra.mxu0 0.0
    %1289 = vmatprep.subr.mxu0 0.0
    %1290 = vmatpush2.msra.mxu0 0.0
    %1291 = vmatprep.subr.mxu0 0.0
    %1292 = vmatpush2.msra.mxu0 0.0
    %1293 = vmatprep.subr.mxu0 0.0
    %1294 = vmatpush2.msra.mxu0 0.0
    %1295 = vmatprep.subr.mxu0 0.0
    %1296 = vmatpush2.msra.mxu0 0.0
    %1297 = vmatprep.subr.mxu0 0.0
    %1298 = vmatpush2.msra.mxu0 0.0
    %1299 = vmatprep.mubr.f32.mxu0 0.0
    %1300 = vmatmul.mubr.f32.gmra.mxu0 %v1233
    %v1301 = vpop.f32.mrf.mxu0
    %v1302 = vadd.f32 0.0, %v1301
    %v1303 = vpop.f32.mrf.mxu0
    %1304 = vdwg.mxu0
    %1305 = vmatprep.subr.mxu0 0.0
    %1306 = vmatpush1.msra.mxu0 0.0
    %1307 = vmatprep.subr.mxu0 0.0
    %1308 = vmatpush1.msra.mxu0 0.0
    %1309 = vmatprep.subr.mxu0 0.0
    %1310 = vmatpush1.msra.mxu0 0.0
    %1311 = vmatprep.subr.mxu0 0.0
    %1312 = vmatpush1.msra.mxu0 0.0
    %1313 = vmatprep.subr.mxu0 0.0
    %1314 = vmatpush1.msra.mxu0 0.0
    %1315 = vmatprep.subr.mxu0 0.0
    %1316 = vmatpush1.msra.mxu0 0.0
    %1317 = vmatprep.subr.mxu0 0.0
    %1318 = vmatpush1.msra.mxu0 0.0
    %1319 = vmatprep.subr.mxu0 0.0
    %1320 = vmatpush1.msra.mxu0 0.0
    %1321 = vmatprep.subr.mxu0 0.0
    %1322 = vmatpush1.msra.mxu0 0.0
    %1323 = vmatprep.subr.mxu0 0.0
    %1324 = vmatpush1.msra.mxu0 0.0
    %1325 = vmatprep.subr.mxu0 0.0
    %1326 = vmatpush1.msra.mxu0 0.0
    %1327 = vmatprep.subr.mxu0 0.0
    %1328 = vmatpush1.msra.mxu0 0.0
    %1329 = vmatprep.subr.mxu0 0.0
    %1330 = vmatpush1.msra.mxu0 %v748
    %1331 = vmatprep.subr.mxu0 0.0
    %1332 = vmatpush1.msra.mxu0 %v747
    %1333 = vmatprep.subr.mxu0 0.0
    %1334 = vmatpush1.msra.mxu0 %v746
    %1335 = vmatprep.subr.mxu0 0.0
    %1336 = vmatpush1.msra.mxu0 %v745
    %1337 = vmatprep.subr.mxu0 0.0
    %1338 = vmatpush2.msra.mxu0 0.0
    %1339 = vmatprep.subr.mxu0 0.0
    %1340 = vmatpush2.msra.mxu0 0.0
    %1341 = vmatprep.subr.mxu0 0.0
    %1342 = vmatpush2.msra.mxu0 0.0
    %1343 = vmatprep.subr.mxu0 0.0
    %1344 = vmatpush2.msra.mxu0 0.0
    %1345 = vmatprep.subr.mxu0 0.0
    %1346 = vmatpush2.msra.mxu0 0.0
    %1347 = vmatprep.subr.mxu0 0.0
    %1348 = vmatpush2.msra.mxu0 0.0
    %1349 = vmatprep.subr.mxu0 0.0
    %1350 = vmatpush2.msra.mxu0 0.0
    %1351 = vmatprep.subr.mxu0 0.0
    %1352 = vmatpush2.msra.mxu0 0.0
    %1353 = vmatprep.subr.mxu0 0.0
    %1354 = vmatpush2.msra.mxu0 0.0
    %1355 = vmatprep.subr.mxu0 0.0
    %1356 = vmatpush2.msra.mxu0 0.0
    %1357 = vmatprep.subr.mxu0 0.0
    %1358 = vmatpush2.msra.mxu0 0.0
    %1359 = vmatprep.subr.mxu0 0.0
    %1360 = vmatpush2.msra.mxu0 0.0
    %1361 = vmatprep.subr.mxu0 0.0
    %1362 = vmatpush2.msra.mxu0 0.0
    %1363 = vmatprep.subr.mxu0 0.0
    %1364 = vmatpush2.msra.mxu0 0.0
    %1365 = vmatprep.subr.mxu0 0.0
    %1366 = vmatpush2.msra.mxu0 0.0
    %1367 = vmatprep.subr.mxu0 0.0
    %1368 = vmatpush2.msra.mxu0 0.0
    %1369 = vmatprep.mubr.f32.mxu0 0.0
    %1370 = vmatmul.mubr.f32.gmra.mxu0 %v1233
    %v1371 = vpop.f32.mrf.mxu0
    %v1372 = vadd.f32 0.0, %v1371
    %v1373 = vpop.f32.mrf.mxu0
    %1374 = vdwg.mxu0
    %1375 = vmatprep.subr.mxu0 0.0
    %1376 = vmatpush1.msra.mxu0 0.0
    %1377 = vmatprep.subr.mxu0 0.0
    %1378 = vmatpush1.msra.mxu0 0.0
    %1379 = vmatprep.subr.mxu0 0.0
    %1380 = vmatpush1.msra.mxu0 0.0
    %1381 = vmatprep.subr.mxu0 0.0
    %1382 = vmatpush1.msra.mxu0 0.0
    %1383 = vmatprep.subr.mxu0 0.0
    %1384 = vmatpush1.msra.mxu0 0.0
    %1385 = vmatprep.subr.mxu0 0.0
    %1386 = vmatpush1.msra.mxu0 0.0
    %1387 = vmatprep.subr.mxu0 0.0
    %1388 = vmatpush1.msra.mxu0 0.0
    %1389 = vmatprep.subr.mxu0 0.0
    %1390 = vmatpush1.msra.mxu0 0.0
    %1391 = vmatprep.subr.mxu0 0.0
    %1392 = vmatpush1.msra.mxu0 0.0
    %1393 = vmatprep.subr.mxu0 0.0
    %1394 = vmatpush1.msra.mxu0 0.0
    %1395 = vmatprep.subr.mxu0 0.0
    %1396 = vmatpush1.msra.mxu0 0.0
    %1397 = vmatprep.subr.mxu0 0.0
    %1398 = vmatpush1.msra.mxu0 0.0
    %1399 = vmatprep.subr.mxu0 0.0
    %1400 = vmatpush1.msra.mxu0 %v752
    %1401 = vmatprep.subr.mxu0 0.0
    %1402 = vmatpush1.msra.mxu0 %v751
    %1403 = vmatprep.subr.mxu0 0.0
    %1404 = vmatpush1.msra.mxu0 %v750
    %1405 = vmatprep.subr.mxu0 0.0
    %1406 = vmatpush1.msra.mxu0 %v749
    %1407 = vmatprep.subr.mxu0 0.0
    %1408 = vmatpush2.msra.mxu0 0.0
    %1409 = vmatprep.subr.mxu0 0.0
    %1410 = vmatpush2.msra.mxu0 0.0
    %1411 = vmatprep.subr.mxu0 0.0
    %1412 = vmatpush2.msra.mxu0 0.0
    %1413 = vmatprep.subr.mxu0 0.0
    %1414 = vmatpush2.msra.mxu0 0.0
    %1415 = vmatprep.subr.mxu0 0.0
    %1416 = vmatpush2.msra.mxu0 0.0
    %1417 = vmatprep.subr.mxu0 0.0
    %1418 = vmatpush2.msra.mxu0 0.0
    %1419 = vmatprep.subr.mxu0 0.0
    %1420 = vmatpush2.msra.mxu0 0.0
    %1421 = vmatprep.subr.mxu0 0.0
    %1422 = vmatpush2.msra.mxu0 0.0
    %1423 = vmatprep.subr.mxu0 0.0
    %1424 = vmatpush2.msra.mxu0 0.0
    %1425 = vmatprep.subr.mxu0 0.0
    %1426 = vmatpush2.msra.mxu0 0.0
    %1427 = vmatprep.subr.mxu0 0.0
    %1428 = vmatpush2.msra.mxu0 0.0
    %1429 = vmatprep.subr.mxu0 0.0
    %1430 = vmatpush2.msra.mxu0 0.0
    %1431 = vmatprep.subr.mxu0 0.0
    %1432 = vmatpush2.msra.mxu0 0.0
    %1433 = vmatprep.subr.mxu0 0.0
    %1434 = vmatpush2.msra.mxu0 0.0
    %1435 = vmatprep.subr.mxu0 0.0
    %1436 = vmatpush2.msra.mxu0 0.0
    %1437 = vmatprep.subr.mxu0 0.0
    %1438 = vmatpush2.msra.mxu0 0.0
    %1439 = vmatprep.mubr.f32.mxu0 0.0
    %1440 = vmatmul.mubr.f32.gmra.mxu0 %v1233
    %v1441 = vpop.f32.mrf.mxu0
    %v1442 = vadd.f32 %v901, %v1441
    %v1443 = vpop.f32.mrf.mxu0
    %1444 = vdwg.mxu0
    %v1445 = vadd.f32 %v469, %v1302
    %v1446 = vxor.u32 %v1445, 2147483648
    %v1447 = vmul.f32 %v1446, 1.442695
    %v1448 = vpow.pop %v1447
    %v1449 = vadd.f32 %v1448, 1.0
    %v1450 = vrcp.pop %v1449
    %v1451 = vmul.f32 1.0, %v1450
    %v1452 = vadd.f32 %v585, %v1372
    %v1453 = vxor.u32 %v1452, 2147483648
    %v1454 = vmul.f32 %v1453, 1.442695
    %v1455 = vpow.pop %v1454
    %v1456 = vadd.f32 %v1455, 1.0
    %v1457 = vrcp.pop %v1456
    %v1458 = vmul.f32 1.0, %v1457
    %v1459 = vmul.f32 %v1451, %v1442
    %v1460 = vadd.f32 %v701, %v1459
    %v1461 = vtanh.pop %v1460
    %v1462 = vsub.f32 1.0, %v1458
    %v1463 = vmul.f32 %v1462, %v1461
    %v1464 = vmul.f32 %v1458, %v1230
    %v1465 = vadd.f32 %v1463, %v1464
    %v1466 = vsel %vm735, %v1465, %v1230
    %v1467 = vsel %vm735, %v1465, -1.0
    %v1469 = vsel %vm273, %v1466, 0
    %1471 = vmatprep.subr.mxu0 0.0
    %1472 = vmatpush1.msra.mxu0 0.0
    %1473 = vmatprep.subr.mxu0 0.0
    %1474 = vmatpush1.msra.mxu0 0.0
    %1475 = vmatprep.subr.mxu0 0.0
    %1476 = vmatpush1.msra.mxu0 0.0
    %1477 = vmatprep.subr.mxu0 0.0
    %1478 = vmatpush1.msra.mxu0 0.0
    %1479 = vmatprep.subr.mxu0 0.0
    %1480 = vmatpush1.msra.mxu0 0.0
    %1481 = vmatprep.subr.mxu0 0.0
    %1482 = vmatpush1.msra.mxu0 0.0
    %1483 = vmatprep.subr.mxu0 0.0
    %1484 = vmatpush1.msra.mxu0 0.0
    %1485 = vmatprep.subr.mxu0 0.0
    %1486 = vmatpush1.msra.mxu0 0.0
    %1487 = vmatprep.subr.mxu0 0.0
    %1488 = vmatpush1.msra.mxu0 0.0
    %1489 = vmatprep.subr.mxu0 0.0
    %1490 = vmatpush1.msra.mxu0 0.0
    %1491 = vmatprep.subr.mxu0 0.0
    %1492 = vmatpush1.msra.mxu0 0.0
    %1493 = vmatprep.subr.mxu0 0.0
    %1494 = vmatpush1.msra.mxu0 0.0
    %1495 = vmatprep.subr.mxu0 0.0
    %1496 = vmatpush1.msra.mxu0 %v744
    %1497 = vmatprep.subr.mxu0 0.0
    %1498 = vmatpush1.msra.mxu0 %v743
    %1499 = vmatprep.subr.mxu0 0.0
    %1500 = vmatpush1.msra.mxu0 %v742
    %1501 = vmatprep.subr.mxu0 0.0
    %1502 = vmatpush1.msra.mxu0 %v741
    %1503 = vmatprep.subr.mxu0 0.0
    %1504 = vmatpush2.msra.mxu0 0.0
    %1505 = vmatprep.subr.mxu0 0.0
    %1506 = vmatpush2.msra.mxu0 0.0
    %1507 = vmatprep.subr.mxu0 0.0
    %1508 = vmatpush2.msra.mxu0 0.0
    %1509 = vmatprep.subr.mxu0 0.0
    %1510 = vmatpush2.msra.mxu0 0.0
    %1511 = vmatprep.subr.mxu0 0.0
    %1512 = vmatpush2.msra.mxu0 0.0
    %1513 = vmatprep.subr.mxu0 0.0
    %1514 = vmatpush2.msra.mxu0 0.0
    %1515 = vmatprep.subr.mxu0 0.0
    %1516 = vmatpush2.msra.mxu0 0.0
    %1517 = vmatprep.subr.mxu0 0.0
    %1518 = vmatpush2.msra.mxu0 0.0
    %1519 = vmatprep.subr.mxu0 0.0
    %1520 = vmatpush2.msra.mxu0 0.0
    %1521 = vmatprep.subr.mxu0 0.0
    %1522 = vmatpush2.msra.mxu0 0.0
    %1523 = vmatprep.subr.mxu0 0.0
    %1524 = vmatpush2.msra.mxu0 0.0
    %1525 = vmatprep.subr.mxu0 0.0
    %1526 = vmatpush2.msra.mxu0 0.0
    %1527 = vmatprep.subr.mxu0 0.0
    %1528 = vmatpush2.msra.mxu0 0.0
    %1529 = vmatprep.subr.mxu0 0.0
    %1530 = vmatpush2.msra.mxu0 0.0
    %1531 = vmatprep.subr.mxu0 0.0
    %1532 = vmatpush2.msra.mxu0 0.0
    %1533 = vmatprep.subr.mxu0 0.0
    %1534 = vmatpush2.msra.mxu0 0.0
    %1535 = vmatprep.mubr.f32.mxu0 0.0
    %1536 = vmatmul.mubr.f32.gmra.mxu0 %v1469
    %v1537 = vpop.f32.mrf.mxu0
    %v1538 = vadd.f32 0.0, %v1537
    %v1539 = vpop.f32.mrf.mxu0
    %1540 = vdwg.mxu0
    %1541 = vmatprep.subr.mxu0 0.0
    %1542 = vmatpush1.msra.mxu0 0.0
    %1543 = vmatprep.subr.mxu0 0.0
    %1544 = vmatpush1.msra.mxu0 0.0
    %1545 = vmatprep.subr.mxu0 0.0
    %1546 = vmatpush1.msra.mxu0 0.0
    %1547 = vmatprep.subr.mxu0 0.0
    %1548 = vmatpush1.msra.mxu0 0.0
    %1549 = vmatprep.subr.mxu0 0.0
    %1550 = vmatpush1.msra.mxu0 0.0
    %1551 = vmatprep.subr.mxu0 0.0
    %1552 = vmatpush1.msra.mxu0 0.0
    %1553 = vmatprep.subr.mxu0 0.0
    %1554 = vmatpush1.msra.mxu0 0.0
    %1555 = vmatprep.subr.mxu0 0.0
    %1556 = vmatpush1.msra.mxu0 0.0
    %1557 = vmatprep.subr.mxu0 0.0
    %1558 = vmatpush1.msra.mxu0 0.0
    %1559 = vmatprep.subr.mxu0 0.0
    %1560 = vmatpush1.msra.mxu0 0.0
    %1561 = vmatprep.subr.mxu0 0.0
    %1562 = vmatpush1.msra.mxu0 0.0
    %1563 = vmatprep.subr.mxu0 0.0
    %1564 = vmatpush1.msra.mxu0 0.0
    %1565 = vmatprep.subr.mxu0 0.0
    %1566 = vmatpush1.msra.mxu0 %v748
    %1567 = vmatprep.subr.mxu0 0.0
    %1568 = vmatpush1.msra.mxu0 %v747
    %1569 = vmatprep.subr.mxu0 0.0
    %1570 = vmatpush1.msra.mxu0 %v746
    %1571 = vmatprep.subr.mxu0 0.0
    %1572 = vmatpush1.msra.mxu0 %v745
    %1573 = vmatprep.subr.mxu0 0.0
    %1574 = vmatpush2.msra.mxu0 0.0
    %1575 = vmatprep.subr.mxu0 0.0
    %1576 = vmatpush2.msra.mxu0 0.0
    %1577 = vmatprep.subr.mxu0 0.0
    %1578 = vmatpush2.msra.mxu0 0.0
    %1579 = vmatprep.subr.mxu0 0.0
    %1580 = vmatpush2.msra.mxu0 0.0
    %1581 = vmatprep.subr.mxu0 0.0
    %1582 = vmatpush2.msra.mxu0 0.0
    %1583 = vmatprep.subr.mxu0 0.0
    %1584 = vmatpush2.msra.mxu0 0.0
    %1585 = vmatprep.subr.mxu0 0.0
    %1586 = vmatpush2.msra.mxu0 0.0
    %1587 = vmatprep.subr.mxu0 0.0
    %1588 = vmatpush2.msra.mxu0 0.0
    %1589 = vmatprep.subr.mxu0 0.0
    %1590 = vmatpush2.msra.mxu0 0.0
    %1591 = vmatprep.subr.mxu0 0.0
    %1592 = vmatpush2.msra.mxu0 0.0
    %1593 = vmatprep.subr.mxu0 0.0
    %1594 = vmatpush2.msra.mxu0 0.0
    %1595 = vmatprep.subr.mxu0 0.0
    %1596 = vmatpush2.msra.mxu0 0.0
    %1597 = vmatprep.subr.mxu0 0.0
    %1598 = vmatpush2.msra.mxu0 0.0
    %1599 = vmatprep.subr.mxu0 0.0
    %1600 = vmatpush2.msra.mxu0 0.0
    %1601 = vmatprep.subr.mxu0 0.0
    %1602 = vmatpush2.msra.mxu0 0.0
    %1603 = vmatprep.subr.mxu0 0.0
    %1604 = vmatpush2.msra.mxu0 0.0
    %1605 = vmatprep.mubr.f32.mxu0 0.0
    %1606 = vmatmul.mubr.f32.gmra.mxu0 %v1469
    %v1607 = vpop.f32.mrf.mxu0
    %v1608 = vadd.f32 0.0, %v1607
    %v1609 = vpop.f32.mrf.mxu0
    %1610 = vdwg.mxu0
    %1611 = vmatprep.subr.mxu0 0.0
    %1612 = vmatpush1.msra.mxu0 0.0
    %1613 = vmatprep.subr.mxu0 0.0
    %1614 = vmatpush1.msra.mxu0 0.0
    %1615 = vmatprep.subr.mxu0 0.0
    %1616 = vmatpush1.msra.mxu0 0.0
    %1617 = vmatprep.subr.mxu0 0.0
    %1618 = vmatpush1.msra.mxu0 0.0
    %1619 = vmatprep.subr.mxu0 0.0
    %1620 = vmatpush1.msra.mxu0 0.0
    %1621 = vmatprep.subr.mxu0 0.0
    %1622 = vmatpush1.msra.mxu0 0.0
    %1623 = vmatprep.subr.mxu0 0.0
    %1624 = vmatpush1.msra.mxu0 0.0
    %1625 = vmatprep.subr.mxu0 0.0
    %1626 = vmatpush1.msra.mxu0 0.0
    %1627 = vmatprep.subr.mxu0 0.0
    %1628 = vmatpush1.msra.mxu0 0.0
    %1629 = vmatprep.subr.mxu0 0.0
    %1630 = vmatpush1.msra.mxu0 0.0
    %1631 = vmatprep.subr.mxu0 0.0
    %1632 = vmatpush1.msra.mxu0 0.0
    %1633 = vmatprep.subr.mxu0 0.0
    %1634 = vmatpush1.msra.mxu0 0.0
    %1635 = vmatprep.subr.mxu0 0.0
    %1636 = vmatpush1.msra.mxu0 %v752
    %1637 = vmatprep.subr.mxu0 0.0
    %1638 = vmatpush1.msra.mxu0 %v751
    %1639 = vmatprep.subr.mxu0 0.0
    %1640 = vmatpush1.msra.mxu0 %v750
    %1641 = vmatprep.subr.mxu0 0.0
    %1642 = vmatpush1.msra.mxu0 %v749
    %1643 = vmatprep.subr.mxu0 0.0
    %1644 = vmatpush2.msra.mxu0 0.0
    %1645 = vmatprep.subr.mxu0 0.0
    %1646 = vmatpush2.msra.mxu0 0.0
    %1647 = vmatprep.subr.mxu0 0.0
    %1648 = vmatpush2.msra.mxu0 0.0
    %1649 = vmatprep.subr.mxu0 0.0
    %1650 = vmatpush2.msra.mxu0 0.0
    %1651 = vmatprep.subr.mxu0 0.0
    %1652 = vmatpush2.msra.mxu0 0.0
    %1653 = vmatprep.subr.mxu0 0.0
    %1654 = vmatpush2.msra.mxu0 0.0
    %1655 = vmatprep.subr.mxu0 0.0
    %1656 = vmatpush2.msra.mxu0 0.0
    %1657 = vmatprep.subr.mxu0 0.0
    %1658 = vmatpush2.msra.mxu0 0.0
    %1659 = vmatprep.subr.mxu0 0.0
    %1660 = vmatpush2.msra.mxu0 0.0
    %1661 = vmatprep.subr.mxu0 0.0
    %1662 = vmatpush2.msra.mxu0 0.0
    %1663 = vmatprep.subr.mxu0 0.0
    %1664 = vmatpush2.msra.mxu0 0.0
    %1665 = vmatprep.subr.mxu0 0.0
    %1666 = vmatpush2.msra.mxu0 0.0
    %1667 = vmatprep.subr.mxu0 0.0
    %1668 = vmatpush2.msra.mxu0 0.0
    %1669 = vmatprep.subr.mxu0 0.0
    %1670 = vmatpush2.msra.mxu0 0.0
    %1671 = vmatprep.subr.mxu0 0.0
    %1672 = vmatpush2.msra.mxu0 0.0
    %1673 = vmatprep.subr.mxu0 0.0
    %1674 = vmatpush2.msra.mxu0 0.0
    %1675 = vmatprep.mubr.f32.mxu0 0.0
    %1676 = vmatmul.mubr.f32.gmra.mxu0 %v1469
    %v1677 = vpop.f32.mrf.mxu0
    %v1678 = vadd.f32 %v901, %v1677
    %v1679 = vpop.f32.mrf.mxu0
    %1680 = vdwg.mxu0
    %v1681 = vadd.f32 %v474, %v1538
    %v1682 = vxor.u32 %v1681, 2147483648
    %v1683 = vmul.f32 %v1682, 1.442695
    %v1684 = vpow.pop %v1683
    %v1685 = vadd.f32 %v1684, 1.0
    %v1686 = vrcp.pop %v1685
    %v1687 = vmul.f32 1.0, %v1686
    %v1688 = vadd.f32 %v590, %v1608
    %v1689 = vxor.u32 %v1688, 2147483648
    %v1690 = vmul.f32 %v1689, 1.442695
    %v1691 = vpow.pop %v1690
    %v1692 = vadd.f32 %v1691, 1.0
    %v1693 = vrcp.pop %v1692
    %v1694 = vmul.f32 1.0, %v1693
    %v1695 = vmul.f32 %v1687, %v1678
    %v1696 = vadd.f32 %v706, %v1695
    %v1697 = vtanh.pop %v1696
    %v1698 = vsub.f32 1.0, %v1694
    %v1699 = vmul.f32 %v1698, %v1697
    %v1700 = vmul.f32 %v1694, %v1466
    %v1701 = vadd.f32 %v1699, %v1700
    %v1702 = vsel %vm736, %v1701, %v1466
    %v1703 = vsel %vm736, %v1701, -1.0
    %v1705 = vsel %vm273, %v1702, 0
    %1707 = vmatprep.subr.mxu0 0.0
    %1708 = vmatpush1.msra.mxu0 0.0
    %1709 = vmatprep.subr.mxu0 0.0
    %1710 = vmatpush1.msra.mxu0 0.0
    %1711 = vmatprep.subr.mxu0 0.0
    %1712 = vmatpush1.msra.mxu0 0.0
    %1713 = vmatprep.subr.mxu0 0.0
    %1714 = vmatpush1.msra.mxu0 0.0
    %1715 = vmatprep.subr.mxu0 0.0
    %1716 = vmatpush1.msra.mxu0 0.0
    %1717 = vmatprep.subr.mxu0 0.0
    %1718 = vmatpush1.msra.mxu0 0.0
    %1719 = vmatprep.subr.mxu0 0.0
    %1720 = vmatpush1.msra.mxu0 0.0
    %1721 = vmatprep.subr.mxu0 0.0
    %1722 = vmatpush1.msra.mxu0 0.0
    %1723 = vmatprep.subr.mxu0 0.0
    %1724 = vmatpush1.msra.mxu0 0.0
    %1725 = vmatprep.subr.mxu0 0.0
    %1726 = vmatpush1.msra.mxu0 0.0
    %1727 = vmatprep.subr.mxu0 0.0
    %1728 = vmatpush1.msra.mxu0 0.0
    %1729 = vmatprep.subr.mxu0 0.0
    %1730 = vmatpush1.msra.mxu0 0.0
    %1731 = vmatprep.subr.mxu0 0.0
    %1732 = vmatpush1.msra.mxu0 %v744
    %1733 = vmatprep.subr.mxu0 0.0
    %1734 = vmatpush1.msra.mxu0 %v743
    %1735 = vmatprep.subr.mxu0 0.0
    %1736 = vmatpush1.msra.mxu0 %v742
    %1737 = vmatprep.subr.mxu0 0.0
    %1738 = vmatpush1.msra.mxu0 %v741
    %1739 = vmatprep.subr.mxu0 0.0
    %1740 = vmatpush2.msra.mxu0 0.0
    %1741 = vmatprep.subr.mxu0 0.0
    %1742 = vmatpush2.msra.mxu0 0.0
    %1743 = vmatprep.subr.mxu0 0.0
    %1744 = vmatpush2.msra.mxu0 0.0
    %1745 = vmatprep.subr.mxu0 0.0
    %1746 = vmatpush2.msra.mxu0 0.0
    %1747 = vmatprep.subr.mxu0 0.0
    %1748 = vmatpush2.msra.mxu0 0.0
    %1749 = vmatprep.subr.mxu0 0.0
    %1750 = vmatpush2.msra.mxu0 0.0
    %1751 = vmatprep.subr.mxu0 0.0
    %1752 = vmatpush2.msra.mxu0 0.0
    %1753 = vmatprep.subr.mxu0 0.0
    %1754 = vmatpush2.msra.mxu0 0.0
    %1755 = vmatprep.subr.mxu0 0.0
    %1756 = vmatpush2.msra.mxu0 0.0
    %1757 = vmatprep.subr.mxu0 0.0
    %1758 = vmatpush2.msra.mxu0 0.0
    %1759 = vmatprep.subr.mxu0 0.0
    %1760 = vmatpush2.msra.mxu0 0.0
    %1761 = vmatprep.subr.mxu0 0.0
    %1762 = vmatpush2.msra.mxu0 0.0
    %1763 = vmatprep.subr.mxu0 0.0
    %1764 = vmatpush2.msra.mxu0 0.0
    %1765 = vmatprep.subr.mxu0 0.0
    %1766 = vmatpush2.msra.mxu0 0.0
    %1767 = vmatprep.subr.mxu0 0.0
    %1768 = vmatpush2.msra.mxu0 0.0
    %1769 = vmatprep.subr.mxu0 0.0
    %1770 = vmatpush2.msra.mxu0 0.0
    %1771 = vmatprep.mubr.f32.mxu0 0.0
    %1772 = vmatmul.mubr.f32.gmra.mxu0 %v1705
    %v1773 = vpop.f32.mrf.mxu0
    %v1774 = vadd.f32 0.0, %v1773
    %v1775 = vpop.f32.mrf.mxu0
    %1776 = vdwg.mxu0
    %1777 = vmatprep.subr.mxu0 0.0
    %1778 = vmatpush1.msra.mxu0 0.0
    %1779 = vmatprep.subr.mxu0 0.0
    %1780 = vmatpush1.msra.mxu0 0.0
    %1781 = vmatprep.subr.mxu0 0.0
    %1782 = vmatpush1.msra.mxu0 0.0
    %1783 = vmatprep.subr.mxu0 0.0
    %1784 = vmatpush1.msra.mxu0 0.0
    %1785 = vmatprep.subr.mxu0 0.0
    %1786 = vmatpush1.msra.mxu0 0.0
    %1787 = vmatprep.subr.mxu0 0.0
    %1788 = vmatpush1.msra.mxu0 0.0
    %1789 = vmatprep.subr.mxu0 0.0
    %1790 = vmatpush1.msra.mxu0 0.0
    %1791 = vmatprep.subr.mxu0 0.0
    %1792 = vmatpush1.msra.mxu0 0.0
    %1793 = vmatprep.subr.mxu0 0.0
    %1794 = vmatpush1.msra.mxu0 0.0
    %1795 = vmatprep.subr.mxu0 0.0
    %1796 = vmatpush1.msra.mxu0 0.0
    %1797 = vmatprep.subr.mxu0 0.0
    %1798 = vmatpush1.msra.mxu0 0.0
    %1799 = vmatprep.subr.mxu0 0.0
    %1800 = vmatpush1.msra.mxu0 0.0
    %1801 = vmatprep.subr.mxu0 0.0
    %1802 = vmatpush1.msra.mxu0 %v748
    %1803 = vmatprep.subr.mxu0 0.0
    %1804 = vmatpush1.msra.mxu0 %v747
    %1805 = vmatprep.subr.mxu0 0.0
    %1806 = vmatpush1.msra.mxu0 %v746
    %1807 = vmatprep.subr.mxu0 0.0
    %1808 = vmatpush1.msra.mxu0 %v745
    %1809 = vmatprep.subr.mxu0 0.0
    %1810 = vmatpush2.msra.mxu0 0.0
    %1811 = vmatprep.subr.mxu0 0.0
    %1812 = vmatpush2.msra.mxu0 0.0
    %1813 = vmatprep.subr.mxu0 0.0
    %1814 = vmatpush2.msra.mxu0 0.0
    %1815 = vmatprep.subr.mxu0 0.0
    %1816 = vmatpush2.msra.mxu0 0.0
    %1817 = vmatprep.subr.mxu0 0.0
    %1818 = vmatpush2.msra.mxu0 0.0
    %1819 = vmatprep.subr.mxu0 0.0
    %1820 = vmatpush2.msra.mxu0 0.0
    %1821 = vmatprep.subr.mxu0 0.0
    %1822 = vmatpush2.msra.mxu0 0.0
    %1823 = vmatprep.subr.mxu0 0.0
    %1824 = vmatpush2.msra.mxu0 0.0
    %1825 = vmatprep.subr.mxu0 0.0
    %1826 = vmatpush2.msra.mxu0 0.0
    %1827 = vmatprep.subr.mxu0 0.0
    %1828 = vmatpush2.msra.mxu0 0.0
    %1829 = vmatprep.subr.mxu0 0.0
    %1830 = vmatpush2.msra.mxu0 0.0
    %1831 = vmatprep.subr.mxu0 0.0
    %1832 = vmatpush2.msra.mxu0 0.0
    %1833 = vmatprep.subr.mxu0 0.0
    %1834 = vmatpush2.msra.mxu0 0.0
    %1835 = vmatprep.subr.mxu0 0.0
    %1836 = vmatpush2.msra.mxu0 0.0
    %1837 = vmatprep.subr.mxu0 0.0
    %1838 = vmatpush2.msra.mxu0 0.0
    %1839 = vmatprep.subr.mxu0 0.0
    %1840 = vmatpush2.msra.mxu0 0.0
    %1841 = vmatprep.mubr.f32.mxu0 0.0
    %1842 = vmatmul.mubr.f32.gmra.mxu0 %v1705
    %v1843 = vpop.f32.mrf.mxu0
    %v1844 = vadd.f32 0.0, %v1843
    %v1845 = vpop.f32.mrf.mxu0
    %1846 = vdwg.mxu0
    %1847 = vmatprep.subr.mxu0 0.0
    %1848 = vmatpush1.msra.mxu0 0.0
    %1849 = vmatprep.subr.mxu0 0.0
    %1850 = vmatpush1.msra.mxu0 0.0
    %1851 = vmatprep.subr.mxu0 0.0
    %1852 = vmatpush1.msra.mxu0 0.0
    %1853 = vmatprep.subr.mxu0 0.0
    %1854 = vmatpush1.msra.mxu0 0.0
    %1855 = vmatprep.subr.mxu0 0.0
    %1856 = vmatpush1.msra.mxu0 0.0
    %1857 = vmatprep.subr.mxu0 0.0
    %1858 = vmatpush1.msra.mxu0 0.0
    %1859 = vmatprep.subr.mxu0 0.0
    %1860 = vmatpush1.msra.mxu0 0.0
    %1861 = vmatprep.subr.mxu0 0.0
    %1862 = vmatpush1.msra.mxu0 0.0
    %1863 = vmatprep.subr.mxu0 0.0
    %1864 = vmatpush1.msra.mxu0 0.0
    %1865 = vmatprep.subr.mxu0 0.0
    %1866 = vmatpush1.msra.mxu0 0.0
    %1867 = vmatprep.subr.mxu0 0.0
    %1868 = vmatpush1.msra.mxu0 0.0
    %1869 = vmatprep.subr.mxu0 0.0
    %1870 = vmatpush1.msra.mxu0 0.0
    %1871 = vmatprep.subr.mxu0 0.0
    %1872 = vmatpush1.msra.mxu0 %v752
    %1873 = vmatprep.subr.mxu0 0.0
    %1874 = vmatpush1.msra.mxu0 %v751
    %1875 = vmatprep.subr.mxu0 0.0
    %1876 = vmatpush1.msra.mxu0 %v750
    %1877 = vmatprep.subr.mxu0 0.0
    %1878 = vmatpush1.msra.mxu0 %v749
    %1879 = vmatprep.subr.mxu0 0.0
    %1880 = vmatpush2.msra.mxu0 0.0
    %1881 = vmatprep.subr.mxu0 0.0
    %1882 = vmatpush2.msra.mxu0 0.0
    %1883 = vmatprep.subr.mxu0 0.0
    %1884 = vmatpush2.msra.mxu0 0.0
    %1885 = vmatprep.subr.mxu0 0.0
    %1886 = vmatpush2.msra.mxu0 0.0
    %1887 = vmatprep.subr.mxu0 0.0
    %1888 = vmatpush2.msra.mxu0 0.0
    %1889 = vmatprep.subr.mxu0 0.0
    %1890 = vmatpush2.msra.mxu0 0.0
    %1891 = vmatprep.subr.mxu0 0.0
    %1892 = vmatpush2.msra.mxu0 0.0
    %1893 = vmatprep.subr.mxu0 0.0
    %1894 = vmatpush2.msra.mxu0 0.0
    %1895 = vmatprep.subr.mxu0 0.0
    %1896 = vmatpush2.msra.mxu0 0.0
    %1897 = vmatprep.subr.mxu0 0.0
    %1898 = vmatpush2.msra.mxu0 0.0
    %1899 = vmatprep.subr.mxu0 0.0
    %1900 = vmatpush2.msra.mxu0 0.0
    %1901 = vmatprep.subr.mxu0 0.0
    %1902 = vmatpush2.msra.mxu0 0.0
    %1903 = vmatprep.subr.mxu0 0.0
    %1904 = vmatpush2.msra.mxu0 0.0
    %1905 = vmatprep.subr.mxu0 0.0
    %1906 = vmatpush2.msra.mxu0 0.0
    %1907 = vmatprep.subr.mxu0 0.0
    %1908 = vmatpush2.msra.mxu0 0.0
    %1909 = vmatprep.subr.mxu0 0.0
    %1910 = vmatpush2.msra.mxu0 0.0
    %1911 = vmatprep.mubr.f32.mxu0 0.0
    %1912 = vmatmul.mubr.f32.gmra.mxu0 %v1705
    %v1913 = vpop.f32.mrf.mxu0
    %v1914 = vadd.f32 %v901, %v1913
    %v1915 = vpop.f32.mrf.mxu0
    %1916 = vdwg.mxu0
    %v1917 = vadd.f32 %v479, %v1774
    %v1918 = vxor.u32 %v1917, 2147483648
    %v1919 = vmul.f32 %v1918, 1.442695
    %v1920 = vpow.pop %v1919
    %v1921 = vadd.f32 %v1920, 1.0
    %v1922 = vrcp.pop %v1921
    %v1923 = vmul.f32 1.0, %v1922
    %v1924 = vadd.f32 %v595, %v1844
    %v1925 = vxor.u32 %v1924, 2147483648
    %v1926 = vmul.f32 %v1925, 1.442695
    %v1927 = vpow.pop %v1926
    %v1928 = vadd.f32 %v1927, 1.0
    %v1929 = vrcp.pop %v1928
    %v1930 = vmul.f32 1.0, %v1929
    %v1931 = vmul.f32 %v1923, %v1914
    %v1932 = vadd.f32 %v711, %v1931
    %v1933 = vtanh.pop %v1932
    %v1934 = vsub.f32 1.0, %v1930
    %v1935 = vmul.f32 %v1934, %v1933
    %v1936 = vmul.f32 %v1930, %v1702
    %v1937 = vadd.f32 %v1935, %v1936
    %v1938 = vsel %vm737, %v1937, %v1702
    %v1939 = vsel %vm737, %v1937, -1.0
    %v1941 = vsel %vm273, %v1938, 0
    %1943 = vmatprep.subr.mxu0 0.0
    %1944 = vmatpush1.msra.mxu0 0.0
    %1945 = vmatprep.subr.mxu0 0.0
    %1946 = vmatpush1.msra.mxu0 0.0
    %1947 = vmatprep.subr.mxu0 0.0
    %1948 = vmatpush1.msra.mxu0 0.0
    %1949 = vmatprep.subr.mxu0 0.0
    %1950 = vmatpush1.msra.mxu0 0.0
    %1951 = vmatprep.subr.mxu0 0.0
    %1952 = vmatpush1.msra.mxu0 0.0
    %1953 = vmatprep.subr.mxu0 0.0
    %1954 = vmatpush1.msra.mxu0 0.0
    %1955 = vmatprep.subr.mxu0 0.0
    %1956 = vmatpush1.msra.mxu0 0.0
    %1957 = vmatprep.subr.mxu0 0.0
    %1958 = vmatpush1.msra.mxu0 0.0
    %1959 = vmatprep.subr.mxu0 0.0
    %1960 = vmatpush1.msra.mxu0 0.0
    %1961 = vmatprep.subr.mxu0 0.0
    %1962 = vmatpush1.msra.mxu0 0.0
    %1963 = vmatprep.subr.mxu0 0.0
    %1964 = vmatpush1.msra.mxu0 0.0
    %1965 = vmatprep.subr.mxu0 0.0
    %1966 = vmatpush1.msra.mxu0 0.0
    %1967 = vmatprep.subr.mxu0 0.0
    %1968 = vmatpush1.msra.mxu0 %v744
    %1969 = vmatprep.subr.mxu0 0.0
    %1970 = vmatpush1.msra.mxu0 %v743
    %1971 = vmatprep.subr.mxu0 0.0
    %1972 = vmatpush1.msra.mxu0 %v742
    %1973 = vmatprep.subr.mxu0 0.0
    %1974 = vmatpush1.msra.mxu0 %v741
    %1975 = vmatprep.subr.mxu0 0.0
    %1976 = vmatpush2.msra.mxu0 0.0
    %1977 = vmatprep.subr.mxu0 0.0
    %1978 = vmatpush2.msra.mxu0 0.0
    %1979 = vmatprep.subr.mxu0 0.0
    %1980 = vmatpush2.msra.mxu0 0.0
    %1981 = vmatprep.subr.mxu0 0.0
    %1982 = vmatpush2.msra.mxu0 0.0
    %1983 = vmatprep.subr.mxu0 0.0
    %1984 = vmatpush2.msra.mxu0 0.0
    %1985 = vmatprep.subr.mxu0 0.0
    %1986 = vmatpush2.msra.mxu0 0.0
    %1987 = vmatprep.subr.mxu0 0.0
    %1988 = vmatpush2.msra.mxu0 0.0
    %1989 = vmatprep.subr.mxu0 0.0
    %1990 = vmatpush2.msra.mxu0 0.0
    %1991 = vmatprep.subr.mxu0 0.0
    %1992 = vmatpush2.msra.mxu0 0.0
    %1993 = vmatprep.subr.mxu0 0.0
    %1994 = vmatpush2.msra.mxu0 0.0
    %1995 = vmatprep.subr.mxu0 0.0
    %1996 = vmatpush2.msra.mxu0 0.0
    %1997 = vmatprep.subr.mxu0 0.0
    %1998 = vmatpush2.msra.mxu0 0.0
    %1999 = vmatprep.subr.mxu0 0.0
    %2000 = vmatpush2.msra.mxu0 0.0
    %2001 = vmatprep.subr.mxu0 0.0
    %2002 = vmatpush2.msra.mxu0 0.0
    %2003 = vmatprep.subr.mxu0 0.0
    %2004 = vmatpush2.msra.mxu0 0.0
    %2005 = vmatprep.subr.mxu0 0.0
    %2006 = vmatpush2.msra.mxu0 0.0
    %2007 = vmatprep.mubr.f32.mxu0 0.0
    %2008 = vmatmul.mubr.f32.gmra.mxu0 %v1941
    %v2009 = vpop.f32.mrf.mxu0
    %v2010 = vadd.f32 0.0, %v2009
    %v2011 = vpop.f32.mrf.mxu0
    %2012 = vdwg.mxu0
    %2013 = vmatprep.subr.mxu0 0.0
    %2014 = vmatpush1.msra.mxu0 0.0
    %2015 = vmatprep.subr.mxu0 0.0
    %2016 = vmatpush1.msra.mxu0 0.0
    %2017 = vmatprep.subr.mxu0 0.0
    %2018 = vmatpush1.msra.mxu0 0.0
    %2019 = vmatprep.subr.mxu0 0.0
    %2020 = vmatpush1.msra.mxu0 0.0
    %2021 = vmatprep.subr.mxu0 0.0
    %2022 = vmatpush1.msra.mxu0 0.0
    %2023 = vmatprep.subr.mxu0 0.0
    %2024 = vmatpush1.msra.mxu0 0.0
    %2025 = vmatprep.subr.mxu0 0.0
    %2026 = vmatpush1.msra.mxu0 0.0
    %2027 = vmatprep.subr.mxu0 0.0
    %2028 = vmatpush1.msra.mxu0 0.0
    %2029 = vmatprep.subr.mxu0 0.0
    %2030 = vmatpush1.msra.mxu0 0.0
    %2031 = vmatprep.subr.mxu0 0.0
    %2032 = vmatpush1.msra.mxu0 0.0
    %2033 = vmatprep.subr.mxu0 0.0
    %2034 = vmatpush1.msra.mxu0 0.0
    %2035 = vmatprep.subr.mxu0 0.0
    %2036 = vmatpush1.msra.mxu0 0.0
    %2037 = vmatprep.subr.mxu0 0.0
    %2038 = vmatpush1.msra.mxu0 %v748
    %2039 = vmatprep.subr.mxu0 0.0
    %2040 = vmatpush1.msra.mxu0 %v747
    %2041 = vmatprep.subr.mxu0 0.0
    %2042 = vmatpush1.msra.mxu0 %v746
    %2043 = vmatprep.subr.mxu0 0.0
    %2044 = vmatpush1.msra.mxu0 %v745
    %2045 = vmatprep.subr.mxu0 0.0
    %2046 = vmatpush2.msra.mxu0 0.0
    %2047 = vmatprep.subr.mxu0 0.0
    %2048 = vmatpush2.msra.mxu0 0.0
    %2049 = vmatprep.subr.mxu0 0.0
    %2050 = vmatpush2.msra.mxu0 0.0
    %2051 = vmatprep.subr.mxu0 0.0
    %2052 = vmatpush2.msra.mxu0 0.0
    %2053 = vmatprep.subr.mxu0 0.0
    %2054 = vmatpush2.msra.mxu0 0.0
    %2055 = vmatprep.subr.mxu0 0.0
    %2056 = vmatpush2.msra.mxu0 0.0
    %2057 = vmatprep.subr.mxu0 0.0
    %2058 = vmatpush2.msra.mxu0 0.0
    %2059 = vmatprep.subr.mxu0 0.0
    %2060 = vmatpush2.msra.mxu0 0.0
    %2061 = vmatprep.subr.mxu0 0.0
    %2062 = vmatpush2.msra.mxu0 0.0
    %2063 = vmatprep.subr.mxu0 0.0
    %2064 = vmatpush2.msra.mxu0 0.0
    %2065 = vmatprep.subr.mxu0 0.0
    %2066 = vmatpush2.msra.mxu0 0.0
    %2067 = vmatprep.subr.mxu0 0.0
    %2068 = vmatpush2.msra.mxu0 0.0
    %2069 = vmatprep.subr.mxu0 0.0
    %2070 = vmatpush2.msra.mxu0 0.0
    %2071 = vmatprep.subr.mxu0 0.0
    %2072 = vmatpush2.msra.mxu0 0.0
    %2073 = vmatprep.subr.mxu0 0.0
    %2074 = vmatpush2.msra.mxu0 0.0
    %2075 = vmatprep.subr.mxu0 0.0
    %2076 = vmatpush2.msra.mxu0 0.0
    %2077 = vmatprep.mubr.f32.mxu0 0.0
    %2078 = vmatmul.mubr.f32.gmra.mxu0 %v1941
    %v2079 = vpop.f32.mrf.mxu0
    %v2080 = vadd.f32 0.0, %v2079
    %v2081 = vpop.f32.mrf.mxu0
    %2082 = vdwg.mxu0
    %2083 = vmatprep.subr.mxu0 0.0
    %2084 = vmatpush1.msra.mxu0 0.0
    %2085 = vmatprep.subr.mxu0 0.0
    %2086 = vmatpush1.msra.mxu0 0.0
    %2087 = vmatprep.subr.mxu0 0.0
    %2088 = vmatpush1.msra.mxu0 0.0
    %2089 = vmatprep.subr.mxu0 0.0
    %2090 = vmatpush1.msra.mxu0 0.0
    %2091 = vmatprep.subr.mxu0 0.0
    %2092 = vmatpush1.msra.mxu0 0.0
    %2093 = vmatprep.subr.mxu0 0.0
    %2094 = vmatpush1.msra.mxu0 0.0
    %2095 = vmatprep.subr.mxu0 0.0
    %2096 = vmatpush1.msra.mxu0 0.0
    %2097 = vmatprep.subr.mxu0 0.0
    %2098 = vmatpush1.msra.mxu0 0.0
    %2099 = vmatprep.subr.mxu0 0.0
    %2100 = vmatpush1.msra.mxu0 0.0
    %2101 = vmatprep.subr.mxu0 0.0
    %2102 = vmatpush1.msra.mxu0 0.0
    %2103 = vmatprep.subr.mxu0 0.0
    %2104 = vmatpush1.msra.mxu0 0.0
    %2105 = vmatprep.subr.mxu0 0.0
    %2106 = vmatpush1.msra.mxu0 0.0
    %2107 = vmatprep.subr.mxu0 0.0
    %2108 = vmatpush1.msra.mxu0 %v752
    %2109 = vmatprep.subr.mxu0 0.0
    %2110 = vmatpush1.msra.mxu0 %v751
    %2111 = vmatprep.subr.mxu0 0.0
    %2112 = vmatpush1.msra.mxu0 %v750
    %2113 = vmatprep.subr.mxu0 0.0
    %2114 = vmatpush1.msra.mxu0 %v749
    %2115 = vmatprep.subr.mxu0 0.0
    %2116 = vmatpush2.msra.mxu0 0.0
    %2117 = vmatprep.subr.mxu0 0.0
    %2118 = vmatpush2.msra.mxu0 0.0
    %2119 = vmatprep.subr.mxu0 0.0
    %2120 = vmatpush2.msra.mxu0 0.0
    %2121 = vmatprep.subr.mxu0 0.0
    %2122 = vmatpush2.msra.mxu0 0.0
    %2123 = vmatprep.subr.mxu0 0.0
    %2124 = vmatpush2.msra.mxu0 0.0
    %2125 = vmatprep.subr.mxu0 0.0
    %2126 = vmatpush2.msra.mxu0 0.0
    %2127 = vmatprep.subr.mxu0 0.0
    %2128 = vmatpush2.msra.mxu0 0.0
    %2129 = vmatprep.subr.mxu0 0.0
    %2130 = vmatpush2.msra.mxu0 0.0
    %2131 = vmatprep.subr.mxu0 0.0
    %2132 = vmatpush2.msra.mxu0 0.0
    %2133 = vmatprep.subr.mxu0 0.0
    %2134 = vmatpush2.msra.mxu0 0.0
    %2135 = vmatprep.subr.mxu0 0.0
    %2136 = vmatpush2.msra.mxu0 0.0
    %2137 = vmatprep.subr.mxu0 0.0
    %2138 = vmatpush2.msra.mxu0 0.0
    %2139 = vmatprep.subr.mxu0 0.0
    %2140 = vmatpush2.msra.mxu0 0.0
    %2141 = vmatprep.subr.mxu0 0.0
    %2142 = vmatpush2.msra.mxu0 0.0
    %2143 = vmatprep.subr.mxu0 0.0
    %2144 = vmatpush2.msra.mxu0 0.0
    %2145 = vmatprep.subr.mxu0 0.0
    %2146 = vmatpush2.msra.mxu0 0.0
    %2147 = vmatprep.mubr.f32.mxu0 0.0
    %2148 = vmatmul.mubr.f32.gmra.mxu0 %v1941
    %v2149 = vpop.f32.mrf.mxu0
    %v2150 = vadd.f32 %v901, %v2149
    %v2151 = vpop.f32.mrf.mxu0
    %2152 = vdwg.mxu0
    %v2153 = vadd.f32 %v484, %v2010
    %v2154 = vxor.u32 %v2153, 2147483648
    %v2155 = vmul.f32 %v2154, 1.442695
    %v2156 = vpow.pop %v2155
    %v2157 = vadd.f32 %v2156, 1.0
    %v2158 = vrcp.pop %v2157
    %v2159 = vmul.f32 1.0, %v2158
    %v2160 = vadd.f32 %v600, %v2080
    %v2161 = vxor.u32 %v2160, 2147483648
    %v2162 = vmul.f32 %v2161, 1.442695
    %v2163 = vpow.pop %v2162
    %v2164 = vadd.f32 %v2163, 1.0
    %v2165 = vrcp.pop %v2164
    %v2166 = vmul.f32 1.0, %v2165
    %v2167 = vmul.f32 %v2159, %v2150
    %v2168 = vadd.f32 %v716, %v2167
    %v2169 = vtanh.pop %v2168
    %v2170 = vsub.f32 1.0, %v2166
    %v2171 = vmul.f32 %v2170, %v2169
    %v2172 = vmul.f32 %v2166, %v1938
    %v2173 = vadd.f32 %v2171, %v2172
    %v2174 = vsel %vm738, %v2173, %v1938
    %v2175 = vsel %vm738, %v2173, -1.0
    %v2177 = vsel %vm273, %v2174, 0
    %2179 = vmatprep.subr.mxu0 0.0
    %2180 = vmatpush1.msra.mxu0 0.0
    %2181 = vmatprep.subr.mxu0 0.0
    %2182 = vmatpush1.msra.mxu0 0.0
    %2183 = vmatprep.subr.mxu0 0.0
    %2184 = vmatpush1.msra.mxu0 0.0
    %2185 = vmatprep.subr.mxu0 0.0
    %2186 = vmatpush1.msra.mxu0 0.0
    %2187 = vmatprep.subr.mxu0 0.0
    %2188 = vmatpush1.msra.mxu0 0.0
    %2189 = vmatprep.subr.mxu0 0.0
    %2190 = vmatpush1.msra.mxu0 0.0
    %2191 = vmatprep.subr.mxu0 0.0
    %2192 = vmatpush1.msra.mxu0 0.0
    %2193 = vmatprep.subr.mxu0 0.0
    %2194 = vmatpush1.msra.mxu0 0.0
    %2195 = vmatprep.subr.mxu0 0.0
    %2196 = vmatpush1.msra.mxu0 0.0
    %2197 = vmatprep.subr.mxu0 0.0
    %2198 = vmatpush1.msra.mxu0 0.0
    %2199 = vmatprep.subr.mxu0 0.0
    %2200 = vmatpush1.msra.mxu0 0.0
    %2201 = vmatprep.subr.mxu0 0.0
    %2202 = vmatpush1.msra.mxu0 0.0
    %2203 = vmatprep.subr.mxu0 0.0
    %2204 = vmatpush1.msra.mxu0 %v744
    %2205 = vmatprep.subr.mxu0 0.0
    %2206 = vmatpush1.msra.mxu0 %v743
    %2207 = vmatprep.subr.mxu0 0.0
    %2208 = vmatpush1.msra.mxu0 %v742
    %2209 = vmatprep.subr.mxu0 0.0
    %2210 = vmatpush1.msra.mxu0 %v741
    %2211 = vmatprep.subr.mxu0 0.0
    %2212 = vmatpush2.msra.mxu0 0.0
    %2213 = vmatprep.subr.mxu0 0.0
    %2214 = vmatpush2.msra.mxu0 0.0
    %2215 = vmatprep.subr.mxu0 0.0
    %2216 = vmatpush2.msra.mxu0 0.0
    %2217 = vmatprep.subr.mxu0 0.0
    %2218 = vmatpush2.msra.mxu0 0.0
    %2219 = vmatprep.subr.mxu0 0.0
    %2220 = vmatpush2.msra.mxu0 0.0
    %2221 = vmatprep.subr.mxu0 0.0
    %2222 = vmatpush2.msra.mxu0 0.0
    %2223 = vmatprep.subr.mxu0 0.0
    %2224 = vmatpush2.msra.mxu0 0.0
    %2225 = vmatprep.subr.mxu0 0.0
    %2226 = vmatpush2.msra.mxu0 0.0
    %2227 = vmatprep.subr.mxu0 0.0
    %2228 = vmatpush2.msra.mxu0 0.0
    %2229 = vmatprep.subr.mxu0 0.0
    %2230 = vmatpush2.msra.mxu0 0.0
    %2231 = vmatprep.subr.mxu0 0.0
    %2232 = vmatpush2.msra.mxu0 0.0
    %2233 = vmatprep.subr.mxu0 0.0
    %2234 = vmatpush2.msra.mxu0 0.0
    %2235 = vmatprep.subr.mxu0 0.0
    %2236 = vmatpush2.msra.mxu0 0.0
    %2237 = vmatprep.subr.mxu0 0.0
    %2238 = vmatpush2.msra.mxu0 0.0
    %2239 = vmatprep.subr.mxu0 0.0
    %2240 = vmatpush2.msra.mxu0 0.0
    %2241 = vmatprep.subr.mxu0 0.0
    %2242 = vmatpush2.msra.mxu0 0.0
    %2243 = vmatprep.mubr.f32.mxu0 0.0
    %2244 = vmatmul.mubr.f32.gmra.mxu0 %v2177
    %v2245 = vpop.f32.mrf.mxu0
    %v2246 = vadd.f32 0.0, %v2245
    %v2247 = vpop.f32.mrf.mxu0
    %2248 = vdwg.mxu0
    %2249 = vmatprep.subr.mxu0 0.0
    %2250 = vmatpush1.msra.mxu0 0.0
    %2251 = vmatprep.subr.mxu0 0.0
    %2252 = vmatpush1.msra.mxu0 0.0
    %2253 = vmatprep.subr.mxu0 0.0
    %2254 = vmatpush1.msra.mxu0 0.0
    %2255 = vmatprep.subr.mxu0 0.0
    %2256 = vmatpush1.msra.mxu0 0.0
    %2257 = vmatprep.subr.mxu0 0.0
    %2258 = vmatpush1.msra.mxu0 0.0
    %2259 = vmatprep.subr.mxu0 0.0
    %2260 = vmatpush1.msra.mxu0 0.0
    %2261 = vmatprep.subr.mxu0 0.0
    %2262 = vmatpush1.msra.mxu0 0.0
    %2263 = vmatprep.subr.mxu0 0.0
    %2264 = vmatpush1.msra.mxu0 0.0
    %2265 = vmatprep.subr.mxu0 0.0
    %2266 = vmatpush1.msra.mxu0 0.0
    %2267 = vmatprep.subr.mxu0 0.0
    %2268 = vmatpush1.msra.mxu0 0.0
    %2269 = vmatprep.subr.mxu0 0.0
    %2270 = vmatpush1.msra.mxu0 0.0
    %2271 = vmatprep.subr.mxu0 0.0
    %2272 = vmatpush1.msra.mxu0 0.0
    %2273 = vmatprep.subr.mxu0 0.0
    %2274 = vmatpush1.msra.mxu0 %v748
    %2275 = vmatprep.subr.mxu0 0.0
    %2276 = vmatpush1.msra.mxu0 %v747
    %2277 = vmatprep.subr.mxu0 0.0
    %2278 = vmatpush1.msra.mxu0 %v746
    %2279 = vmatprep.subr.mxu0 0.0
    %2280 = vmatpush1.msra.mxu0 %v745
    %2281 = vmatprep.subr.mxu0 0.0
    %2282 = vmatpush2.msra.mxu0 0.0
    %2283 = vmatprep.subr.mxu0 0.0
    %2284 = vmatpush2.msra.mxu0 0.0
    %2285 = vmatprep.subr.mxu0 0.0
    %2286 = vmatpush2.msra.mxu0 0.0
    %2287 = vmatprep.subr.mxu0 0.0
    %2288 = vmatpush2.msra.mxu0 0.0
    %2289 = vmatprep.subr.mxu0 0.0
    %2290 = vmatpush2.msra.mxu0 0.0
    %2291 = vmatprep.subr.mxu0 0.0
    %2292 = vmatpush2.msra.mxu0 0.0
    %2293 = vmatprep.subr.mxu0 0.0
    %2294 = vmatpush2.msra.mxu0 0.0
    %2295 = vmatprep.subr.mxu0 0.0
    %2296 = vmatpush2.msra.mxu0 0.0
    %2297 = vmatprep.subr.mxu0 0.0
    %2298 = vmatpush2.msra.mxu0 0.0
    %2299 = vmatprep.subr.mxu0 0.0
    %2300 = vmatpush2.msra.mxu0 0.0
    %2301 = vmatprep.subr.mxu0 0.0
    %2302 = vmatpush2.msra.mxu0 0.0
    %2303 = vmatprep.subr.mxu0 0.0
    %2304 = vmatpush2.msra.mxu0 0.0
    %2305 = vmatprep.subr.mxu0 0.0
    %2306 = vmatpush2.msra.mxu0 0.0
    %2307 = vmatprep.subr.mxu0 0.0
    %2308 = vmatpush2.msra.mxu0 0.0
    %2309 = vmatprep.subr.mxu0 0.0
    %2310 = vmatpush2.msra.mxu0 0.0
    %2311 = vmatprep.subr.mxu0 0.0
    %2312 = vmatpush2.msra.mxu0 0.0
    %2313 = vmatprep.mubr.f32.mxu0 0.0
    %2314 = vmatmul.mubr.f32.gmra.mxu0 %v2177
    %v2315 = vpop.f32.mrf.mxu0
    %v2316 = vadd.f32 0.0, %v2315
    %v2317 = vpop.f32.mrf.mxu0
    %2318 = vdwg.mxu0
    %2319 = vmatprep.subr.mxu0 0.0
    %2320 = vmatpush1.msra.mxu0 0.0
    %2321 = vmatprep.subr.mxu0 0.0
    %2322 = vmatpush1.msra.mxu0 0.0
    %2323 = vmatprep.subr.mxu0 0.0
    %2324 = vmatpush1.msra.mxu0 0.0
    %2325 = vmatprep.subr.mxu0 0.0
    %2326 = vmatpush1.msra.mxu0 0.0
    %2327 = vmatprep.subr.mxu0 0.0
    %2328 = vmatpush1.msra.mxu0 0.0
    %2329 = vmatprep.subr.mxu0 0.0
    %2330 = vmatpush1.msra.mxu0 0.0
    %2331 = vmatprep.subr.mxu0 0.0
    %2332 = vmatpush1.msra.mxu0 0.0
    %2333 = vmatprep.subr.mxu0 0.0
    %2334 = vmatpush1.msra.mxu0 0.0
    %2335 = vmatprep.subr.mxu0 0.0
    %2336 = vmatpush1.msra.mxu0 0.0
    %2337 = vmatprep.subr.mxu0 0.0
    %2338 = vmatpush1.msra.mxu0 0.0
    %2339 = vmatprep.subr.mxu0 0.0
    %2340 = vmatpush1.msra.mxu0 0.0
    %2341 = vmatprep.subr.mxu0 0.0
    %2342 = vmatpush1.msra.mxu0 0.0
    %2343 = vmatprep.subr.mxu0 0.0
    %2344 = vmatpush1.msra.mxu0 %v752
    %2345 = vmatprep.subr.mxu0 0.0
    %2346 = vmatpush1.msra.mxu0 %v751
    %2347 = vmatprep.subr.mxu0 0.0
    %2348 = vmatpush1.msra.mxu0 %v750
    %2349 = vmatprep.subr.mxu0 0.0
    %2350 = vmatpush1.msra.mxu0 %v749
    %2351 = vmatprep.subr.mxu0 0.0
    %2352 = vmatpush2.msra.mxu0 0.0
    %2353 = vmatprep.subr.mxu0 0.0
    %2354 = vmatpush2.msra.mxu0 0.0
    %2355 = vmatprep.subr.mxu0 0.0
    %2356 = vmatpush2.msra.mxu0 0.0
    %2357 = vmatprep.subr.mxu0 0.0
    %2358 = vmatpush2.msra.mxu0 0.0
    %2359 = vmatprep.subr.mxu0 0.0
    %2360 = vmatpush2.msra.mxu0 0.0
    %2361 = vmatprep.subr.mxu0 0.0
    %2362 = vmatpush2.msra.mxu0 0.0
    %2363 = vmatprep.subr.mxu0 0.0
    %2364 = vmatpush2.msra.mxu0 0.0
    %2365 = vmatprep.subr.mxu0 0.0
    %2366 = vmatpush2.msra.mxu0 0.0
    %2367 = vmatprep.subr.mxu0 0.0
    %2368 = vmatpush2.msra.mxu0 0.0
    %2369 = vmatprep.subr.mxu0 0.0
    %2370 = vmatpush2.msra.mxu0 0.0
    %2371 = vmatprep.subr.mxu0 0.0
    %2372 = vmatpush2.msra.mxu0 0.0
    %2373 = vmatprep.subr.mxu0 0.0
    %2374 = vmatpush2.msra.mxu0 0.0
    %2375 = vmatprep.subr.mxu0 0.0
    %2376 = vmatpush2.msra.mxu0 0.0
    %2377 = vmatprep.subr.mxu0 0.0
    %2378 = vmatpush2.msra.mxu0 0.0
    %2379 = vmatprep.subr.mxu0 0.0
    %2380 = vmatpush2.msra.mxu0 0.0
    %2381 = vmatprep.subr.mxu0 0.0
    %2382 = vmatpush2.msra.mxu0 0.0
    %2383 = vmatprep.mubr.f32.mxu0 0.0
    %2384 = vmatmul.mubr.f32.gmra.mxu0 %v2177
    %v2385 = vpop.f32.mrf.mxu0
    %v2386 = vadd.f32 %v901, %v2385
    %v2387 = vpop.f32.mrf.mxu0
    %2388 = vdwg.mxu0
    %v2389 = vadd.f32 %v489, %v2246
    %v2390 = vxor.u32 %v2389, 2147483648
    %v2391 = vmul.f32 %v2390, 1.442695
    %v2392 = vpow.pop %v2391
    %v2393 = vadd.f32 %v2392, 1.0
    %v2394 = vrcp.pop %v2393
    %v2395 = vmul.f32 1.0, %v2394
    %v2396 = vadd.f32 %v605, %v2316
    %v2397 = vxor.u32 %v2396, 2147483648
    %v2398 = vmul.f32 %v2397, 1.442695
    %v2399 = vpow.pop %v2398
    %v2400 = vadd.f32 %v2399, 1.0
    %v2401 = vrcp.pop %v2400
    %v2402 = vmul.f32 1.0, %v2401
    %v2403 = vmul.f32 %v2395, %v2386
    %v2404 = vadd.f32 %v721, %v2403
    %v2405 = vtanh.pop %v2404
    %v2406 = vsub.f32 1.0, %v2402
    %v2407 = vmul.f32 %v2406, %v2405
    %v2408 = vmul.f32 %v2402, %v2174
    %v2409 = vadd.f32 %v2407, %v2408
    %v2410 = vsel %vm739, %v2409, %v2174
    %v2411 = vsel %vm739, %v2409, -1.0
    %v2413 = vsel %vm273, %v2410, 0
    %2415 = vmatprep.subr.mxu0 0.0
    %2416 = vmatpush1.msra.mxu0 0.0
    %2417 = vmatprep.subr.mxu0 0.0
    %2418 = vmatpush1.msra.mxu0 0.0
    %2419 = vmatprep.subr.mxu0 0.0
    %2420 = vmatpush1.msra.mxu0 0.0
    %2421 = vmatprep.subr.mxu0 0.0
    %2422 = vmatpush1.msra.mxu0 0.0
    %2423 = vmatprep.subr.mxu0 0.0
    %2424 = vmatpush1.msra.mxu0 0.0
    %2425 = vmatprep.subr.mxu0 0.0
    %2426 = vmatpush1.msra.mxu0 0.0
    %2427 = vmatprep.subr.mxu0 0.0
    %2428 = vmatpush1.msra.mxu0 0.0
    %2429 = vmatprep.subr.mxu0 0.0
    %2430 = vmatpush1.msra.mxu0 0.0
    %2431 = vmatprep.subr.mxu0 0.0
    %2432 = vmatpush1.msra.mxu0 0.0
    %2433 = vmatprep.subr.mxu0 0.0
    %2434 = vmatpush1.msra.mxu0 0.0
    %2435 = vmatprep.subr.mxu0 0.0
    %2436 = vmatpush1.msra.mxu0 0.0
    %2437 = vmatprep.subr.mxu0 0.0
    %2438 = vmatpush1.msra.mxu0 0.0
    %2439 = vmatprep.subr.mxu0 0.0
    %2440 = vmatpush1.msra.mxu0 %v744
    %2441 = vmatprep.subr.mxu0 0.0
    %2442 = vmatpush1.msra.mxu0 %v743
    %2443 = vmatprep.subr.mxu0 0.0
    %2444 = vmatpush1.msra.mxu0 %v742
    %2445 = vmatprep.subr.mxu0 0.0
    %2446 = vmatpush1.msra.mxu0 %v741
    %2447 = vmatprep.subr.mxu0 0.0
    %2448 = vmatpush2.msra.mxu0 0.0
    %2449 = vmatprep.subr.mxu0 0.0
    %2450 = vmatpush2.msra.mxu0 0.0
    %2451 = vmatprep.subr.mxu0 0.0
    %2452 = vmatpush2.msra.mxu0 0.0
    %2453 = vmatprep.subr.mxu0 0.0
    %2454 = vmatpush2.msra.mxu0 0.0
    %2455 = vmatprep.subr.mxu0 0.0
    %2456 = vmatpush2.msra.mxu0 0.0
    %2457 = vmatprep.subr.mxu0 0.0
    %2458 = vmatpush2.msra.mxu0 0.0
    %2459 = vmatprep.subr.mxu0 0.0
    %2460 = vmatpush2.msra.mxu0 0.0
    %2461 = vmatprep.subr.mxu0 0.0
    %2462 = vmatpush2.msra.mxu0 0.0
    %2463 = vmatprep.subr.mxu0 0.0
    %2464 = vmatpush2.msra.mxu0 0.0
    %2465 = vmatprep.subr.mxu0 0.0
    %2466 = vmatpush2.msra.mxu0 0.0
    %2467 = vmatprep.subr.mxu0 0.0
    %2468 = vmatpush2.msra.mxu0 0.0
    %2469 = vmatprep.subr.mxu0 0.0
    %2470 = vmatpush2.msra.mxu0 0.0
    %2471 = vmatprep.subr.mxu0 0.0
    %2472 = vmatpush2.msra.mxu0 0.0
    %2473 = vmatprep.subr.mxu0 0.0
    %2474 = vmatpush2.msra.mxu0 0.0
    %2475 = vmatprep.subr.mxu0 0.0
    %2476 = vmatpush2.msra.mxu0 0.0
    %2477 = vmatprep.subr.mxu0 0.0
    %2478 = vmatpush2.msra.mxu0 0.0
    %2479 = vmatprep.mubr.f32.mxu0 0.0
    %2480 = vmatmul.mubr.f32.gmra.mxu0 %v2413
    %v2481 = vpop.f32.mrf.mxu0
    %v2482 = vadd.f32 0.0, %v2481
    %v2483 = vpop.f32.mrf.mxu0
    %2484 = vdwg.mxu0
    %2485 = vmatprep.subr.mxu0 0.0
    %2486 = vmatpush1.msra.mxu0 0.0
    %2487 = vmatprep.subr.mxu0 0.0
    %2488 = vmatpush1.msra.mxu0 0.0
    %2489 = vmatprep.subr.mxu0 0.0
    %2490 = vmatpush1.msra.mxu0 0.0
    %2491 = vmatprep.subr.mxu0 0.0
    %2492 = vmatpush1.msra.mxu0 0.0
    %2493 = vmatprep.subr.mxu0 0.0
    %2494 = vmatpush1.msra.mxu0 0.0
    %2495 = vmatprep.subr.mxu0 0.0
    %2496 = vmatpush1.msra.mxu0 0.0
    %2497 = vmatprep.subr.mxu0 0.0
    %2498 = vmatpush1.msra.mxu0 0.0
    %2499 = vmatprep.subr.mxu0 0.0
    %2500 = vmatpush1.msra.mxu0 0.0
    %2501 = vmatprep.subr.mxu0 0.0
    %2502 = vmatpush1.msra.mxu0 0.0
    %2503 = vmatprep.subr.mxu0 0.0
    %2504 = vmatpush1.msra.mxu0 0.0
    %2505 = vmatprep.subr.mxu0 0.0
    %2506 = vmatpush1.msra.mxu0 0.0
    %2507 = vmatprep.subr.mxu0 0.0
    %2508 = vmatpush1.msra.mxu0 0.0
    %2509 = vmatprep.subr.mxu0 0.0
    %2510 = vmatpush1.msra.mxu0 %v748
    %2511 = vmatprep.subr.mxu0 0.0
    %2512 = vmatpush1.msra.mxu0 %v747
    %2513 = vmatprep.subr.mxu0 0.0
    %2514 = vmatpush1.msra.mxu0 %v746
    %2515 = vmatprep.subr.mxu0 0.0
    %2516 = vmatpush1.msra.mxu0 %v745
    %2517 = vmatprep.subr.mxu0 0.0
    %2518 = vmatpush2.msra.mxu0 0.0
    %2519 = vmatprep.subr.mxu0 0.0
    %2520 = vmatpush2.msra.mxu0 0.0
    %2521 = vmatprep.subr.mxu0 0.0
    %2522 = vmatpush2.msra.mxu0 0.0
    %2523 = vmatprep.subr.mxu0 0.0
    %2524 = vmatpush2.msra.mxu0 0.0
    %2525 = vmatprep.subr.mxu0 0.0
    %2526 = vmatpush2.msra.mxu0 0.0
    %2527 = vmatprep.subr.mxu0 0.0
    %2528 = vmatpush2.msra.mxu0 0.0
    %2529 = vmatprep.subr.mxu0 0.0
    %2530 = vmatpush2.msra.mxu0 0.0
    %2531 = vmatprep.subr.mxu0 0.0
    %2532 = vmatpush2.msra.mxu0 0.0
    %2533 = vmatprep.subr.mxu0 0.0
    %2534 = vmatpush2.msra.mxu0 0.0
    %2535 = vmatprep.subr.mxu0 0.0
    %2536 = vmatpush2.msra.mxu0 0.0
    %2537 = vmatprep.subr.mxu0 0.0
    %2538 = vmatpush2.msra.mxu0 0.0
    %2539 = vmatprep.subr.mxu0 0.0
    %2540 = vmatpush2.msra.mxu0 0.0
    %2541 = vmatprep.subr.mxu0 0.0
    %2542 = vmatpush2.msra.mxu0 0.0
    %2543 = vmatprep.subr.mxu0 0.0
    %2544 = vmatpush2.msra.mxu0 0.0
    %2545 = vmatprep.subr.mxu0 0.0
    %2546 = vmatpush2.msra.mxu0 0.0
    %2547 = vmatprep.subr.mxu0 0.0
    %2548 = vmatpush2.msra.mxu0 0.0
    %2549 = vmatprep.mubr.f32.mxu0 0.0
    %2550 = vmatmul.mubr.f32.gmra.mxu0 %v2413
    %v2551 = vpop.f32.mrf.mxu0
    %v2552 = vadd.f32 0.0, %v2551
    %v2553 = vpop.f32.mrf.mxu0
    %2554 = vdwg.mxu0
    %2555 = vmatprep.subr.mxu0 0.0
    %2556 = vmatpush1.msra.mxu0 0.0
    %2557 = vmatprep.subr.mxu0 0.0
    %2558 = vmatpush1.msra.mxu0 0.0
    %2559 = vmatprep.subr.mxu0 0.0
    %2560 = vmatpush1.msra.mxu0 0.0
    %2561 = vmatprep.subr.mxu0 0.0
    %2562 = vmatpush1.msra.mxu0 0.0
    %2563 = vmatprep.subr.mxu0 0.0
    %2564 = vmatpush1.msra.mxu0 0.0
    %2565 = vmatprep.subr.mxu0 0.0
    %2566 = vmatpush1.msra.mxu0 0.0
    %2567 = vmatprep.subr.mxu0 0.0
    %2568 = vmatpush1.msra.mxu0 0.0
    %2569 = vmatprep.subr.mxu0 0.0
    %2570 = vmatpush1.msra.mxu0 0.0
    %2571 = vmatprep.subr.mxu0 0.0
    %2572 = vmatpush1.msra.mxu0 0.0
    %2573 = vmatprep.subr.mxu0 0.0
    %2574 = vmatpush1.msra.mxu0 0.0
    %2575 = vmatprep.subr.mxu0 0.0
    %2576 = vmatpush1.msra.mxu0 0.0
    %2577 = vmatprep.subr.mxu0 0.0
    %2578 = vmatpush1.msra.mxu0 0.0
    %2579 = vmatprep.subr.mxu0 0.0
    %2580 = vmatpush1.msra.mxu0 %v752
    %2581 = vmatprep.subr.mxu0 0.0
    %2582 = vmatpush1.msra.mxu0 %v751
    %2583 = vmatprep.subr.mxu0 0.0
    %2584 = vmatpush1.msra.mxu0 %v750
    %2585 = vmatprep.subr.mxu0 0.0
    %2586 = vmatpush1.msra.mxu0 %v749
    %2587 = vmatprep.subr.mxu0 0.0
    %2588 = vmatpush2.msra.mxu0 0.0
    %2589 = vmatprep.subr.mxu0 0.0
    %2590 = vmatpush2.msra.mxu0 0.0
    %2591 = vmatprep.subr.mxu0 0.0
    %2592 = vmatpush2.msra.mxu0 0.0
    %2593 = vmatprep.subr.mxu0 0.0
    %2594 = vmatpush2.msra.mxu0 0.0
    %2595 = vmatprep.subr.mxu0 0.0
    %2596 = vmatpush2.msra.mxu0 0.0
    %2597 = vmatprep.subr.mxu0 0.0
    %2598 = vmatpush2.msra.mxu0 0.0
    %2599 = vmatprep.subr.mxu0 0.0
    %2600 = vmatpush2.msra.mxu0 0.0
    %2601 = vmatprep.subr.mxu0 0.0
    %2602 = vmatpush2.msra.mxu0 0.0
    %2603 = vmatprep.subr.mxu0 0.0
    %2604 = vmatpush2.msra.mxu0 0.0
    %2605 = vmatprep.subr.mxu0 0.0
    %2606 = vmatpush2.msra.mxu0 0.0
    %2607 = vmatprep.subr.mxu0 0.0
    %2608 = vmatpush2.msra.mxu0 0.0
    %2609 = vmatprep.subr.mxu0 0.0
    %2610 = vmatpush2.msra.mxu0 0.0
    %2611 = vmatprep.subr.mxu0 0.0
    %2612 = vmatpush2.msra.mxu0 0.0
    %2613 = vmatprep.subr.mxu0 0.0
    %2614 = vmatpush2.msra.mxu0 0.0
    %2615 = vmatprep.subr.mxu0 0.0
    %2616 = vmatpush2.msra.mxu0 0.0
    %2617 = vmatprep.subr.mxu0 0.0
    %2618 = vmatpush2.msra.mxu0 0.0
    %2619 = vmatprep.mubr.f32.mxu0 0.0
    %2620 = vmatmul.mubr.f32.gmra.mxu0 %v2413
    %v2621 = vpop.f32.mrf.mxu0
    %v2622 = vadd.f32 %v901, %v2621
    %v2623 = vpop.f32.mrf.mxu0
    %2624 = vdwg.mxu0
    %v2625 = vadd.f32 %v494, %v2482
    %v2626 = vxor.u32 %v2625, 2147483648
    %v2627 = vmul.f32 %v2626, 1.442695
    %v2628 = vpow.pop %v2627
    %v2629 = vadd.f32 %v2628, 1.0
    %v2630 = vrcp.pop %v2629
    %v2631 = vmul.f32 1.0, %v2630
    %v2632 = vadd.f32 %v610, %v2552
    %v2633 = vxor.u32 %v2632, 2147483648
    %v2634 = vmul.f32 %v2633, 1.442695
    %v2635 = vpow.pop %v2634
    %v2636 = vadd.f32 %v2635, 1.0
    %v2637 = vrcp.pop %v2636
    %v2638 = vmul.f32 1.0, %v2637
    %v2639 = vmul.f32 %v2631, %v2622
    %v2640 = vadd.f32 %v726, %v2639
    %v2641 = vtanh.pop %v2640
    %v2642 = vsub.f32 1.0, %v2638
    %v2643 = vmul.f32 %v2642, %v2641
    %v2644 = vmul.f32 %v2638, %v2410
    %v2645 = vadd.f32 %v2643, %v2644
    %v2646 = vsel %vm740, %v2645, -1.0
    %v2647 = vld [vmem:[%s15] sm:$0xff]
    %v2648 = vld [vmem:[%s15 + $0x8] sm:$0xff]
    %v2649 = vld [vmem:[%s15 + $0x10] sm:$0xff]
    %v2650 = vld [vmem:[%s15 + $0x18] sm:$0xff]
    %v2652 = vsel %vm273, %v995, 0
    %v2655 = vsel %vm273, %v1231, 0
    %v2658 = vsel %vm273, %v1467, 0
    %v2661 = vsel %vm273, %v1703, 0
    %v2664 = vsel %vm273, %v1939, 0
    %v2667 = vsel %vm273, %v2175, 0
    %v2670 = vsel %vm273, %v2411, 0
    %v2673 = vsel %vm273, %v2646, 0
    %2675 = vmatprep.subr.mxu0 0.0
    %2676 = vmatpush1.msra.mxu0 0.0
    %2677 = vmatprep.subr.mxu0 0.0
    %2678 = vmatpush1.msra.mxu0 0.0
    %2679 = vmatprep.subr.mxu0 0.0
    %2680 = vmatpush1.msra.mxu0 0.0
    %2681 = vmatprep.subr.mxu0 0.0
    %2682 = vmatpush1.msra.mxu0 0.0
    %2683 = vmatprep.subr.mxu0 0.0
    %2684 = vmatpush1.msra.mxu0 0.0
    %2685 = vmatprep.subr.mxu0 0.0
    %2686 = vmatpush1.msra.mxu0 0.0
    %2687 = vmatprep.subr.mxu0 0.0
    %2688 = vmatpush1.msra.mxu0 0.0
    %2689 = vmatprep.subr.mxu0 0.0
    %2690 = vmatpush1.msra.mxu0 0.0
    %2691 = vmatprep.subr.mxu0 0.0
    %2692 = vmatpush1.msra.mxu0 0.0
    %2693 = vmatprep.subr.mxu0 0.0
    %2694 = vmatpush1.msra.mxu0 0.0
    %2695 = vmatprep.subr.mxu0 0.0
    %2696 = vmatpush1.msra.mxu0 0.0
    %2697 = vmatprep.subr.mxu0 0.0
    %2698 = vmatpush1.msra.mxu0 0.0
    %2699 = vmatprep.subr.mxu0 0.0
    %2700 = vmatpush1.msra.mxu0 %v2650
    %2701 = vmatprep.subr.mxu0 0.0
    %2702 = vmatpush1.msra.mxu0 %v2649
    %2703 = vmatprep.subr.mxu0 0.0
    %2704 = vmatpush1.msra.mxu0 %v2648
    %2705 = vmatprep.subr.mxu0 0.0
    %2706 = vmatpush1.msra.mxu0 %v2647
    %2707 = vmatprep.subr.mxu0 0.0
    %2708 = vmatpush2.msra.mxu0 0.0
    %2709 = vmatprep.subr.mxu0 0.0
    %2710 = vmatpush2.msra.mxu0 0.0
    %2711 = vmatprep.subr.mxu0 0.0
    %2712 = vmatpush2.msra.mxu0 0.0
    %2713 = vmatprep.subr.mxu0 0.0
    %2714 = vmatpush2.msra.mxu0 0.0
    %2715 = vmatprep.subr.mxu0 0.0
    %2716 = vmatpush2.msra.mxu0 0.0
    %2717 = vmatprep.subr.mxu0 0.0
    %2718 = vmatpush2.msra.mxu0 0.0
    %2719 = vmatprep.subr.mxu0 0.0
    %2720 = vmatpush2.msra.mxu0 0.0
    %2721 = vmatprep.subr.mxu0 0.0
    %2722 = vmatpush2.msra.mxu0 0.0
    %2723 = vmatprep.subr.mxu0 0.0
    %2724 = vmatpush2.msra.mxu0 0.0
    %2725 = vmatprep.subr.mxu0 0.0
    %2726 = vmatpush2.msra.mxu0 0.0
    %2727 = vmatprep.subr.mxu0 0.0
    %2728 = vmatpush2.msra.mxu0 0.0
    %2729 = vmatprep.subr.mxu0 0.0
    %2730 = vmatpush2.msra.mxu0 0.0
    %2731 = vmatprep.subr.mxu0 0.0
    %2732 = vmatpush2.msra.mxu0 0.0
    %2733 = vmatprep.subr.mxu0 0.0
    %2734 = vmatpush2.msra.mxu0 0.0
    %2735 = vmatprep.subr.mxu0 0.0
    %2736 = vmatpush2.msra.mxu0 0.0
    %2737 = vmatprep.subr.mxu0 0.0
    %2738 = vmatpush2.msra.mxu0 0.0
    %2739 = vmatprep.mubr.f32.mxu0 0.0
    %2740 = vmatmul.mubr.f32.gmra.mxu0 %v2652
    %v2741 = vpop.f32.mrf.mxu0
    %v2742 = vadd.f32 %v344, %v2741
    %v2743 = vpop.f32.mrf.mxu0
    %2744 = vmatprep.mubr.f32.mxu0 0.0
    %2745 = vmatmul.mubr.f32.gmra.mxu0 %v2655
    %v2746 = vpop.f32.mrf.mxu0
    %v2747 = vadd.f32 %v344, %v2746
    %v2748 = vpop.f32.mrf.mxu0
    %2749 = vmatprep.mubr.f32.mxu0 0.0
    %2750 = vmatmul.mubr.f32.gmra.mxu0 %v2658
    %v2751 = vpop.f32.mrf.mxu0
    %v2752 = vadd.f32 %v344, %v2751
    %v2753 = vpop.f32.mrf.mxu0
    %2754 = vmatprep.mubr.f32.mxu0 0.0
    %2755 = vmatmul.mubr.f32.gmra.mxu0 %v2661
    %v2756 = vpop.f32.mrf.mxu0
    %v2757 = vadd.f32 %v344, %v2756
    %v2758 = vpop.f32.mrf.mxu0
    %2759 = vmatprep.mubr.f32.mxu0 0.0
    %2760 = vmatmul.mubr.f32.gmra.mxu0 %v2664
    %v2761 = vpop.f32.mrf.mxu0
    %v2762 = vadd.f32 %v344, %v2761
    %v2763 = vpop.f32.mrf.mxu0
    %2764 = vmatprep.mubr.f32.mxu0 0.0
    %2765 = vmatmul.mubr.f32.gmra.mxu0 %v2667
    %v2766 = vpop.f32.mrf.mxu0
    %v2767 = vadd.f32 %v344, %v2766
    %v2768 = vpop.f32.mrf.mxu0
    %2769 = vmatprep.mubr.f32.mxu0 0.0
    %2770 = vmatmul.mubr.f32.gmra.mxu0 %v2670
    %v2771 = vpop.f32.mrf.mxu0
    %v2772 = vadd.f32 %v344, %v2771
    %v2773 = vpop.f32.mrf.mxu0
    %2774 = vmatprep.mubr.f32.mxu0 0.0
    %2775 = vmatmul.mubr.f32.gmra.mxu0 %v2673
    %v2776 = vpop.f32.mrf.mxu0
    %v2777 = vadd.f32 %v344, %v2776
    %v2778 = vpop.f32.mrf.mxu0
    %2779 = vdwg.mxu0
    %v2780 = vxor.u32 %v2742, 2147483648
    %v2781 = vxor.u32 %v2747, 2147483648
    %v2782 = vxor.u32 %v2752, 2147483648
    %v2783 = vxor.u32 %v2757, 2147483648
    %v2784 = vxor.u32 %v2762, 2147483648
    %v2785 = vxor.u32 %v2767, 2147483648
    %v2786 = vxor.u32 %v2772, 2147483648
    %v2787 = vxor.u32 %v2777, 2147483648
    %v2788 = vmul.f32 %v2780, 1.442695
    %v2789 = vpow.pop %v2788
    %v2790 = vmul.f32 %v2781, 1.442695
    %v2791 = vpow.pop %v2790
    %v2792 = vmul.f32 %v2782, 1.442695
    %v2793 = vpow.pop %v2792
    %v2794 = vmul.f32 %v2783, 1.442695
    %v2795 = vpow.pop %v2794
    %v2796 = vmul.f32 %v2784, 1.442695
    %v2797 = vpow.pop %v2796
    %v2798 = vmul.f32 %v2785, 1.442695
    %v2799 = vpow.pop %v2798
    %v2800 = vmul.f32 %v2786, 1.442695
    %v2801 = vpow.pop %v2800
    %v2802 = vmul.f32 %v2787, 1.442695
    %v2803 = vpow.pop %v2802
    %v2804 = vadd.f32 %v2789, 1.0
    %v2805 = vadd.f32 %v2791, 1.0
    %v2806 = vadd.f32 %v2793, 1.0
    %v2807 = vadd.f32 %v2795, 1.0
    %v2808 = vadd.f32 %v2797, 1.0
    %v2809 = vadd.f32 %v2799, 1.0
    %v2810 = vadd.f32 %v2801, 1.0
    %v2811 = vadd.f32 %v2803, 1.0
    %v2812 = vrcp.pop %v2804
    %v2813 = vmul.f32 1.0, %v2812
    %v2814 = vrcp.pop %v2805
    %v2815 = vmul.f32 1.0, %v2814
    %v2816 = vrcp.pop %v2806
    %v2817 = vmul.f32 1.0, %v2816
    %v2818 = vrcp.pop %v2807
    %v2819 = vmul.f32 1.0, %v2818
    %v2820 = vrcp.pop %v2808
    %v2821 = vmul.f32 1.0, %v2820
    %v2822 = vrcp.pop %v2809
    %v2823 = vmul.f32 1.0, %v2822
    %v2824 = vrcp.pop %v2810
    %v2825 = vmul.f32 1.0, %v2824
    %v2826 = vrcp.pop %v2811
    %v2827 = vmul.f32 1.0, %v2826
    %2828 = vst.msk [vmem:[%s18] sm:$0xff] %vm273, %v2813
    %2829 = vst.msk [vmem:[%s18 + $0x8] sm:$0xff] %vm273, %v2815
    %2830 = vst.msk [vmem:[%s18 + $0x10] sm:$0xff] %vm273, %v2817
    %2831 = vst.msk [vmem:[%s18 + $0x18] sm:$0xff] %vm273, %v2819
    %2832 = vst.msk [vmem:[%s18 + $0x20] sm:$0xff] %vm273, %v2821
    %2833 = vst.msk [vmem:[%s18 + $0x28] sm:$0xff] %vm273, %v2823
    %2834 = vst.msk [vmem:[%s18 + $0x30] sm:$0xff] %vm273, %v2825
    %2835 = vst.msk [vmem:[%s18 + $0x38] sm:$0xff] %vm273, %v2827
    // Predicated region
    $region114: #{tpu_custom_call.1} parent=1 // pred_check
      _
    $region115: #{tpu_custom_call.1} parent=1 // pred_check_branch
      %2837 = sbr.rel (0) target = $region117
    $region116: #{tpu_custom_call.1} parent=1 // pred_region
      _
    $region117: #{tpu_custom_call.1} parent=1 // pred_fallthru
      _
    // Predicated region
    $region118: #{tpu_custom_call.1} parent=1 // pred_check
      _
    $region119: #{tpu_custom_call.1} parent=1 // pred_check_branch
      %2839 = sbr.rel (0) target = $region121
    $region120: #{tpu_custom_call.1} parent=1 // pred_region
      _
    $region121: #{tpu_custom_call.1} parent=1 // pred_fallthru
      _
    %2840 = vsyncpa [#allocation3], 1
    %2841 = vsyncpa [#allocation5], 1
    %2842 = vsyncpa [#allocation8], 1
    %2843 = vsyncpa [#allocation11], 1
    %2844 = vsyncpa [#allocation14], 1
    %2845 = vsyncpa [#allocation17], 1

</llo_original>
